<compile_context>
chip_gen: v6e
topology: v6e:2x2x1
jax: 0.10.0
libtpu: 0.0.40
codegen_flags: <defaults>
</compile_context>

<pallas_src>
import functools

import jax
import jax.numpy as jnp
from jax import lax
from jax.experimental import pallas as pl
from jax.experimental.pallas import tpu as pltpu

_EPS = 1e-5          # nn.BatchNorm2d default eps
_NEG_SLOPE = 0.01    # nn.LeakyReLU default negative_slope
_LANE = 128
_VMEM_LIMIT = 32 * 1024 * 1024


def _round_up(x, m):
    return (x + m - 1) // m * m


# --------------------------- Pallas kernels ---------------------------

def _conv_stats_kernel(x_ref, w_ref, mask_ref, y_ref, s_ref, ss_ref, *,
                       offsets, m_out_pad):
    """Conv for one batch image via k*k shifted-window MXU matmuls (transposed layout),
    plus per-batch per-channel sum / sum-of-squares partials for training-mode BN."""
    xv = x_ref[0]                                           # (C_in, Min_pad) bf16
    cop = y_ref.shape[1]

    # Static unroll over the k*k taps; each tap is a contiguous lane-shifted window of the
    # flattened padded image, contracted over C_in on the MXU with f32 accumulation.
    acc = jnp.dot(w_ref[0], xv[:, offsets[0]:offsets[0] + m_out_pad],
                  preferred_element_type=jnp.float32)
    for j in range(1, len(offsets)):
        off = offsets[j]
        acc += jnp.dot(w_ref[j], xv[:, off:off + m_out_pad],
                       preferred_element_type=jnp.float32)

    y_ref[0] = acc.astype(y_ref.dtype)                      # bf16 writeback, lane-dense

    # Mask out the invalid columns of the "wide" output grid (w >= W_out or m >= M_out)
    # so they do not pollute the batch statistics.
    mask = mask_ref[...]                                    # (1, m_out_pad) f32 of 0/1
    yv = acc * mask
    s_ref[0] = jnp.sum(yv, axis=1, keepdims=True)           # (cop, 1) partial sum
    ss_ref[0] = jnp.sum(yv * acc, axis=1, keepdims=True)    # (cop, 1) partial sum of squares
    del cop


def _bn_lrelu_kernel(y_ref, scale_ref, shift_ref, out_ref):
    z = y_ref[0].astype(jnp.float32) * scale_ref[...] + shift_ref[...]
    out_ref[0] = jnp.where(z > 0, z, _NEG_SLOPE * z).astype(out_ref.dtype)


# --------------------------- per-stage wrapper ---------------------------

def _stage(x_nchw, w_oihw, gamma, beta, kernel_size, padding, dilation, out_dtype):
    n, c_in, h, w = x_nchw.shape
    c_out = w_oihw.shape[0]
    k, p, d = kernel_size, padding, dilation

    hp, wp = h + 2 * p, w + 2 * p
    h_out = hp - d * (k - 1)
    w_out = wp - d * (k - 1)
    assert h_out > 0 and w_out > 0

    cop = _round_up(c_out, 8)                   # sublane-aligned channels (no 128-lane pad)
    m_out = h_out * wp                          # conv computed over the padded-width grid
    m_out_pad = _round_up(m_out, _LANE)         # lane-dense output columns
    offsets = [kh * d * wp + kw * d for kh in range(k) for kw in range(k)]
    m_in_pad = _round_up(m_out_pad + offsets[-1], _LANE)

    # NCHW stays native: pad spatially, flatten H*W onto the lane axis, cast to bf16.
    xflat = jnp.pad(x_nchw, ((0, 0), (0, 0), (p, p), (p, p))).reshape(n, c_in, hp * wp)
    xflat = jnp.pad(xflat, ((0, 0), (0, 0), (0, m_in_pad - hp * wp))).astype(jnp.bfloat16)

    # torch Conv2d weight (Cout, Cin, kh, kw) -> (k*k, Cout_pad, Cin) per-tap matrices.
    # NOTE: no bias — it cancels exactly under training-mode BatchNorm.
    wtap = jnp.transpose(w_oihw, (2, 3, 0, 1)).reshape(k * k, c_out, c_in)
    wtap = jnp.pad(wtap, ((0, 0), (0, cop - c_out), (0, 0))).astype(jnp.bfloat16)

    # Validity mask over the wide output grid: keep column m iff m < m_out and (m mod wp) < w_out.
    col = jnp.arange(m_out_pad, dtype=jnp.int32)
    mask = ((col < m_out) & (col % wp < w_out)).astype(jnp.float32).reshape(1, m_out_pad)

    conv_kernel = functools.partial(_conv_stats_kernel, offsets=offsets,
                                    m_out_pad=m_out_pad)
    y, s, ss = pl.pallas_call(
        conv_kernel,
        grid=(n,),
        in_specs=[pl.BlockSpec((1, c_in, m_in_pad), lambda i: (i, 0, 0)),
                  pl.BlockSpec((k * k, cop, c_in), lambda i: (0, 0, 0)),
                  pl.BlockSpec((1, m_out_pad), lambda i: (0, 0))],
        out_specs=[pl.BlockSpec((1, cop, m_out_pad), lambda i: (i, 0, 0)),
                   pl.BlockSpec((1, cop, 1), lambda i: (i, 0, 0)),
                   pl.BlockSpec((1, cop, 1), lambda i: (i, 0, 0))],
        out_shape=[jax.ShapeDtypeStruct((n, cop, m_out_pad), jnp.bfloat16),
                   jax.ShapeDtypeStruct((n, cop, 1), jnp.float32),
                   jax.ShapeDtypeStruct((n, cop, 1), jnp.float32)],
        compiler_params=pltpu.CompilerParams(
            dimension_semantics=("parallel",),       # per-batch partial stats -> megacore OK
            vmem_limit_bytes=_VMEM_LIMIT),
    )(xflat, wtap, mask)

    # Finalize BN statistics (tiny (cop, 1) math) and fold gamma/beta into scale/shift.
    # Single-pass E[x^2]-E[x]^2 in f32; with the bias dropped the conv mean is near zero, so
    # cancellation is mild.  Clamp guards against tiny negative round-off.
    count = float(n * h_out * w_out)
    mean = jnp.sum(s, axis=0) / count
    var = jnp.maximum(jnp.sum(ss, axis=0) / count - mean * mean, 0.0)
    g = jnp.pad(gamma, (0, cop - c_out), constant_values=1.0).reshape(cop, 1)
    b = jnp.pad(beta, (0, cop - c_out)).reshape(cop, 1)
    scale = (g * lax.rsqrt(var + _EPS)).astype(jnp.float32)
    shift = (b - mean * scale).astype(jnp.float32)

    out = pl.pallas_call(
        _bn_lrelu_kernel,
        grid=(n,),
        in_specs=[pl.BlockSpec((1, cop, m_out_pad), lambda i: (i, 0, 0)),
                  pl.BlockSpec((cop, 1), lambda i: (0, 0)),
                  pl.BlockSpec((cop, 1), lambda i: (0, 0))],
        out_specs=pl.BlockSpec((1, cop, m_out_pad), lambda i: (i, 0, 0)),
        out_shape=jax.ShapeDtypeStruct((n, cop, m_out_pad), out_dtype),
        compiler_params=pltpu.CompilerParams(
            dimension_semantics=("parallel",),
            vmem_limit_bytes=_VMEM_LIMIT),
    )(y, scale, shift)

    # Drop padded channels / invalid wide columns; result is already NCHW.
    out = out[:, :c_out, :m_out].reshape(n, c_out, h_out, wp)[:, :, :, :w_out]
    return out


class ConvolutionalProcessingBlockDMPallas:
    """Mirrors ConvolutionalProcessingBlockDM: conv1->bn1->lrelu1->conv2->bn2->lrelu2."""

    def __init__(self, input_shape, num_filters, kernel_size, padding, bias, dilation, key):
        self.input_filters = input_shape[1]
        self.num_filters = num_filters
        self.kernel_size = kernel_size
        self.padding = padding
        self.use_bias = bias
        self.dilation = dilation

        k1, k2, k3, k4 = jax.random.split(key, 4)
        s = 0.1
        self.w1 = s * jax.random.normal(
            k1, (num_filters, self.input_filters, kernel_size, kernel_size), jnp.float32)
        self.b1 = (s * jax.random.normal(k2, (num_filters,), jnp.float32)
                   if bias else jnp.zeros((num_filters,), jnp.float32))
        self.g1 = jnp.ones((num_filters,), jnp.float32)
        self.be1 = jnp.zeros((num_filters,), jnp.float32)
        self.w2 = s * jax.random.normal(
            k3, (num_filters, num_filters, kernel_size, kernel_size), jnp.float32)
        self.b2 = (s * jax.random.normal(k4, (num_filters,), jnp.float32)
                   if bias else jnp.zeros((num_filters,), jnp.float32))
        self.g2 = jnp.ones((num_filters,), jnp.float32)
        self.be2 = jnp.zeros((num_filters,), jnp.float32)

    def __call__(self, x_nchw):
        # Conv biases (b1/b2) are intentionally not fed to the kernels: training-mode BN
        # subtracts the per-channel mean, so they cancel exactly in the final output.
        x = _stage(x_nchw, self.w1, self.g1, self.be1,
                   self.kernel_size, self.padding, self.dilation, jnp.bfloat16)
        x = _stage(x, self.w2, self.g2, self.be2,
                   self.kernel_size, self.padding, self.dilation, jnp.float32)
        return x


# ---------------- pure-JAX reference (sanity check) ----------------
def _ref_stage_nchw(x, w, b, g, be, padding, dilation):
    y = lax.conv_general_dilated(
        x, w, window_strides=(1, 1),
        padding=[(padding, padding), (padding, padding)],
        rhs_dilation=(dilation, dilation),
        dimension_numbers=("NCHW", "OIHW", "NCHW"),
        precision=lax.Precision.HIGHEST)
    y = y + b[None, :, None, None]
    mean = jnp.mean(y, axis=(0, 2, 3), keepdims=True)
    var = jnp.mean((y - mean) ** 2, axis=(0, 2, 3), keepdims=True)
    y = (y - mean) * lax.rsqrt(var + _EPS)
    y = y * g[None, :, None, None] + be[None, :, None, None]
    return jnp.where(y > 0, y, _NEG_SLOPE * y)


def _ref_forward(block, x_nchw):
    x = _ref_stage_nchw(x_nchw, block.w1, block.b1, block.g1, block.be1,
                        block.padding, block.dilation)
    x = _ref_stage_nchw(x, block.w2, block.b2, block.g2, block.be2,
                        block.padding, block.dilation)
    return x


if __name__ == "__main__":
    key = jax.random.PRNGKey(0)
    kx, kparam = jax.random.split(key)

    input_shape = (2, 4, 16, 16)     # (batch, channels, height, width)
    num_filters = 8
    kernel_size = 3
    padding = 1
    dilation = 1
    use_bias = True

    x = jax.random.normal(kx, input_shape, jnp.float32)

    block = ConvolutionalProcessingBlockDMPallas(
        input_shape, num_filters, kernel_size, padding, use_bias, dilation, kparam)

    fwd = jax.jit(block.__call__)
    out = jax.block_until_ready(fwd(x))

    ref = jax.block_until_ready(_ref_forward(block, x))
    assert out.shape == ref.shape == (2, num_filters, 16, 16)
    # bf16 MXU operands / bf16 intermediates (f32 accumulation + stats) vs fp32 reference.
    assert jnp.allclose(out, ref, atol=5e-2, rtol=5e-2), "mismatch vs JAX reference"

    print("KERNEL_OK")
</pallas_src>

<mosaic_0001>
module attributes {stable_mosaic.version = 11 : i64} {
  func.func @_conv_stats_kernel(%arg0: i32, %arg1: memref<1x4x512xbf16, #tpu.memory_space<vmem>>, %arg2: memref<9x8x4xbf16, #tpu.memory_space<vmem>>, %arg3: memref<1x384xf32, #tpu.memory_space<vmem>>, %arg4: memref<1x8x384xbf16, #tpu.memory_space<vmem>>, %arg5: memref<1x8x1xf32, #tpu.memory_space<vmem>>, %arg6: memref<1x8x1xf32, #tpu.memory_space<vmem>>) attributes {dimension_semantics = [#tpu.dimension_semantics<parallel>], iteration_bounds = array<i64: 2>, scalar_prefetch = 0 : i64, scratch_operands = 0 : i64, tpu.core_type = #tpu.core_type<tc>, window_params = [{transform_indices = @transform_0, window_bounds = array<i64: 1, 4, 512>}, {pipeline_mode = #tpu.pipeline_mode<synchronous>, transform_indices = @transform_1, window_bounds = array<i64: 9, 8, 4>}, {pipeline_mode = #tpu.pipeline_mode<synchronous>, transform_indices = @transform_2, window_bounds = array<i64: 1, 384>}, {transform_indices = @transform_3, window_bounds = array<i64: 1, 8, 384>}, {transform_indices = @transform_4, window_bounds = array<i64: 1, 8, 1>}, {transform_indices = @transform_5, window_bounds = array<i64: 1, 8, 1>}]} {
    %c0 = arith.constant 0 : index
    %c0_0 = arith.constant 0 : index
    %c0_1 = arith.constant 0 : index
    %0 = vector.load %arg1[%c0, %c0_0, %c0_1] : memref<1x4x512xbf16, #tpu.memory_space<vmem>>, vector<1x4x512xbf16>
    %1 = vector.shape_cast %0 : vector<1x4x512xbf16> to vector<4x512xbf16>
    %c0_2 = arith.constant 0 : index
    %c0_3 = arith.constant 0 : index
    %c0_4 = arith.constant 0 : index
    %2 = vector.load %arg2[%c0_2, %c0_3, %c0_4] : memref<9x8x4xbf16, #tpu.memory_space<vmem>>, vector<1x8x4xbf16>
    %3 = vector.shape_cast %2 : vector<1x8x4xbf16> to vector<8x4xbf16>
    %4 = vector.extract_strided_slice %1 {offsets = [0, 0], sizes = [4, 384], strides = [1, 1]} : vector<4x512xbf16> to vector<4x384xbf16>
    %cst = arith.constant dense<0.000000e+00> : vector<8x384xf32>
    %5 = tpu.matmul %3, %4, %cst {dimension_numbers = #tpu.dot_dimension_numbers<[1], [0], [0], [1], [0, 0, 1, 1], [], []>} : vector<8x4xbf16>, vector<4x384xbf16>, vector<8x384xf32> -> vector<8x384xf32>
    %c1 = arith.constant 1 : index
    %c0_5 = arith.constant 0 : index
    %c0_6 = arith.constant 0 : index
    %6 = vector.load %arg2[%c1, %c0_5, %c0_6] : memref<9x8x4xbf16, #tpu.memory_space<vmem>>, vector<1x8x4xbf16>
    %7 = vector.shape_cast %6 : vector<1x8x4xbf16> to vector<8x4xbf16>
    %8 = vector.extract_strided_slice %1 {offsets = [0, 1], sizes = [4, 384], strides = [1, 1]} : vector<4x512xbf16> to vector<4x384xbf16>
    %cst_7 = arith.constant dense<0.000000e+00> : vector<8x384xf32>
    %9 = tpu.matmul %7, %8, %cst_7 {dimension_numbers = #tpu.dot_dimension_numbers<[1], [0], [0], [1], [0, 0, 1, 1], [], []>} : vector<8x4xbf16>, vector<4x384xbf16>, vector<8x384xf32> -> vector<8x384xf32>
    %10 = arith.addf %5, %9 : vector<8x384xf32>
    %c2 = arith.constant 2 : index
    %c0_8 = arith.constant 0 : index
    %c0_9 = arith.constant 0 : index
    %11 = vector.load %arg2[%c2, %c0_8, %c0_9] : memref<9x8x4xbf16, #tpu.memory_space<vmem>>, vector<1x8x4xbf16>
    %12 = vector.shape_cast %11 : vector<1x8x4xbf16> to vector<8x4xbf16>
    %13 = vector.extract_strided_slice %1 {offsets = [0, 2], sizes = [4, 384], strides = [1, 1]} : vector<4x512xbf16> to vector<4x384xbf16>
    %cst_10 = arith.constant dense<0.000000e+00> : vector<8x384xf32>
    %14 = tpu.matmul %12, %13, %cst_10 {dimension_numbers = #tpu.dot_dimension_numbers<[1], [0], [0], [1], [0, 0, 1, 1], [], []>} : vector<8x4xbf16>, vector<4x384xbf16>, vector<8x384xf32> -> vector<8x384xf32>
    %15 = arith.addf %10, %14 : vector<8x384xf32>
    %c3 = arith.constant 3 : index
    %c0_11 = arith.constant 0 : index
    %c0_12 = arith.constant 0 : index
    %16 = vector.load %arg2[%c3, %c0_11, %c0_12] : memref<9x8x4xbf16, #tpu.memory_space<vmem>>, vector<1x8x4xbf16>
    %17 = vector.shape_cast %16 : vector<1x8x4xbf16> to vector<8x4xbf16>
    %18 = vector.extract_strided_slice %1 {offsets = [0, 18], sizes = [4, 384], strides = [1, 1]} : vector<4x512xbf16> to vector<4x384xbf16>
    %cst_13 = arith.constant dense<0.000000e+00> : vector<8x384xf32>
    %19 = tpu.matmul %17, %18, %cst_13 {dimension_numbers = #tpu.dot_dimension_numbers<[1], [0], [0], [1], [0, 0, 1, 1], [], []>} : vector<8x4xbf16>, vector<4x384xbf16>, vector<8x384xf32> -> vector<8x384xf32>
    %20 = arith.addf %15, %19 : vector<8x384xf32>
    %c4 = arith.constant 4 : index
    %c0_14 = arith.constant 0 : index
    %c0_15 = arith.constant 0 : index
    %21 = vector.load %arg2[%c4, %c0_14, %c0_15] : memref<9x8x4xbf16, #tpu.memory_space<vmem>>, vector<1x8x4xbf16>
    %22 = vector.shape_cast %21 : vector<1x8x4xbf16> to vector<8x4xbf16>
    %23 = vector.extract_strided_slice %1 {offsets = [0, 19], sizes = [4, 384], strides = [1, 1]} : vector<4x512xbf16> to vector<4x384xbf16>
    %cst_16 = arith.constant dense<0.000000e+00> : vector<8x384xf32>
    %24 = tpu.matmul %22, %23, %cst_16 {dimension_numbers = #tpu.dot_dimension_numbers<[1], [0], [0], [1], [0, 0, 1, 1], [], []>} : vector<8x4xbf16>, vector<4x384xbf16>, vector<8x384xf32> -> vector<8x384xf32>
    %25 = arith.addf %20, %24 : vector<8x384xf32>
    %c5 = arith.constant 5 : index
    %c0_17 = arith.constant 0 : index
    %c0_18 = arith.constant 0 : index
    %26 = vector.load %arg2[%c5, %c0_17, %c0_18] : memref<9x8x4xbf16, #tpu.memory_space<vmem>>, vector<1x8x4xbf16>
    %27 = vector.shape_cast %26 : vector<1x8x4xbf16> to vector<8x4xbf16>
    %28 = vector.extract_strided_slice %1 {offsets = [0, 20], sizes = [4, 384], strides = [1, 1]} : vector<4x512xbf16> to vector<4x384xbf16>
    %cst_19 = arith.constant dense<0.000000e+00> : vector<8x384xf32>
    %29 = tpu.matmul %27, %28, %cst_19 {dimension_numbers = #tpu.dot_dimension_numbers<[1], [0], [0], [1], [0, 0, 1, 1], [], []>} : vector<8x4xbf16>, vector<4x384xbf16>, vector<8x384xf32> -> vector<8x384xf32>
    %30 = arith.addf %25, %29 : vector<8x384xf32>
    %c6 = arith.constant 6 : index
    %c0_20 = arith.constant 0 : index
    %c0_21 = arith.constant 0 : index
    %31 = vector.load %arg2[%c6, %c0_20, %c0_21] : memref<9x8x4xbf16, #tpu.memory_space<vmem>>, vector<1x8x4xbf16>
    %32 = vector.shape_cast %31 : vector<1x8x4xbf16> to vector<8x4xbf16>
    %33 = vector.extract_strided_slice %1 {offsets = [0, 36], sizes = [4, 384], strides = [1, 1]} : vector<4x512xbf16> to vector<4x384xbf16>
    %cst_22 = arith.constant dense<0.000000e+00> : vector<8x384xf32>
    %34 = tpu.matmul %32, %33, %cst_22 {dimension_numbers = #tpu.dot_dimension_numbers<[1], [0], [0], [1], [0, 0, 1, 1], [], []>} : vector<8x4xbf16>, vector<4x384xbf16>, vector<8x384xf32> -> vector<8x384xf32>
    %35 = arith.addf %30, %34 : vector<8x384xf32>
    %c7 = arith.constant 7 : index
    %c0_23 = arith.constant 0 : index
    %c0_24 = arith.constant 0 : index
    %36 = vector.load %arg2[%c7, %c0_23, %c0_24] : memref<9x8x4xbf16, #tpu.memory_space<vmem>>, vector<1x8x4xbf16>
    %37 = vector.shape_cast %36 : vector<1x8x4xbf16> to vector<8x4xbf16>
    %38 = vector.extract_strided_slice %1 {offsets = [0, 37], sizes = [4, 384], strides = [1, 1]} : vector<4x512xbf16> to vector<4x384xbf16>
    %cst_25 = arith.constant dense<0.000000e+00> : vector<8x384xf32>
    %39 = tpu.matmul %37, %38, %cst_25 {dimension_numbers = #tpu.dot_dimension_numbers<[1], [0], [0], [1], [0, 0, 1, 1], [], []>} : vector<8x4xbf16>, vector<4x384xbf16>, vector<8x384xf32> -> vector<8x384xf32>
    %40 = arith.addf %35, %39 : vector<8x384xf32>
    %c8 = arith.constant 8 : index
    %c0_26 = arith.constant 0 : index
    %c0_27 = arith.constant 0 : index
    %41 = vector.load %arg2[%c8, %c0_26, %c0_27] : memref<9x8x4xbf16, #tpu.memory_space<vmem>>, vector<1x8x4xbf16>
    %42 = vector.shape_cast %41 : vector<1x8x4xbf16> to vector<8x4xbf16>
    %43 = vector.extract_strided_slice %1 {offsets = [0, 38], sizes = [4, 384], strides = [1, 1]} : vector<4x512xbf16> to vector<4x384xbf16>
    %cst_28 = arith.constant dense<0.000000e+00> : vector<8x384xf32>
    %44 = tpu.matmul %42, %43, %cst_28 {dimension_numbers = #tpu.dot_dimension_numbers<[1], [0], [0], [1], [0, 0, 1, 1], [], []>} : vector<8x4xbf16>, vector<4x384xbf16>, vector<8x384xf32> -> vector<8x384xf32>
    %45 = arith.addf %40, %44 : vector<8x384xf32>
    %46 = arith.truncf %45 : vector<8x384xf32> to vector<8x384xbf16>
    %c0_29 = arith.constant 0 : index
    %c0_30 = arith.constant 0 : index
    %c0_31 = arith.constant 0 : index
    %47 = vector.load %arg4[%c0_29, %c0_30, %c0_31] : memref<1x8x384xbf16, #tpu.memory_space<vmem>>, vector<1x8x384xbf16>
    %48 = vector.shape_cast %47 : vector<1x8x384xbf16> to vector<8x384xbf16>
    %49 = vector.shape_cast %46 : vector<8x384xbf16> to vector<1x8x384xbf16>
    tpu.vector_store %arg4[%c0_29, %c0_30, %c0_31], %49 {strides = array<i32>} : memref<1x8x384xbf16, #tpu.memory_space<vmem>>, vector<1x8x384xbf16>,
    %c0_32 = arith.constant 0 : index
    %c0_33 = arith.constant 0 : index
    %50 = vector.load %arg3[%c0_32, %c0_33] : memref<1x384xf32, #tpu.memory_space<vmem>>, vector<1x384xf32>
    %51 = vector.broadcast %50 : vector<1x384xf32> to vector<8x384xf32>
    %52 = arith.mulf %45, %51 : vector<8x384xf32>
    %cst_34 = arith.constant dense<0.000000e+00> : vector<8xf32>
    %53 = vector.multi_reduction <add>, %52, %cst_34 [1] : vector<8x384xf32> to vector<8xf32>
    %54 = vector.shape_cast %53 : vector<8xf32> to vector<8x1xf32>
    %c0_35 = arith.constant 0 : index
    %c0_36 = arith.constant 0 : index
    %c0_37 = arith.constant 0 : index
    %55 = vector.load %arg5[%c0_35, %c0_36, %c0_37] : memref<1x8x1xf32, #tpu.memory_space<vmem>>, vector<1x8x1xf32>
    %56 = vector.shape_cast %55 : vector<1x8x1xf32> to vector<8x1xf32>
    %57 = vector.shape_cast %54 : vector<8x1xf32> to vector<1x8x1xf32>
    tpu.vector_store %arg5[%c0_35, %c0_36, %c0_37], %57 {strides = array<i32>} : memref<1x8x1xf32, #tpu.memory_space<vmem>>, vector<1x8x1xf32>,
    %58 = arith.mulf %52, %45 : vector<8x384xf32>
    %cst_38 = arith.constant dense<0.000000e+00> : vector<8xf32>
    %59 = vector.multi_reduction <add>, %58, %cst_38 [1] : vector<8x384xf32> to vector<8xf32>
    %60 = vector.shape_cast %59 : vector<8xf32> to vector<8x1xf32>
    %c0_39 = arith.constant 0 : index
    %c0_40 = arith.constant 0 : index
    %c0_41 = arith.constant 0 : index
    %61 = vector.load %arg6[%c0_39, %c0_40, %c0_41] : memref<1x8x1xf32, #tpu.memory_space<vmem>>, vector<1x8x1xf32>
    %62 = vector.shape_cast %61 : vector<1x8x1xf32> to vector<8x1xf32>
    %63 = vector.shape_cast %60 : vector<8x1xf32> to vector<1x8x1xf32>
    tpu.vector_store %arg6[%c0_39, %c0_40, %c0_41], %63 {strides = array<i32>} : memref<1x8x1xf32, #tpu.memory_space<vmem>>, vector<1x8x1xf32>,
    return
  }
  func.func @transform_0(%arg0: i32) -> (i32, i32, i32) {
    %c0_i32 = arith.constant 0 : i32
    %c0_i32_0 = arith.constant 0 : i32
    %c0_i32_1 = arith.constant 0 : i32
    return %arg0, %c0_i32, %c0_i32_0 : i32, i32, i32
  }
  func.func @transform_1(%arg0: i32) -> (i32, i32, i32) {
    %c0_i32 = arith.constant 0 : i32
    %c0_i32_0 = arith.constant 0 : i32
    %c0_i32_1 = arith.constant 0 : i32
    %c0_i32_2 = arith.constant 0 : i32
    return %c0_i32, %c0_i32_0, %c0_i32_1 : i32, i32, i32
  }
  func.func @transform_2(%arg0: i32) -> (i32, i32) {
    %c0_i32 = arith.constant 0 : i32
    %c0_i32_0 = arith.constant 0 : i32
    %c0_i32_1 = arith.constant 0 : i32
    return %c0_i32, %c0_i32_0 : i32, i32
  }
  func.func @transform_3(%arg0: i32) -> (i32, i32, i32) {
    %c0_i32 = arith.constant 0 : i32
    %c0_i32_0 = arith.constant 0 : i32
    %c0_i32_1 = arith.constant 0 : i32
    return %arg0, %c0_i32, %c0_i32_0 : i32, i32, i32
  }
  func.func @transform_4(%arg0: i32) -> (i32, i32, i32) {
    %c0_i32 = arith.constant 0 : i32
    %c0_i32_0 = arith.constant 0 : i32
    %c0_i32_1 = arith.constant 0 : i32
    return %arg0, %c0_i32, %c0_i32_0 : i32, i32, i32
  }
  func.func @transform_5(%arg0: i32) -> (i32, i32, i32) {
    %c0_i32 = arith.constant 0 : i32
    %c0_i32_0 = arith.constant 0 : i32
    %c0_i32_1 = arith.constant 0 : i32
    return %arg0, %c0_i32, %c0_i32_0 : i32, i32, i32
  }
}

module attributes {stable_mosaic.version = 11 : i64} {
  func.func @_bn_lrelu_kernel(%arg0: i32, %arg1: memref<1x8x384xbf16, #tpu.memory_space<vmem>>, %arg2: memref<8x1xf32, #tpu.memory_space<vmem>>, %arg3: memref<8x1xf32, #tpu.memory_space<vmem>>, %arg4: memref<1x8x384xbf16, #tpu.memory_space<vmem>>) attributes {dimension_semantics = [#tpu.dimension_semantics<parallel>], iteration_bounds = array<i64: 2>, scalar_prefetch = 0 : i64, scratch_operands = 0 : i64, tpu.core_type = #tpu.core_type<tc>, window_params = [{transform_indices = @transform_0, window_bounds = array<i64: 1, 8, 384>}, {pipeline_mode = #tpu.pipeline_mode<synchronous>, transform_indices = @transform_1, window_bounds = array<i64: 8, 1>}, {pipeline_mode = #tpu.pipeline_mode<synchronous>, transform_indices = @transform_2, window_bounds = array<i64: 8, 1>}, {transform_indices = @transform_3, window_bounds = array<i64: 1, 8, 384>}]} {
    %c0 = arith.constant 0 : index
    %c0_0 = arith.constant 0 : index
    %c0_1 = arith.constant 0 : index
    %0 = vector.load %arg1[%c0, %c0_0, %c0_1] : memref<1x8x384xbf16, #tpu.memory_space<vmem>>, vector<1x8x384xbf16>
    %1 = vector.shape_cast %0 : vector<1x8x384xbf16> to vector<8x384xbf16>
    %2 = arith.extf %1 : vector<8x384xbf16> to vector<8x384xf32>
    %c0_2 = arith.constant 0 : index
    %c0_3 = arith.constant 0 : index
    %3 = vector.load %arg2[%c0_2, %c0_3] : memref<8x1xf32, #tpu.memory_space<vmem>>, vector<8x1xf32>
    %4 = vector.broadcast %3 : vector<8x1xf32> to vector<8x384xf32>
    %5 = arith.mulf %2, %4 : vector<8x384xf32>
    %c0_4 = arith.constant 0 : index
    %c0_5 = arith.constant 0 : index
    %6 = vector.load %arg3[%c0_4, %c0_5] : memref<8x1xf32, #tpu.memory_space<vmem>>, vector<8x1xf32>
    %7 = vector.broadcast %6 : vector<8x1xf32> to vector<8x384xf32>
    %8 = arith.addf %5, %7 : vector<8x384xf32>
    %cst = arith.constant 0.000000e+00 : f32
    %9 = vector.broadcast %cst : f32 to vector<8x384xf32>
    %10 = arith.cmpf ogt, %8, %9 : vector<8x384xf32>
    %cst_6 = arith.constant 0.00999999977 : f32
    %11 = vector.broadcast %cst_6 : f32 to vector<8x384xf32>
    %12 = arith.mulf %11, %8 : vector<8x384xf32>
    %13 = arith.select %10, %8, %12 : vector<8x384xi1>, vector<8x384xf32>
    %14 = arith.truncf %13 : vector<8x384xf32> to vector<8x384xbf16>
    %c0_7 = arith.constant 0 : index
    %c0_8 = arith.constant 0 : index
    %c0_9 = arith.constant 0 : index
    %15 = vector.load %arg4[%c0_7, %c0_8, %c0_9] : memref<1x8x384xbf16, #tpu.memory_space<vmem>>, vector<1x8x384xbf16>
    %16 = vector.shape_cast %15 : vector<1x8x384xbf16> to vector<8x384xbf16>
    %17 = vector.shape_cast %14 : vector<8x384xbf16> to vector<1x8x384xbf16>
    tpu.vector_store %arg4[%c0_7, %c0_8, %c0_9], %17 {strides = array<i32>} : memref<1x8x384xbf16, #tpu.memory_space<vmem>>, vector<1x8x384xbf16>,
    return
  }
  func.func @transform_0(%arg0: i32) -> (i32, i32, i32) {
    %c0_i32 = arith.constant 0 : i32
    %c0_i32_0 = arith.constant 0 : i32
    %c0_i32_1 = arith.constant 0 : i32
    return %arg0, %c0_i32, %c0_i32_0 : i32, i32, i32
  }
  func.func @transform_1(%arg0: i32) -> (i32, i32) {
    %c0_i32 = arith.constant 0 : i32
    %c0_i32_0 = arith.constant 0 : i32
    %c0_i32_1 = arith.constant 0 : i32
    return %c0_i32, %c0_i32_0 : i32, i32
  }
  func.func @transform_2(%arg0: i32) -> (i32, i32) {
    %c0_i32 = arith.constant 0 : i32
    %c0_i32_0 = arith.constant 0 : i32
    %c0_i32_1 = arith.constant 0 : i32
    return %c0_i32, %c0_i32_0 : i32, i32
  }
  func.func @transform_3(%arg0: i32) -> (i32, i32, i32) {
    %c0_i32 = arith.constant 0 : i32
    %c0_i32_0 = arith.constant 0 : i32
    %c0_i32_1 = arith.constant 0 : i32
    return %arg0, %c0_i32, %c0_i32_0 : i32, i32, i32
  }
}

module attributes {stable_mosaic.version = 11 : i64} {
  func.func @_conv_stats_kernel(%arg0: i32, %arg1: memref<1x8x512xbf16, #tpu.memory_space<vmem>>, %arg2: memref<9x8x8xbf16, #tpu.memory_space<vmem>>, %arg3: memref<1x384xf32, #tpu.memory_space<vmem>>, %arg4: memref<1x8x384xbf16, #tpu.memory_space<vmem>>, %arg5: memref<1x8x1xf32, #tpu.memory_space<vmem>>, %arg6: memref<1x8x1xf32, #tpu.memory_space<vmem>>) attributes {dimension_semantics = [#tpu.dimension_semantics<parallel>], iteration_bounds = array<i64: 2>, scalar_prefetch = 0 : i64, scratch_operands = 0 : i64, tpu.core_type = #tpu.core_type<tc>, window_params = [{transform_indices = @transform_0, window_bounds = array<i64: 1, 8, 512>}, {pipeline_mode = #tpu.pipeline_mode<synchronous>, transform_indices = @transform_1, window_bounds = array<i64: 9, 8, 8>}, {pipeline_mode = #tpu.pipeline_mode<synchronous>, transform_indices = @transform_2, window_bounds = array<i64: 1, 384>}, {transform_indices = @transform_3, window_bounds = array<i64: 1, 8, 384>}, {transform_indices = @transform_4, window_bounds = array<i64: 1, 8, 1>}, {transform_indices = @transform_5, window_bounds = array<i64: 1, 8, 1>}]} {
    %c0 = arith.constant 0 : index
    %c0_0 = arith.constant 0 : index
    %c0_1 = arith.constant 0 : index
    %0 = vector.load %arg1[%c0, %c0_0, %c0_1] : memref<1x8x512xbf16, #tpu.memory_space<vmem>>, vector<1x8x512xbf16>
    %1 = vector.shape_cast %0 : vector<1x8x512xbf16> to vector<8x512xbf16>
    %c0_2 = arith.constant 0 : index
    %c0_3 = arith.constant 0 : index
    %c0_4 = arith.constant 0 : index
    %2 = vector.load %arg2[%c0_2, %c0_3, %c0_4] : memref<9x8x8xbf16, #tpu.memory_space<vmem>>, vector<1x8x8xbf16>
    %3 = vector.shape_cast %2 : vector<1x8x8xbf16> to vector<8x8xbf16>
    %4 = vector.extract_strided_slice %1 {offsets = [0, 0], sizes = [8, 384], strides = [1, 1]} : vector<8x512xbf16> to vector<8x384xbf16>
    %cst = arith.constant dense<0.000000e+00> : vector<8x384xf32>
    %5 = tpu.matmul %3, %4, %cst {dimension_numbers = #tpu.dot_dimension_numbers<[1], [0], [0], [1], [0, 0, 1, 1], [], []>} : vector<8x8xbf16>, vector<8x384xbf16>, vector<8x384xf32> -> vector<8x384xf32>
    %c1 = arith.constant 1 : index
    %c0_5 = arith.constant 0 : index
    %c0_6 = arith.constant 0 : index
    %6 = vector.load %arg2[%c1, %c0_5, %c0_6] : memref<9x8x8xbf16, #tpu.memory_space<vmem>>, vector<1x8x8xbf16>
    %7 = vector.shape_cast %6 : vector<1x8x8xbf16> to vector<8x8xbf16>
    %8 = vector.extract_strided_slice %1 {offsets = [0, 1], sizes = [8, 384], strides = [1, 1]} : vector<8x512xbf16> to vector<8x384xbf16>
    %cst_7 = arith.constant dense<0.000000e+00> : vector<8x384xf32>
    %9 = tpu.matmul %7, %8, %cst_7 {dimension_numbers = #tpu.dot_dimension_numbers<[1], [0], [0], [1], [0, 0, 1, 1], [], []>} : vector<8x8xbf16>, vector<8x384xbf16>, vector<8x384xf32> -> vector<8x384xf32>
    %10 = arith.addf %5, %9 : vector<8x384xf32>
    %c2 = arith.constant 2 : index
    %c0_8 = arith.constant 0 : index
    %c0_9 = arith.constant 0 : index
    %11 = vector.load %arg2[%c2, %c0_8, %c0_9] : memref<9x8x8xbf16, #tpu.memory_space<vmem>>, vector<1x8x8xbf16>
    %12 = vector.shape_cast %11 : vector<1x8x8xbf16> to vector<8x8xbf16>
    %13 = vector.extract_strided_slice %1 {offsets = [0, 2], sizes = [8, 384], strides = [1, 1]} : vector<8x512xbf16> to vector<8x384xbf16>
    %cst_10 = arith.constant dense<0.000000e+00> : vector<8x384xf32>
    %14 = tpu.matmul %12, %13, %cst_10 {dimension_numbers = #tpu.dot_dimension_numbers<[1], [0], [0], [1], [0, 0, 1, 1], [], []>} : vector<8x8xbf16>, vector<8x384xbf16>, vector<8x384xf32> -> vector<8x384xf32>
    %15 = arith.addf %10, %14 : vector<8x384xf32>
    %c3 = arith.constant 3 : index
    %c0_11 = arith.constant 0 : index
    %c0_12 = arith.constant 0 : index
    %16 = vector.load %arg2[%c3, %c0_11, %c0_12] : memref<9x8x8xbf16, #tpu.memory_space<vmem>>, vector<1x8x8xbf16>
    %17 = vector.shape_cast %16 : vector<1x8x8xbf16> to vector<8x8xbf16>
    %18 = vector.extract_strided_slice %1 {offsets = [0, 18], sizes = [8, 384], strides = [1, 1]} : vector<8x512xbf16> to vector<8x384xbf16>
    %cst_13 = arith.constant dense<0.000000e+00> : vector<8x384xf32>
    %19 = tpu.matmul %17, %18, %cst_13 {dimension_numbers = #tpu.dot_dimension_numbers<[1], [0], [0], [1], [0, 0, 1, 1], [], []>} : vector<8x8xbf16>, vector<8x384xbf16>, vector<8x384xf32> -> vector<8x384xf32>
    %20 = arith.addf %15, %19 : vector<8x384xf32>
    %c4 = arith.constant 4 : index
    %c0_14 = arith.constant 0 : index
    %c0_15 = arith.constant 0 : index
    %21 = vector.load %arg2[%c4, %c0_14, %c0_15] : memref<9x8x8xbf16, #tpu.memory_space<vmem>>, vector<1x8x8xbf16>
    %22 = vector.shape_cast %21 : vector<1x8x8xbf16> to vector<8x8xbf16>
    %23 = vector.extract_strided_slice %1 {offsets = [0, 19], sizes = [8, 384], strides = [1, 1]} : vector<8x512xbf16> to vector<8x384xbf16>
    %cst_16 = arith.constant dense<0.000000e+00> : vector<8x384xf32>
    %24 = tpu.matmul %22, %23, %cst_16 {dimension_numbers = #tpu.dot_dimension_numbers<[1], [0], [0], [1], [0, 0, 1, 1], [], []>} : vector<8x8xbf16>, vector<8x384xbf16>, vector<8x384xf32> -> vector<8x384xf32>
    %25 = arith.addf %20, %24 : vector<8x384xf32>
    %c5 = arith.constant 5 : index
    %c0_17 = arith.constant 0 : index
    %c0_18 = arith.constant 0 : index
    %26 = vector.load %arg2[%c5, %c0_17, %c0_18] : memref<9x8x8xbf16, #tpu.memory_space<vmem>>, vector<1x8x8xbf16>
    %27 = vector.shape_cast %26 : vector<1x8x8xbf16> to vector<8x8xbf16>
    %28 = vector.extract_strided_slice %1 {offsets = [0, 20], sizes = [8, 384], strides = [1, 1]} : vector<8x512xbf16> to vector<8x384xbf16>
    %cst_19 = arith.constant dense<0.000000e+00> : vector<8x384xf32>
    %29 = tpu.matmul %27, %28, %cst_19 {dimension_numbers = #tpu.dot_dimension_numbers<[1], [0], [0], [1], [0, 0, 1, 1], [], []>} : vector<8x8xbf16>, vector<8x384xbf16>, vector<8x384xf32> -> vector<8x384xf32>
    %30 = arith.addf %25, %29 : vector<8x384xf32>
    %c6 = arith.constant 6 : index
    %c0_20 = arith.constant 0 : index
    %c0_21 = arith.constant 0 : index
    %31 = vector.load %arg2[%c6, %c0_20, %c0_21] : memref<9x8x8xbf16, #tpu.memory_space<vmem>>, vector<1x8x8xbf16>
    %32 = vector.shape_cast %31 : vector<1x8x8xbf16> to vector<8x8xbf16>
    %33 = vector.extract_strided_slice %1 {offsets = [0, 36], sizes = [8, 384], strides = [1, 1]} : vector<8x512xbf16> to vector<8x384xbf16>
    %cst_22 = arith.constant dense<0.000000e+00> : vector<8x384xf32>
    %34 = tpu.matmul %32, %33, %cst_22 {dimension_numbers = #tpu.dot_dimension_numbers<[1], [0], [0], [1], [0, 0, 1, 1], [], []>} : vector<8x8xbf16>, vector<8x384xbf16>, vector<8x384xf32> -> vector<8x384xf32>
    %35 = arith.addf %30, %34 : vector<8x384xf32>
    %c7 = arith.constant 7 : index
    %c0_23 = arith.constant 0 : index
    %c0_24 = arith.constant 0 : index
    %36 = vector.load %arg2[%c7, %c0_23, %c0_24] : memref<9x8x8xbf16, #tpu.memory_space<vmem>>, vector<1x8x8xbf16>
    %37 = vector.shape_cast %36 : vector<1x8x8xbf16> to vector<8x8xbf16>
    %38 = vector.extract_strided_slice %1 {offsets = [0, 37], sizes = [8, 384], strides = [1, 1]} : vector<8x512xbf16> to vector<8x384xbf16>
    %cst_25 = arith.constant dense<0.000000e+00> : vector<8x384xf32>
    %39 = tpu.matmul %37, %38, %cst_25 {dimension_numbers = #tpu.dot_dimension_numbers<[1], [0], [0], [1], [0, 0, 1, 1], [], []>} : vector<8x8xbf16>, vector<8x384xbf16>, vector<8x384xf32> -> vector<8x384xf32>
    %40 = arith.addf %35, %39 : vector<8x384xf32>
    %c8 = arith.constant 8 : index
    %c0_26 = arith.constant 0 : index
    %c0_27 = arith.constant 0 : index
    %41 = vector.load %arg2[%c8, %c0_26, %c0_27] : memref<9x8x8xbf16, #tpu.memory_space<vmem>>, vector<1x8x8xbf16>
    %42 = vector.shape_cast %41 : vector<1x8x8xbf16> to vector<8x8xbf16>
    %43 = vector.extract_strided_slice %1 {offsets = [0, 38], sizes = [8, 384], strides = [1, 1]} : vector<8x512xbf16> to vector<8x384xbf16>
    %cst_28 = arith.constant dense<0.000000e+00> : vector<8x384xf32>
    %44 = tpu.matmul %42, %43, %cst_28 {dimension_numbers = #tpu.dot_dimension_numbers<[1], [0], [0], [1], [0, 0, 1, 1], [], []>} : vector<8x8xbf16>, vector<8x384xbf16>, vector<8x384xf32> -> vector<8x384xf32>
    %45 = arith.addf %40, %44 : vector<8x384xf32>
    %46 = arith.truncf %45 : vector<8x384xf32> to vector<8x384xbf16>
    %c0_29 = arith.constant 0 : index
    %c0_30 = arith.constant 0 : index
    %c0_31 = arith.constant 0 : index
    %47 = vector.load %arg4[%c0_29, %c0_30, %c0_31] : memref<1x8x384xbf16, #tpu.memory_space<vmem>>, vector<1x8x384xbf16>
    %48 = vector.shape_cast %47 : vector<1x8x384xbf16> to vector<8x384xbf16>
    %49 = vector.shape_cast %46 : vector<8x384xbf16> to vector<1x8x384xbf16>
    tpu.vector_store %arg4[%c0_29, %c0_30, %c0_31], %49 {strides = array<i32>} : memref<1x8x384xbf16, #tpu.memory_space<vmem>>, vector<1x8x384xbf16>,
    %c0_32 = arith.constant 0 : index
    %c0_33 = arith.constant 0 : index
    %50 = vector.load %arg3[%c0_32, %c0_33] : memref<1x384xf32, #tpu.memory_space<vmem>>, vector<1x384xf32>
    %51 = vector.broadcast %50 : vector<1x384xf32> to vector<8x384xf32>
    %52 = arith.mulf %45, %51 : vector<8x384xf32>
    %cst_34 = arith.constant dense<0.000000e+00> : vector<8xf32>
    %53 = vector.multi_reduction <add>, %52, %cst_34 [1] : vector<8x384xf32> to vector<8xf32>
    %54 = vector.shape_cast %53 : vector<8xf32> to vector<8x1xf32>
    %c0_35 = arith.constant 0 : index
    %c0_36 = arith.constant 0 : index
    %c0_37 = arith.constant 0 : index
    %55 = vector.load %arg5[%c0_35, %c0_36, %c0_37] : memref<1x8x1xf32, #tpu.memory_space<vmem>>, vector<1x8x1xf32>
    %56 = vector.shape_cast %55 : vector<1x8x1xf32> to vector<8x1xf32>
    %57 = vector.shape_cast %54 : vector<8x1xf32> to vector<1x8x1xf32>
    tpu.vector_store %arg5[%c0_35, %c0_36, %c0_37], %57 {strides = array<i32>} : memref<1x8x1xf32, #tpu.memory_space<vmem>>, vector<1x8x1xf32>,
    %58 = arith.mulf %52, %45 : vector<8x384xf32>
    %cst_38 = arith.constant dense<0.000000e+00> : vector<8xf32>
    %59 = vector.multi_reduction <add>, %58, %cst_38 [1] : vector<8x384xf32> to vector<8xf32>
    %60 = vector.shape_cast %59 : vector<8xf32> to vector<8x1xf32>
    %c0_39 = arith.constant 0 : index
    %c0_40 = arith.constant 0 : index
    %c0_41 = arith.constant 0 : index
    %61 = vector.load %arg6[%c0_39, %c0_40, %c0_41] : memref<1x8x1xf32, #tpu.memory_space<vmem>>, vector<1x8x1xf32>
    %62 = vector.shape_cast %61 : vector<1x8x1xf32> to vector<8x1xf32>
    %63 = vector.shape_cast %60 : vector<8x1xf32> to vector<1x8x1xf32>
    tpu.vector_store %arg6[%c0_39, %c0_40, %c0_41], %63 {strides = array<i32>} : memref<1x8x1xf32, #tpu.memory_space<vmem>>, vector<1x8x1xf32>,
    return
  }
  func.func @transform_0(%arg0: i32) -> (i32, i32, i32) {
    %c0_i32 = arith.constant 0 : i32
    %c0_i32_0 = arith.constant 0 : i32
    %c0_i32_1 = arith.constant 0 : i32
    return %arg0, %c0_i32, %c0_i32_0 : i32, i32, i32
  }
  func.func @transform_1(%arg0: i32) -> (i32, i32, i32) {
    %c0_i32 = arith.constant 0 : i32
    %c0_i32_0 = arith.constant 0 : i32
    %c0_i32_1 = arith.constant 0 : i32
    %c0_i32_2 = arith.constant 0 : i32
    return %c0_i32, %c0_i32_0, %c0_i32_1 : i32, i32, i32
  }
  func.func @transform_2(%arg0: i32) -> (i32, i32) {
    %c0_i32 = arith.constant 0 : i32
    %c0_i32_0 = arith.constant 0 : i32
    %c0_i32_1 = arith.constant 0 : i32
    return %c0_i32, %c0_i32_0 : i32, i32
  }
  func.func @transform_3(%arg0: i32) -> (i32, i32, i32) {
    %c0_i32 = arith.constant 0 : i32
    %c0_i32_0 = arith.constant 0 : i32
    %c0_i32_1 = arith.constant 0 : i32
    return %arg0, %c0_i32, %c0_i32_0 : i32, i32, i32
  }
  func.func @transform_4(%arg0: i32) -> (i32, i32, i32) {
    %c0_i32 = arith.constant 0 : i32
    %c0_i32_0 = arith.constant 0 : i32
    %c0_i32_1 = arith.constant 0 : i32
    return %arg0, %c0_i32, %c0_i32_0 : i32, i32, i32
  }
  func.func @transform_5(%arg0: i32) -> (i32, i32, i32) {
    %c0_i32 = arith.constant 0 : i32
    %c0_i32_0 = arith.constant 0 : i32
    %c0_i32_1 = arith.constant 0 : i32
    return %arg0, %c0_i32, %c0_i32_0 : i32, i32, i32
  }
}

module attributes {stable_mosaic.version = 11 : i64} {
  func.func @_bn_lrelu_kernel(%arg0: i32, %arg1: memref<1x8x384xbf16, #tpu.memory_space<vmem>>, %arg2: memref<8x1xf32, #tpu.memory_space<vmem>>, %arg3: memref<8x1xf32, #tpu.memory_space<vmem>>, %arg4: memref<1x8x384xf32, #tpu.memory_space<vmem>>) attributes {dimension_semantics = [#tpu.dimension_semantics<parallel>], iteration_bounds = array<i64: 2>, scalar_prefetch = 0 : i64, scratch_operands = 0 : i64, tpu.core_type = #tpu.core_type<tc>, window_params = [{transform_indices = @transform_0, window_bounds = array<i64: 1, 8, 384>}, {pipeline_mode = #tpu.pipeline_mode<synchronous>, transform_indices = @transform_1, window_bounds = array<i64: 8, 1>}, {pipeline_mode = #tpu.pipeline_mode<synchronous>, transform_indices = @transform_2, window_bounds = array<i64: 8, 1>}, {transform_indices = @transform_3, window_bounds = array<i64: 1, 8, 384>}]} {
    %c0 = arith.constant 0 : index
    %c0_0 = arith.constant 0 : index
    %c0_1 = arith.constant 0 : index
    %0 = vector.load %arg1[%c0, %c0_0, %c0_1] : memref<1x8x384xbf16, #tpu.memory_space<vmem>>, vector<1x8x384xbf16>
    %1 = vector.shape_cast %0 : vector<1x8x384xbf16> to vector<8x384xbf16>
    %2 = arith.extf %1 : vector<8x384xbf16> to vector<8x384xf32>
    %c0_2 = arith.constant 0 : index
    %c0_3 = arith.constant 0 : index
    %3 = vector.load %arg2[%c0_2, %c0_3] : memref<8x1xf32, #tpu.memory_space<vmem>>, vector<8x1xf32>
    %4 = vector.broadcast %3 : vector<8x1xf32> to vector<8x384xf32>
    %5 = arith.mulf %2, %4 : vector<8x384xf32>
    %c0_4 = arith.constant 0 : index
    %c0_5 = arith.constant 0 : index
    %6 = vector.load %arg3[%c0_4, %c0_5] : memref<8x1xf32, #tpu.memory_space<vmem>>, vector<8x1xf32>
    %7 = vector.broadcast %6 : vector<8x1xf32> to vector<8x384xf32>
    %8 = arith.addf %5, %7 : vector<8x384xf32>
    %cst = arith.constant 0.000000e+00 : f32
    %9 = vector.broadcast %cst : f32 to vector<8x384xf32>
    %10 = arith.cmpf ogt, %8, %9 : vector<8x384xf32>
    %cst_6 = arith.constant 0.00999999977 : f32
    %11 = vector.broadcast %cst_6 : f32 to vector<8x384xf32>
    %12 = arith.mulf %11, %8 : vector<8x384xf32>
    %13 = arith.select %10, %8, %12 : vector<8x384xi1>, vector<8x384xf32>
    %c0_7 = arith.constant 0 : index
    %c0_8 = arith.constant 0 : index
    %c0_9 = arith.constant 0 : index
    %14 = vector.load %arg4[%c0_7, %c0_8, %c0_9] : memref<1x8x384xf32, #tpu.memory_space<vmem>>, vector<1x8x384xf32>
    %15 = vector.shape_cast %14 : vector<1x8x384xf32> to vector<8x384xf32>
    %16 = vector.shape_cast %13 : vector<8x384xf32> to vector<1x8x384xf32>
    tpu.vector_store %arg4[%c0_7, %c0_8, %c0_9], %16 {strides = array<i32>} : memref<1x8x384xf32, #tpu.memory_space<vmem>>, vector<1x8x384xf32>,
    return
  }
  func.func @transform_0(%arg0: i32) -> (i32, i32, i32) {
    %c0_i32 = arith.constant 0 : i32
    %c0_i32_0 = arith.constant 0 : i32
    %c0_i32_1 = arith.constant 0 : i32
    return %arg0, %c0_i32, %c0_i32_0 : i32, i32, i32
  }
  func.func @transform_1(%arg0: i32) -> (i32, i32) {
    %c0_i32 = arith.constant 0 : i32
    %c0_i32_0 = arith.constant 0 : i32
    %c0_i32_1 = arith.constant 0 : i32
    return %c0_i32, %c0_i32_0 : i32, i32
  }
  func.func @transform_2(%arg0: i32) -> (i32, i32) {
    %c0_i32 = arith.constant 0 : i32
    %c0_i32_0 = arith.constant 0 : i32
    %c0_i32_1 = arith.constant 0 : i32
    return %c0_i32, %c0_i32_0 : i32, i32
  }
  func.func @transform_3(%arg0: i32) -> (i32, i32, i32) {
    %c0_i32 = arith.constant 0 : i32
    %c0_i32_0 = arith.constant 0 : i32
    %c0_i32_1 = arith.constant 0 : i32
    return %arg0, %c0_i32, %c0_i32_0 : i32, i32, i32
  }
}

</mosaic_0001>

<llo_original>
// kernel: a_call__.5
$region0: #{a_call__.5}
  #allocation0 [shape = 'u32[]', space=smem, size = 0x4, offset = 0x4, fixed_abs, tag = 'smem constant byte address 0x4 - core index']
  #allocation1 [shape = 'u32[144,128]{1,0:T(1,128)}', space=vmem, size = 0x12000, scoped, tag = 'internal scratch']
  %s0 = inlined_call_operand.vmem [shape: bf16[2,8,384], index: 0, kind: input, shape index: {}]
  %s1 = inlined_call_operand.vmem [shape: f32[8,1], index: 1, kind: input, shape index: {}]
  %s2 = inlined_call_operand.vmem [shape: f32[8,1], index: 2, kind: input, shape index: {}]
  %s3 = inlined_call_operand.vmem [shape: bf16[2,8,384], index: 3, kind: output, shape index: {}]
  %s4 = sld [smem:[#allocation0]]
  $region45: #{a_call__.5} parent=0
    _
  %s6 = ssub.s32 1, %s4
  %s7 = scalar_select 0, %s6, %s4
  loop: start=0, step=1, limit=4
  $region2: #{a_call__.5} parent=0 // loop_pre_header
    _
  $region3: #{a_call__.5} parent=0 // loop_header
    %s9 = sphi 0, %s13
    %p10 = scmp.ge.s32.totalorder %s9, 4
    %s19 = sphi 0, %s21
    %s22 = sphi 0, %s19
    %s23 = sphi 0, %s22
    %s39 = sphi 0, %s23
    %s43 = sphi 0, %s43
    %s45 = sphi 0, %s43
    %s46 = sphi 0, %s45
    %s60 = sphi 0, %s46
    %s64 = sphi 0, %s64
    %s66 = sphi 0, %s64
    %s67 = sphi 0, %s66
    %s81 = sphi 0, %s67
    %s87 = sphi 0, %s89
    %s90 = sphi 0, %s87
    %s91 = sphi 0, %s90
    %s107 = sphi 0, %s91
  $region4: #{a_call__.5} parent=0 // loop_header_branch
    %12 = sbr.rel (%p10) target = $region8
  $region5: #{a_call__.5} parent=0 // loop_body
    %s14 = ssub.s32 %s9, 1
    %s15 = ssub.s32 %s9, 2
    %s16 = sadd.s32 %s9, 1
    %s17 = ssub.s32 %s9, %s16
    %p18 = scmp.eq.s32.totalorder %s17, 0
    %s20 = sadd.s32 %s19, 1
    %s21 = scalar_select %p18, %s19, %s20
    %p24 = pneg %p18
    %p25 = scmp.eq.s32.totalorder %s9, 1
    %p26 = por %p24, %p25
    %p27 = scmp.ne.s32.totalorder %s19, %s22
    %p28 = scmp.eq.s32.totalorder %s9, 0
    %p29 = por %p27, %p28
    %p30 = scmp.ne.s32.totalorder %s19, %s22
    %p31 = scmp.eq.s32.totalorder %s14, 1
    %p32 = por %p30, %p31
    %p33 = scmp.ne.s32.totalorder %s22, %s23
    %p34 = scmp.eq.s32.totalorder %s14, 0
    %p35 = por %p33, %p34
    %p36 = scmp.ne.s32.totalorder %s22, %s23
    %p37 = scmp.eq.s32.totalorder %s15, 1
    %p38 = por %p36, %p37
    %p40 = scmp.ne.s32.totalorder %s23, %s39
    %p41 = scmp.eq.s32.totalorder %s15, 0
    %p42 = por %p40, %p41
    %s44 = sadd.s32 %s43, 1
    %p47 = scmp.eq.s32.totalorder %s9, 1
    %p48 = scmp.ne.s32.totalorder %s43, %s45
    %p49 = scmp.eq.s32.totalorder %s9, 0
    %p50 = por %p48, %p49
    %p51 = scmp.ne.s32.totalorder %s43, %s45
    %p52 = scmp.eq.s32.totalorder %s14, 1
    %p53 = por %p51, %p52
    %p54 = scmp.ne.s32.totalorder %s45, %s46
    %p55 = scmp.eq.s32.totalorder %s14, 0
    %p56 = por %p54, %p55
    %p57 = scmp.ne.s32.totalorder %s45, %s46
    %p58 = scmp.eq.s32.totalorder %s15, 1
    %p59 = por %p57, %p58
    %p61 = scmp.ne.s32.totalorder %s46, %s60
    %p62 = scmp.eq.s32.totalorder %s15, 0
    %p63 = por %p61, %p62
    %s65 = sadd.s32 %s64, 1
    %p68 = scmp.eq.s32.totalorder %s9, 1
    %p69 = scmp.ne.s32.totalorder %s64, %s66
    %p70 = scmp.eq.s32.totalorder %s9, 0
    %p71 = por %p69, %p70
    %p72 = scmp.ne.s32.totalorder %s64, %s66
    %p73 = scmp.eq.s32.totalorder %s14, 1
    %p74 = por %p72, %p73
    %p75 = scmp.ne.s32.totalorder %s66, %s67
    %p76 = scmp.eq.s32.totalorder %s14, 0
    %p77 = por %p75, %p76
    %p78 = scmp.ne.s32.totalorder %s66, %s67
    %p79 = scmp.eq.s32.totalorder %s15, 1
    %p80 = por %p78, %p79
    %p82 = scmp.ne.s32.totalorder %s67, %s81
    %p83 = scmp.eq.s32.totalorder %s15, 0
    %p84 = por %p82, %p83
    %s85 = ssub.s32 %s9, %s16
    %p86 = scmp.eq.s32.totalorder %s85, 0
    %s88 = sadd.s32 %s87, 1
    %s89 = scalar_select %p86, %s87, %s88
    %p92 = pneg %p86
    %p93 = scmp.eq.s32.totalorder %s9, 1
    %p94 = por %p92, %p93
    %p95 = scmp.ne.s32.totalorder %s87, %s90
    %p96 = scmp.eq.s32.totalorder %s9, 0
    %p97 = por %p95, %p96
    %p98 = scmp.ne.s32.totalorder %s87, %s90
    %p99 = scmp.eq.s32.totalorder %s14, 1
    %p100 = por %p98, %p99
    %p101 = scmp.ne.s32.totalorder %s90, %s91
    %p102 = scmp.eq.s32.totalorder %s14, 0
    %p103 = por %p101, %p102
    %p104 = scmp.ne.s32.totalorder %s90, %s91
    %p105 = scmp.eq.s32.totalorder %s15, 1
    %p106 = por %p104, %p105
    %p108 = scmp.ne.s32.totalorder %s91, %s107
    %p109 = scmp.eq.s32.totalorder %s15, 0
    %p110 = por %p108, %p109
    %p111 = scmp.le.s32.totalorder 1, %s9
    %p112 = scmp.lt.s32.totalorder %s9, 3
    %p113 = pnand %p111, %p112
    %p114 = pneg %p113
    // Predicated region
    $region9: #{a_call__.5} parent=5 // pred_check
      _
    $region10: #{a_call__.5} parent=5 // pred_check_branch
      %116 = sbr.rel (%p113) target = $region12
    $region11: #{a_call__.5} parent=5 // pred_region
      %s117 = ssub.s32 %s9, 1
      // Predicated region
      $region13: #{a_call__.5} parent=11 // pred_check
        %p118 = pneg %p56
      $region14: #{a_call__.5} parent=11 // pred_check_branch
        %120 = sbr.rel (%p118) target = $region16
      $region15: #{a_call__.5} parent=11 // pred_region
        _
      $region16: #{a_call__.5} parent=11 // pred_fallthru
        _
      // Predicated region
      $region17: #{a_call__.5} parent=11 // pred_check
        %p121 = pneg %p77
      $region18: #{a_call__.5} parent=11 // pred_check_branch
        %123 = sbr.rel (%p121) target = $region20
      $region19: #{a_call__.5} parent=11 // pred_region
        _
      $region20: #{a_call__.5} parent=11 // pred_fallthru
        _
    $region12: #{a_call__.5} parent=5 // pred_fallthru
      _
    %p124 = scmp.lt.s32.totalorder %s9, 2
    // Predicated region
    $region21: #{a_call__.5} parent=5 // pred_check
      %p125 = pneg %p124
    $region22: #{a_call__.5} parent=5 // pred_check_branch
      %127 = sbr.rel (%p125) target = $region24
    $region23: #{a_call__.5} parent=5 // pred_region
      // Predicated region
      $region25: #{a_call__.5} parent=23 // pred_check
        %p128 = pneg %p29
      $region26: #{a_call__.5} parent=23 // pred_check_branch
        %130 = sbr.rel (%p128) target = $region28
      $region27: #{a_call__.5} parent=23 // pred_region
        %p131 = scmp.lt.s32.totalorder %s9, 1
        %s132 = scalar_select %p131, %s9, 1
        %s133 = smul.addr %s132, 3
        %s134 = smul.addr %s133, 4
        %s135 = scalar_lea.vmem %s0, %s134
      $region28: #{a_call__.5} parent=23 // pred_fallthru
        _
    $region24: #{a_call__.5} parent=5 // pred_fallthru
      _
    %p136 = scmp.le.s32.totalorder 1, %s9
    %p137 = scmp.lt.s32.totalorder %s9, 3
    %p138 = pnand %p136, %p137
    %p139 = pneg %p138
    // Predicated region
    $region29: #{a_call__.5} parent=5 // pred_check
      _
    $region30: #{a_call__.5} parent=5 // pred_check_branch
      %141 = sbr.rel (%p138) target = $region32
    $region31: #{a_call__.5} parent=5 // pred_region
      %s142 = ssub.s32 %s9, 1
      %p143 = scmp.lt.s32.totalorder %s14, 1
      %s144 = scalar_select %p143, %s14, 1
      %s145 = smul.addr %s144, 3
      %s146 = smul.addr %s145, 4
      %s147 = scalar_lea.vmem %s0, %s146
      %p148 = pneg %p35
      %p149 = pneg %p32
      %p150 = pneg %p56
      %p151 = pneg %p53
      %p152 = pneg %p77
      %p153 = pneg %p74
      %p154 = pneg %p103
      %p155 = pneg %p100
      %p156 = scmp.lt.s32.totalorder %s14, 1
      %s157 = scalar_select %p156, %s14, 1
      %s158 = smul.addr %s157, 3
      %s159 = smul.addr %s158, 4
      %s160 = scalar_lea.vmem %s3, %s159
      %p161 = scmp.lt.s32.totalorder %s14, 1
      %s162 = scalar_select %p161, %s14, 1
      %s163 = smul.addr %s162, 3
      %s164 = smul.addr %s163, 4
      %s165 = scalar_lea.vmem %s0, %s164
      %p166 = scmp.lt.s32.totalorder %s14, 1
      %s167 = scalar_select %p166, %s14, 1
      %s168 = smul.addr %s167, 3
      %s169 = smul.addr %s168, 4
      %s170 = scalar_lea.vmem %s3, %s169
      %v171 = vld [vmem:[%s165] sm:$0xff]
      %v172 = vld [vmem:[%s165 + $0x8] sm:$0xf]
      %v173 = vunpack.c.l.bf16 %v171
      %v174 = vunpack.c.h.bf16 %v171
      %v175 = vunpack.c.l.bf16 %v172
      %v176 = vld [vmem:[%s1] sm:$0xff]
      %178 = vset.pattern.permute.xlu0 0
      %179 = vperm.xlu0 %178, %v176
      %v180 = vpop.permute.xlu0 %179
      %v182 = vmul.f32 %v173, %v180
      %v183 = vmul.f32 %v174, %v180
      %v184 = vmul.f32 %v175, %v180
      %v185 = vld [vmem:[%s2] sm:$0xff]
      %187 = vset.pattern.permute.xlu0 0
      %188 = vperm.xlu0 %187, %v185
      %v189 = vpop.permute.xlu0 %188
      %v191 = vadd.f32 %v182, %v189
      %v192 = vadd.f32 %v183, %v189
      %v193 = vadd.f32 %v184, %v189
      %vm194 = vcmp.gt.f32.partialorder %v191, 0.0
      %vm195 = vcmp.gt.f32.partialorder %v192, 0.0
      %vm196 = vcmp.gt.f32.partialorder %v193, 0.0
      %v197 = vmul.f32 %v191, 0.01
      %v198 = vmul.f32 %v192, 0.01
      %v199 = vmul.f32 %v193, 0.01
      %v200 = vsel %vm194, %v191, %v197
      %v201 = vsel %vm195, %v192, %v198
      %v202 = vsel %vm196, %v193, %v199
      %v203 = vpack.c.bf16 %v200, %v200
      %v204 = vpack.c.bf16 %v201, %v201
      %v205 = vpack.c.bf16 %v202, %v202
      %v209 = vunpack.c.l.b16 %v203
      %v210 = vunpack.c.l.b16 %v204
      %v211 = vunpack.c.l.b16 %v205
      %v212 = vpack.c.b16 %v210, %v209
      %v213 = vpack.c.b16 %v211, %v211
      %216 = vst [vmem:[%s170] sm:$0xff] %v212
      %217 = vst [vmem:[%s170 + $0x8] sm:$0xf] %v213
      %p218 = scmp.lt.s32.totalorder %s14, 1
      %s219 = scalar_select %p218, %s14, 1
      %s220 = smul.addr %s219, 3
      %s221 = smul.addr %s220, 4
      %s222 = scalar_lea.vmem %s3, %s221
      // Predicated region
      $region33: #{a_call__.5} parent=31 // pred_check
        %p223 = pneg %p100
      $region34: #{a_call__.5} parent=31 // pred_check_branch
        %225 = sbr.rel (%p223) target = $region36
      $region35: #{a_call__.5} parent=31 // pred_region
        _
      $region36: #{a_call__.5} parent=31 // pred_fallthru
        _
    $region32: #{a_call__.5} parent=5 // pred_fallthru
      _
    %p226 = scmp.le.s32.totalorder 2, %s9
    // Predicated region
    $region37: #{a_call__.5} parent=5 // pred_check
      %p227 = pneg %p226
    $region38: #{a_call__.5} parent=5 // pred_check_branch
      %229 = sbr.rel (%p227) target = $region40
    $region39: #{a_call__.5} parent=5 // pred_region
      %s230 = ssub.s32 %s9, 2
      // Predicated region
      $region41: #{a_call__.5} parent=39 // pred_check
        %p231 = pneg %p106
      $region42: #{a_call__.5} parent=39 // pred_check_branch
        %233 = sbr.rel (%p231) target = $region44
      $region43: #{a_call__.5} parent=39 // pred_region
        %p234 = scmp.lt.s32.totalorder %s15, 1
        %s235 = scalar_select %p234, %s15, 1
        %s236 = smul.addr %s235, 3
        %s237 = smul.addr %s236, 4
        %s238 = scalar_lea.vmem %s3, %s237
      $region44: #{a_call__.5} parent=39 // pred_fallthru
        _
    $region40: #{a_call__.5} parent=5 // pred_fallthru
      _
  $region6: #{a_call__.5} parent=0 // loop_footer
    %s13 = sadd.s32 1, %s9
  $region7: #{a_call__.5} parent=0 // loop_footer_branch
    %8 = sbr.rel target = $region3
  $region8: #{a_call__.5} parent=0 // loop_exit
    _

// kernel: a_call__.4
$region0: #{a_call__.4}
  #allocation0 [shape = 'u32[]', space=smem, size = 0x4, offset = 0x4, fixed_abs, tag = 'smem constant byte address 0x4 - core index']
  #allocation1 [shape = 'u32[144,128]{1,0:T(1,128)}', space=vmem, size = 0x12000, scoped, tag = 'internal scratch']
  %s0 = inlined_call_operand.vmem [shape: bf16[2,4,512], index: 0, kind: input, shape index: {}]
  %s1 = inlined_call_operand.vmem [shape: bf16[9,8,4], index: 1, kind: input, shape index: {}]
  %s2 = inlined_call_operand.vmem [shape: f32[1,384], index: 2, kind: input, shape index: {}]
  %s3 = inlined_call_operand.vmem [shape: bf16[2,8,384], index: 3, kind: output, shape index: {0}]
  %s4 = inlined_call_operand.vmem [shape: f32[2,8,1], index: 4, kind: output, shape index: {1}]
  %s5 = inlined_call_operand.vmem [shape: f32[2,8,1], index: 5, kind: output, shape index: {2}]
  %6 = xla_tuple %s3, %s4, %s5
  %s7 = sld [smem:[#allocation0]]
  $region61: #{a_call__.4} parent=0
    _
  %s9 = ssub.s32 1, %s7
  %s10 = scalar_select 0, %s9, %s7
  loop: start=0, step=1, limit=4
  $region2: #{a_call__.4} parent=0 // loop_pre_header
    _
  $region3: #{a_call__.4} parent=0 // loop_header
    %s12 = sphi 0, %s16
    %p13 = scmp.ge.s32.totalorder %s12, 4
    %s22 = sphi 0, %s24
    %s25 = sphi 0, %s22
    %s26 = sphi 0, %s25
    %s42 = sphi 0, %s26
    %s46 = sphi 0, %s46
    %s48 = sphi 0, %s46
    %s49 = sphi 0, %s48
    %s63 = sphi 0, %s49
    %s67 = sphi 0, %s67
    %s69 = sphi 0, %s67
    %s70 = sphi 0, %s69
    %s84 = sphi 0, %s70
    %s90 = sphi 0, %s92
    %s93 = sphi 0, %s90
    %s94 = sphi 0, %s93
    %s110 = sphi 0, %s94
    %s116 = sphi 0, %s118
    %s119 = sphi 0, %s116
    %s120 = sphi 0, %s119
    %s136 = sphi 0, %s120
    %s142 = sphi 0, %s144
    %s145 = sphi 0, %s142
    %s146 = sphi 0, %s145
    %s162 = sphi 0, %s146
  $region4: #{a_call__.4} parent=0 // loop_header_branch
    %15 = sbr.rel (%p13) target = $region8
  $region5: #{a_call__.4} parent=0 // loop_body
    %s17 = ssub.s32 %s12, 1
    %s18 = ssub.s32 %s12, 2
    %s19 = sadd.s32 %s12, 1
    %s20 = ssub.s32 %s12, %s19
    %p21 = scmp.eq.s32.totalorder %s20, 0
    %s23 = sadd.s32 %s22, 1
    %s24 = scalar_select %p21, %s22, %s23
    %p27 = pneg %p21
    %p28 = scmp.eq.s32.totalorder %s12, 1
    %p29 = por %p27, %p28
    %p30 = scmp.ne.s32.totalorder %s22, %s25
    %p31 = scmp.eq.s32.totalorder %s12, 0
    %p32 = por %p30, %p31
    %p33 = scmp.ne.s32.totalorder %s22, %s25
    %p34 = scmp.eq.s32.totalorder %s17, 1
    %p35 = por %p33, %p34
    %p36 = scmp.ne.s32.totalorder %s25, %s26
    %p37 = scmp.eq.s32.totalorder %s17, 0
    %p38 = por %p36, %p37
    %p39 = scmp.ne.s32.totalorder %s25, %s26
    %p40 = scmp.eq.s32.totalorder %s18, 1
    %p41 = por %p39, %p40
    %p43 = scmp.ne.s32.totalorder %s26, %s42
    %p44 = scmp.eq.s32.totalorder %s18, 0
    %p45 = por %p43, %p44
    %s47 = sadd.s32 %s46, 1
    %p50 = scmp.eq.s32.totalorder %s12, 1
    %p51 = scmp.ne.s32.totalorder %s46, %s48
    %p52 = scmp.eq.s32.totalorder %s12, 0
    %p53 = por %p51, %p52
    %p54 = scmp.ne.s32.totalorder %s46, %s48
    %p55 = scmp.eq.s32.totalorder %s17, 1
    %p56 = por %p54, %p55
    %p57 = scmp.ne.s32.totalorder %s48, %s49
    %p58 = scmp.eq.s32.totalorder %s17, 0
    %p59 = por %p57, %p58
    %p60 = scmp.ne.s32.totalorder %s48, %s49
    %p61 = scmp.eq.s32.totalorder %s18, 1
    %p62 = por %p60, %p61
    %p64 = scmp.ne.s32.totalorder %s49, %s63
    %p65 = scmp.eq.s32.totalorder %s18, 0
    %p66 = por %p64, %p65
    %s68 = sadd.s32 %s67, 1
    %p71 = scmp.eq.s32.totalorder %s12, 1
    %p72 = scmp.ne.s32.totalorder %s67, %s69
    %p73 = scmp.eq.s32.totalorder %s12, 0
    %p74 = por %p72, %p73
    %p75 = scmp.ne.s32.totalorder %s67, %s69
    %p76 = scmp.eq.s32.totalorder %s17, 1
    %p77 = por %p75, %p76
    %p78 = scmp.ne.s32.totalorder %s69, %s70
    %p79 = scmp.eq.s32.totalorder %s17, 0
    %p80 = por %p78, %p79
    %p81 = scmp.ne.s32.totalorder %s69, %s70
    %p82 = scmp.eq.s32.totalorder %s18, 1
    %p83 = por %p81, %p82
    %p85 = scmp.ne.s32.totalorder %s70, %s84
    %p86 = scmp.eq.s32.totalorder %s18, 0
    %p87 = por %p85, %p86
    %s88 = ssub.s32 %s12, %s19
    %p89 = scmp.eq.s32.totalorder %s88, 0
    %s91 = sadd.s32 %s90, 1
    %s92 = scalar_select %p89, %s90, %s91
    %p95 = pneg %p89
    %p96 = scmp.eq.s32.totalorder %s12, 1
    %p97 = por %p95, %p96
    %p98 = scmp.ne.s32.totalorder %s90, %s93
    %p99 = scmp.eq.s32.totalorder %s12, 0
    %p100 = por %p98, %p99
    %p101 = scmp.ne.s32.totalorder %s90, %s93
    %p102 = scmp.eq.s32.totalorder %s17, 1
    %p103 = por %p101, %p102
    %p104 = scmp.ne.s32.totalorder %s93, %s94
    %p105 = scmp.eq.s32.totalorder %s17, 0
    %p106 = por %p104, %p105
    %p107 = scmp.ne.s32.totalorder %s93, %s94
    %p108 = scmp.eq.s32.totalorder %s18, 1
    %p109 = por %p107, %p108
    %p111 = scmp.ne.s32.totalorder %s94, %s110
    %p112 = scmp.eq.s32.totalorder %s18, 0
    %p113 = por %p111, %p112
    %s114 = ssub.s32 %s12, %s19
    %p115 = scmp.eq.s32.totalorder %s114, 0
    %s117 = sadd.s32 %s116, 1
    %s118 = scalar_select %p115, %s116, %s117
    %p121 = pneg %p115
    %p122 = scmp.eq.s32.totalorder %s12, 1
    %p123 = por %p121, %p122
    %p124 = scmp.ne.s32.totalorder %s116, %s119
    %p125 = scmp.eq.s32.totalorder %s12, 0
    %p126 = por %p124, %p125
    %p127 = scmp.ne.s32.totalorder %s116, %s119
    %p128 = scmp.eq.s32.totalorder %s17, 1
    %p129 = por %p127, %p128
    %p130 = scmp.ne.s32.totalorder %s119, %s120
    %p131 = scmp.eq.s32.totalorder %s17, 0
    %p132 = por %p130, %p131
    %p133 = scmp.ne.s32.totalorder %s119, %s120
    %p134 = scmp.eq.s32.totalorder %s18, 1
    %p135 = por %p133, %p134
    %p137 = scmp.ne.s32.totalorder %s120, %s136
    %p138 = scmp.eq.s32.totalorder %s18, 0
    %p139 = por %p137, %p138
    %s140 = ssub.s32 %s12, %s19
    %p141 = scmp.eq.s32.totalorder %s140, 0
    %s143 = sadd.s32 %s142, 1
    %s144 = scalar_select %p141, %s142, %s143
    %p147 = pneg %p141
    %p148 = scmp.eq.s32.totalorder %s12, 1
    %p149 = por %p147, %p148
    %p150 = scmp.ne.s32.totalorder %s142, %s145
    %p151 = scmp.eq.s32.totalorder %s12, 0
    %p152 = por %p150, %p151
    %p153 = scmp.ne.s32.totalorder %s142, %s145
    %p154 = scmp.eq.s32.totalorder %s17, 1
    %p155 = por %p153, %p154
    %p156 = scmp.ne.s32.totalorder %s145, %s146
    %p157 = scmp.eq.s32.totalorder %s17, 0
    %p158 = por %p156, %p157
    %p159 = scmp.ne.s32.totalorder %s145, %s146
    %p160 = scmp.eq.s32.totalorder %s18, 1
    %p161 = por %p159, %p160
    %p163 = scmp.ne.s32.totalorder %s146, %s162
    %p164 = scmp.eq.s32.totalorder %s18, 0
    %p165 = por %p163, %p164
    %p166 = scmp.le.s32.totalorder 1, %s12
    %p167 = scmp.lt.s32.totalorder %s12, 3
    %p168 = pnand %p166, %p167
    %p169 = pneg %p168
    // Predicated region
    $region9: #{a_call__.4} parent=5 // pred_check
      _
    $region10: #{a_call__.4} parent=5 // pred_check_branch
      %171 = sbr.rel (%p168) target = $region12
    $region11: #{a_call__.4} parent=5 // pred_region
      %s172 = ssub.s32 %s12, 1
      // Predicated region
      $region13: #{a_call__.4} parent=11 // pred_check
        %p173 = pneg %p59
      $region14: #{a_call__.4} parent=11 // pred_check_branch
        %175 = sbr.rel (%p173) target = $region16
      $region15: #{a_call__.4} parent=11 // pred_region
        _
      $region16: #{a_call__.4} parent=11 // pred_fallthru
        _
      // Predicated region
      $region17: #{a_call__.4} parent=11 // pred_check
        %p176 = pneg %p80
      $region18: #{a_call__.4} parent=11 // pred_check_branch
        %178 = sbr.rel (%p176) target = $region20
      $region19: #{a_call__.4} parent=11 // pred_region
        _
      $region20: #{a_call__.4} parent=11 // pred_fallthru
        _
    $region12: #{a_call__.4} parent=5 // pred_fallthru
      _
    %p179 = scmp.lt.s32.totalorder %s12, 2
    // Predicated region
    $region21: #{a_call__.4} parent=5 // pred_check
      %p180 = pneg %p179
    $region22: #{a_call__.4} parent=5 // pred_check_branch
      %182 = sbr.rel (%p180) target = $region24
    $region23: #{a_call__.4} parent=5 // pred_region
      // Predicated region
      $region25: #{a_call__.4} parent=23 // pred_check
        %p183 = pneg %p32
      $region26: #{a_call__.4} parent=23 // pred_check_branch
        %185 = sbr.rel (%p183) target = $region28
      $region27: #{a_call__.4} parent=23 // pred_region
        %p186 = scmp.lt.s32.totalorder %s12, 1
        %s187 = scalar_select %p186, %s12, 1
        %s188 = smul.addr %s187, 4
        %s189 = smul.addr %s188, 2
        %s190 = scalar_lea.vmem %s0, %s189
      $region28: #{a_call__.4} parent=23 // pred_fallthru
        _
    $region24: #{a_call__.4} parent=5 // pred_fallthru
      _
    %p191 = scmp.le.s32.totalorder 1, %s12
    %p192 = scmp.lt.s32.totalorder %s12, 3
    %p193 = pnand %p191, %p192
    %p194 = pneg %p193
    // Predicated region
    $region29: #{a_call__.4} parent=5 // pred_check
      _
    $region30: #{a_call__.4} parent=5 // pred_check_branch
      %196 = sbr.rel (%p193) target = $region32
    $region31: #{a_call__.4} parent=5 // pred_region
      %s197 = ssub.s32 %s12, 1
      %p198 = scmp.lt.s32.totalorder %s17, 1
      %s199 = scalar_select %p198, %s17, 1
      %s200 = smul.addr %s199, 4
      %s201 = smul.addr %s200, 2
      %s202 = scalar_lea.vmem %s0, %s201
      %p203 = pneg %p38
      %p204 = pneg %p35
      %p205 = pneg %p59
      %p206 = pneg %p56
      %p207 = pneg %p80
      %p208 = pneg %p77
      %p209 = pneg %p106
      %p210 = pneg %p103
      %p211 = scmp.lt.s32.totalorder %s17, 1
      %s212 = scalar_select %p211, %s17, 1
      %s213 = smul.addr %s212, 3
      %s214 = smul.addr %s213, 4
      %s215 = scalar_lea.vmem %s3, %s214
      %p216 = pneg %p132
      %p217 = pneg %p129
      %p218 = scmp.lt.s32.totalorder %s17, 1
      %s219 = scalar_select %p218, %s17, 1
      %s220 = smul.addr %s219, 8
      %s221 = scalar_lea.vmem %s4, %s220
      %p222 = pneg %p158
      %p223 = pneg %p155
      %p224 = scmp.lt.s32.totalorder %s17, 1
      %s225 = scalar_select %p224, %s17, 1
      %s226 = smul.addr %s225, 8
      %s227 = scalar_lea.vmem %s5, %s226
      %p228 = scmp.lt.s32.totalorder %s17, 1
      %s229 = scalar_select %p228, %s17, 1
      %s230 = smul.addr %s229, 4
      %s231 = smul.addr %s230, 2
      %s232 = scalar_lea.vmem %s0, %s231
      %p233 = scmp.lt.s32.totalorder %s17, 1
      %s234 = scalar_select %p233, %s17, 1
      %s235 = smul.addr %s234, 3
      %s236 = smul.addr %s235, 4
      %s237 = scalar_lea.vmem %s3, %s236
      %p238 = scmp.lt.s32.totalorder %s17, 1
      %s239 = scalar_select %p238, %s17, 1
      %s240 = smul.addr %s239, 8
      %s241 = scalar_lea.vmem %s4, %s240
      %p242 = scmp.lt.s32.totalorder %s17, 1
      %s243 = scalar_select %p242, %s17, 1
      %s244 = smul.addr %s243, 8
      %s245 = scalar_lea.vmem %s5, %s244
      %v247 = vld [vmem:[%s232] sm:$0xff]
      %v248 = vld [vmem:[%s1] sm:$0xf]
      %s249 = scalar_lea.vmem %s1, 4
      %v250 = vld [vmem:[%s249] sm:$0xf]
      %v252 = vcombine.high %v247, %v247
      %v254 = vunpack.c.l.s4 1983009808
      %v255 = vunpack.c.0.s8 %v254
      %v256 = vlaneseq
      %v257 = vshrl.u32 %v256, 7
      %v258 = vsub.s32 %v255, %v257
      %v259 = vrot.slane %v247, %v258
      %v261 = vunpack.c.l.s4 1983009808
      %v262 = vunpack.c.0.s8 %v261
      %v263 = vlaneseq
      %v264 = vshrl.u32 %v263, 7
      %v265 = vsub.s32 %v262, %v264
      %v266 = vrot.slane %v252, %v265
      %v267 = vcombine.high %v259, %v259
      %v268 = vcombine.high %v266, %v266
      %269 = vrot.lane.b32.xlu0 %v259, 127
      %v270 = vpop.permute.xlu0 %269
      %271 = vrot.lane.b32.xlu0 %v267, 127
      %v272 = vpop.permute.xlu0 %271
      %273 = vrot.lane.b32.xlu0 %v266, 127
      %v274 = vpop.permute.xlu0 %273
      %275 = vrot.lane.b32.xlu0 %v268, 127
      %v276 = vpop.permute.xlu0 %275
      %vm277 = vcmask 1039360
      %v278 = vsel %vm277, %v270, %v272
      %v279 = vsel %vm277, %v272, %v274
      %v280 = vsel %vm277, %v274, %v276
      %vm281 = vcmask 31744
      %v283 = vsel %vm281, %v250, 0
      %vm285 = vcmask 1041408
      %v287 = vsel %vm285, %v278, 0
      %v290 = vsel %vm285, %v279, 0
      %v293 = vsel %vm285, %v280, 0
      %295 = vmatprep.subr.bf16.mxu0 0
      %296 = vmatpush1.bf16.msra.mxu0 0
      %297 = vmatprep.subr.bf16.mxu0 0
      %298 = vmatpush1.bf16.msra.mxu0 0
      %299 = vmatprep.subr.bf16.mxu0 0
      %300 = vmatpush1.bf16.msra.mxu0 0
      %301 = vmatprep.subr.bf16.mxu0 0
      %302 = vmatpush1.bf16.msra.mxu0 0
      %303 = vmatprep.subr.bf16.mxu0 0
      %304 = vmatpush1.bf16.msra.mxu0 0
      %305 = vmatprep.subr.bf16.mxu0 0
      %306 = vmatpush1.bf16.msra.mxu0 0
      %307 = vmatprep.subr.bf16.mxu0 0
      %308 = vmatpush1.bf16.msra.mxu0 0
      %309 = vmatprep.subr.bf16.mxu0 %v290
      %310 = vmatpush1.bf16.msra.mxu0 %v287
      %311 = vmatprep.subr.bf16.mxu0 0
      %312 = vmatpush2.bf16.msra.mxu0 0
      %313 = vmatprep.subr.bf16.mxu0 0
      %314 = vmatpush2.bf16.msra.mxu0 0
      %315 = vmatprep.subr.bf16.mxu0 0
      %316 = vmatpush2.bf16.msra.mxu0 0
      %317 = vmatprep.subr.bf16.mxu0 0
      %318 = vmatpush2.bf16.msra.mxu0 0
      %319 = vmatprep.subr.bf16.mxu0 0
      %320 = vmatpush2.bf16.msra.mxu0 0
      %321 = vmatprep.subr.bf16.mxu0 0
      %322 = vmatpush2.bf16.msra.mxu0 0
      %323 = vmatprep.subr.bf16.mxu0 0
      %324 = vmatpush2.bf16.msra.mxu0 0
      %325 = vmatprep.subr.bf16.mxu0 0
      %326 = vmatpush2.bf16.msra.mxu0 0
      %327 = vmatprep.mubr.bf16.mxu0 0
      %328 = vmatmul.mubr.bf16.gmra.mxu0 %v283
      %v329 = vpop.f32.mrf.mxu0
      %v330 = vadd.f32 0.0, %v329
      %v331 = vpop.f32.mrf.mxu0
      %v332 = vadd.f32 0.0, %v331
      %v333 = vpop.f32.mrf.mxu0
      %v334 = vpop.f32.mrf.mxu0
      %335 = vdwg.mxu0
      %336 = vmatprep.subr.bf16.mxu0 0
      %337 = vmatpush1.bf16.msra.mxu0 0
      %338 = vmatprep.subr.bf16.mxu0 0
      %339 = vmatpush1.bf16.msra.mxu0 0
      %340 = vmatprep.subr.bf16.mxu0 0
      %341 = vmatpush1.bf16.msra.mxu0 0
      %342 = vmatprep.subr.bf16.mxu0 0
      %343 = vmatpush1.bf16.msra.mxu0 0
      %344 = vmatprep.subr.bf16.mxu0 0
      %345 = vmatpush1.bf16.msra.mxu0 0
      %346 = vmatprep.subr.bf16.mxu0 0
      %347 = vmatpush1.bf16.msra.mxu0 0
      %348 = vmatprep.subr.bf16.mxu0 0
      %349 = vmatpush1.bf16.msra.mxu0 0
      %350 = vmatprep.subr.bf16.mxu0 0
      %351 = vmatpush1.bf16.msra.mxu0 %v293
      %352 = vmatprep.subr.bf16.mxu0 0
      %353 = vmatpush2.bf16.msra.mxu0 0
      %354 = vmatprep.subr.bf16.mxu0 0
      %355 = vmatpush2.bf16.msra.mxu0 0
      %356 = vmatprep.subr.bf16.mxu0 0
      %357 = vmatpush2.bf16.msra.mxu0 0
      %358 = vmatprep.subr.bf16.mxu0 0
      %359 = vmatpush2.bf16.msra.mxu0 0
      %360 = vmatprep.subr.bf16.mxu0 0
      %361 = vmatpush2.bf16.msra.mxu0 0
      %362 = vmatprep.subr.bf16.mxu0 0
      %363 = vmatpush2.bf16.msra.mxu0 0
      %364 = vmatprep.subr.bf16.mxu0 0
      %365 = vmatpush2.bf16.msra.mxu0 0
      %366 = vmatprep.subr.bf16.mxu0 0
      %367 = vmatpush2.bf16.msra.mxu0 0
      %368 = vmatprep.mubr.bf16.mxu0 0
      %369 = vmatmul.mubr.bf16.gmra.mxu0 %v283
      %v370 = vpop.f32.mrf.mxu0
      %v371 = vadd.f32 0.0, %v370
      %v372 = vpop.f32.mrf.mxu0
      %v373 = vpop.f32.mrf.mxu0
      %v374 = vpop.f32.mrf.mxu0
      %375 = vdwg.mxu0
      %v377 = vsel %vm281, %v248, 0
      %v380 = vsel %vm285, %v259, 0
      %v383 = vsel %vm285, %v267, 0
      %v386 = vsel %vm285, %v266, 0
      %388 = vmatprep.subr.bf16.mxu0 0
      %389 = vmatpush1.bf16.msra.mxu0 0
      %390 = vmatprep.subr.bf16.mxu0 0
      %391 = vmatpush1.bf16.msra.mxu0 0
      %392 = vmatprep.subr.bf16.mxu0 0
      %393 = vmatpush1.bf16.msra.mxu0 0
      %394 = vmatprep.subr.bf16.mxu0 0
      %395 = vmatpush1.bf16.msra.mxu0 0
      %396 = vmatprep.subr.bf16.mxu0 0
      %397 = vmatpush1.bf16.msra.mxu0 0
      %398 = vmatprep.subr.bf16.mxu0 0
      %399 = vmatpush1.bf16.msra.mxu0 0
      %400 = vmatprep.subr.bf16.mxu0 0
      %401 = vmatpush1.bf16.msra.mxu0 0
      %402 = vmatprep.subr.bf16.mxu0 %v383
      %403 = vmatpush1.bf16.msra.mxu0 %v380
      %404 = vmatprep.subr.bf16.mxu0 0
      %405 = vmatpush2.bf16.msra.mxu0 0
      %406 = vmatprep.subr.bf16.mxu0 0
      %407 = vmatpush2.bf16.msra.mxu0 0
      %408 = vmatprep.subr.bf16.mxu0 0
      %409 = vmatpush2.bf16.msra.mxu0 0
      %410 = vmatprep.subr.bf16.mxu0 0
      %411 = vmatpush2.bf16.msra.mxu0 0
      %412 = vmatprep.subr.bf16.mxu0 0
      %413 = vmatpush2.bf16.msra.mxu0 0
      %414 = vmatprep.subr.bf16.mxu0 0
      %415 = vmatpush2.bf16.msra.mxu0 0
      %416 = vmatprep.subr.bf16.mxu0 0
      %417 = vmatpush2.bf16.msra.mxu0 0
      %418 = vmatprep.subr.bf16.mxu0 0
      %419 = vmatpush2.bf16.msra.mxu0 0
      %420 = vmatprep.mubr.bf16.mxu0 0
      %421 = vmatmul.mubr.bf16.gmra.mxu0 %v377
      %v422 = vpop.f32.mrf.mxu0
      %v423 = vadd.f32 %v330, %v422
      %v424 = vpop.f32.mrf.mxu0
      %v425 = vadd.f32 %v332, %v424
      %v426 = vpop.f32.mrf.mxu0
      %v427 = vpop.f32.mrf.mxu0
      %428 = vdwg.mxu0
      %429 = vmatprep.subr.bf16.mxu0 0
      %430 = vmatpush1.bf16.msra.mxu0 0
      %431 = vmatprep.subr.bf16.mxu0 0
      %432 = vmatpush1.bf16.msra.mxu0 0
      %433 = vmatprep.subr.bf16.mxu0 0
      %434 = vmatpush1.bf16.msra.mxu0 0
      %435 = vmatprep.subr.bf16.mxu0 0
      %436 = vmatpush1.bf16.msra.mxu0 0
      %437 = vmatprep.subr.bf16.mxu0 0
      %438 = vmatpush1.bf16.msra.mxu0 0
      %439 = vmatprep.subr.bf16.mxu0 0
      %440 = vmatpush1.bf16.msra.mxu0 0
      %441 = vmatprep.subr.bf16.mxu0 0
      %442 = vmatpush1.bf16.msra.mxu0 0
      %443 = vmatprep.subr.bf16.mxu0 0
      %444 = vmatpush1.bf16.msra.mxu0 %v386
      %445 = vmatprep.subr.bf16.mxu0 0
      %446 = vmatpush2.bf16.msra.mxu0 0
      %447 = vmatprep.subr.bf16.mxu0 0
      %448 = vmatpush2.bf16.msra.mxu0 0
      %449 = vmatprep.subr.bf16.mxu0 0
      %450 = vmatpush2.bf16.msra.mxu0 0
      %451 = vmatprep.subr.bf16.mxu0 0
      %452 = vmatpush2.bf16.msra.mxu0 0
      %453 = vmatprep.subr.bf16.mxu0 0
      %454 = vmatpush2.bf16.msra.mxu0 0
      %455 = vmatprep.subr.bf16.mxu0 0
      %456 = vmatpush2.bf16.msra.mxu0 0
      %457 = vmatprep.subr.bf16.mxu0 0
      %458 = vmatpush2.bf16.msra.mxu0 0
      %459 = vmatprep.subr.bf16.mxu0 0
      %460 = vmatpush2.bf16.msra.mxu0 0
      %461 = vmatprep.mubr.bf16.mxu0 0
      %462 = vmatmul.mubr.bf16.gmra.mxu0 %v377
      %v463 = vpop.f32.mrf.mxu0
      %v464 = vadd.f32 %v371, %v463
      %v465 = vpop.f32.mrf.mxu0
      %v466 = vpop.f32.mrf.mxu0
      %v467 = vpop.f32.mrf.mxu0
      %468 = vdwg.mxu0
      %s469 = scalar_lea.vmem %s1, 8
      %v470 = vld [vmem:[%s469] sm:$0xf]
      %471 = vrot.lane.b32.xlu0 %v259, 126
      %v472 = vpop.permute.xlu0 %471
      %473 = vrot.lane.b32.xlu0 %v267, 126
      %v474 = vpop.permute.xlu0 %473
      %475 = vrot.lane.b32.xlu0 %v266, 126
      %v476 = vpop.permute.xlu0 %475
      %477 = vrot.lane.b32.xlu0 %v268, 126
      %v478 = vpop.permute.xlu0 %477
      %vm479 = vcmask 1031168
      %v480 = vsel %vm479, %v472, %v474
      %v481 = vsel %vm479, %v474, %v476
      %v482 = vsel %vm479, %v476, %v478
      %v484 = vsel %vm281, %v470, 0
      %v487 = vsel %vm285, %v480, 0
      %v490 = vsel %vm285, %v481, 0
      %v493 = vsel %vm285, %v482, 0
      %495 = vmatprep.subr.bf16.mxu0 0
      %496 = vmatpush1.bf16.msra.mxu0 0
      %497 = vmatprep.subr.bf16.mxu0 0
      %498 = vmatpush1.bf16.msra.mxu0 0
      %499 = vmatprep.subr.bf16.mxu0 0
      %500 = vmatpush1.bf16.msra.mxu0 0
      %501 = vmatprep.subr.bf16.mxu0 0
      %502 = vmatpush1.bf16.msra.mxu0 0
      %503 = vmatprep.subr.bf16.mxu0 0
      %504 = vmatpush1.bf16.msra.mxu0 0
      %505 = vmatprep.subr.bf16.mxu0 0
      %506 = vmatpush1.bf16.msra.mxu0 0
      %507 = vmatprep.subr.bf16.mxu0 0
      %508 = vmatpush1.bf16.msra.mxu0 0
      %509 = vmatprep.subr.bf16.mxu0 %v490
      %510 = vmatpush1.bf16.msra.mxu0 %v487
      %511 = vmatprep.subr.bf16.mxu0 0
      %512 = vmatpush2.bf16.msra.mxu0 0
      %513 = vmatprep.subr.bf16.mxu0 0
      %514 = vmatpush2.bf16.msra.mxu0 0
      %515 = vmatprep.subr.bf16.mxu0 0
      %516 = vmatpush2.bf16.msra.mxu0 0
      %517 = vmatprep.subr.bf16.mxu0 0
      %518 = vmatpush2.bf16.msra.mxu0 0
      %519 = vmatprep.subr.bf16.mxu0 0
      %520 = vmatpush2.bf16.msra.mxu0 0
      %521 = vmatprep.subr.bf16.mxu0 0
      %522 = vmatpush2.bf16.msra.mxu0 0
      %523 = vmatprep.subr.bf16.mxu0 0
      %524 = vmatpush2.bf16.msra.mxu0 0
      %525 = vmatprep.subr.bf16.mxu0 0
      %526 = vmatpush2.bf16.msra.mxu0 0
      %527 = vmatprep.mubr.bf16.mxu0 0
      %528 = vmatmul.mubr.bf16.gmra.mxu0 %v484
      %v529 = vpop.f32.mrf.mxu0
      %v530 = vadd.f32 0.0, %v529
      %v531 = vpop.f32.mrf.mxu0
      %v532 = vadd.f32 0.0, %v531
      %v533 = vpop.f32.mrf.mxu0
      %v534 = vpop.f32.mrf.mxu0
      %535 = vdwg.mxu0
      %536 = vmatprep.subr.bf16.mxu0 0
      %537 = vmatpush1.bf16.msra.mxu0 0
      %538 = vmatprep.subr.bf16.mxu0 0
      %539 = vmatpush1.bf16.msra.mxu0 0
      %540 = vmatprep.subr.bf16.mxu0 0
      %541 = vmatpush1.bf16.msra.mxu0 0
      %542 = vmatprep.subr.bf16.mxu0 0
      %543 = vmatpush1.bf16.msra.mxu0 0
      %544 = vmatprep.subr.bf16.mxu0 0
      %545 = vmatpush1.bf16.msra.mxu0 0
      %546 = vmatprep.subr.bf16.mxu0 0
      %547 = vmatpush1.bf16.msra.mxu0 0
      %548 = vmatprep.subr.bf16.mxu0 0
      %549 = vmatpush1.bf16.msra.mxu0 0
      %550 = vmatprep.subr.bf16.mxu0 0
      %551 = vmatpush1.bf16.msra.mxu0 %v493
      %552 = vmatprep.subr.bf16.mxu0 0
      %553 = vmatpush2.bf16.msra.mxu0 0
      %554 = vmatprep.subr.bf16.mxu0 0
      %555 = vmatpush2.bf16.msra.mxu0 0
      %556 = vmatprep.subr.bf16.mxu0 0
      %557 = vmatpush2.bf16.msra.mxu0 0
      %558 = vmatprep.subr.bf16.mxu0 0
      %559 = vmatpush2.bf16.msra.mxu0 0
      %560 = vmatprep.subr.bf16.mxu0 0
      %561 = vmatpush2.bf16.msra.mxu0 0
      %562 = vmatprep.subr.bf16.mxu0 0
      %563 = vmatpush2.bf16.msra.mxu0 0
      %564 = vmatprep.subr.bf16.mxu0 0
      %565 = vmatpush2.bf16.msra.mxu0 0
      %566 = vmatprep.subr.bf16.mxu0 0
      %567 = vmatpush2.bf16.msra.mxu0 0
      %568 = vmatprep.mubr.bf16.mxu0 0
      %569 = vmatmul.mubr.bf16.gmra.mxu0 %v484
      %v570 = vpop.f32.mrf.mxu0
      %v571 = vadd.f32 0.0, %v570
      %v572 = vpop.f32.mrf.mxu0
      %v573 = vpop.f32.mrf.mxu0
      %v574 = vpop.f32.mrf.mxu0
      %575 = vdwg.mxu0
      %v576 = vadd.f32 %v423, %v530
      %v577 = vadd.f32 %v425, %v532
      %v578 = vadd.f32 %v464, %v571
      %s579 = scalar_lea.vmem %s1, 12
      %v580 = vld [vmem:[%s579] sm:$0xf]
      %581 = vrot.lane.b32.xlu0 %v259, 110
      %v582 = vpop.permute.xlu0 %581
      %583 = vrot.lane.b32.xlu0 %v267, 110
      %v584 = vpop.permute.xlu0 %583
      %585 = vrot.lane.b32.xlu0 %v266, 110
      %v586 = vpop.permute.xlu0 %585
      %587 = vrot.lane.b32.xlu0 %v268, 110
      %v588 = vpop.permute.xlu0 %587
      %vm589 = vcmask 900096
      %v590 = vsel %vm589, %v582, %v584
      %v591 = vsel %vm589, %v584, %v586
      %v592 = vsel %vm589, %v586, %v588
      %v594 = vsel %vm281, %v580, 0
      %v597 = vsel %vm285, %v590, 0
      %v600 = vsel %vm285, %v591, 0
      %v603 = vsel %vm285, %v592, 0
      %605 = vmatprep.subr.bf16.mxu0 0
      %606 = vmatpush1.bf16.msra.mxu0 0
      %607 = vmatprep.subr.bf16.mxu0 0
      %608 = vmatpush1.bf16.msra.mxu0 0
      %609 = vmatprep.subr.bf16.mxu0 0
      %610 = vmatpush1.bf16.msra.mxu0 0
      %611 = vmatprep.subr.bf16.mxu0 0
      %612 = vmatpush1.bf16.msra.mxu0 0
      %613 = vmatprep.subr.bf16.mxu0 0
      %614 = vmatpush1.bf16.msra.mxu0 0
      %615 = vmatprep.subr.bf16.mxu0 0
      %616 = vmatpush1.bf16.msra.mxu0 0
      %617 = vmatprep.subr.bf16.mxu0 0
      %618 = vmatpush1.bf16.msra.mxu0 0
      %619 = vmatprep.subr.bf16.mxu0 %v600
      %620 = vmatpush1.bf16.msra.mxu0 %v597
      %621 = vmatprep.subr.bf16.mxu0 0
      %622 = vmatpush2.bf16.msra.mxu0 0
      %623 = vmatprep.subr.bf16.mxu0 0
      %624 = vmatpush2.bf16.msra.mxu0 0
      %625 = vmatprep.subr.bf16.mxu0 0
      %626 = vmatpush2.bf16.msra.mxu0 0
      %627 = vmatprep.subr.bf16.mxu0 0
      %628 = vmatpush2.bf16.msra.mxu0 0
      %629 = vmatprep.subr.bf16.mxu0 0
      %630 = vmatpush2.bf16.msra.mxu0 0
      %631 = vmatprep.subr.bf16.mxu0 0
      %632 = vmatpush2.bf16.msra.mxu0 0
      %633 = vmatprep.subr.bf16.mxu0 0
      %634 = vmatpush2.bf16.msra.mxu0 0
      %635 = vmatprep.subr.bf16.mxu0 0
      %636 = vmatpush2.bf16.msra.mxu0 0
      %637 = vmatprep.mubr.bf16.mxu0 0
      %638 = vmatmul.mubr.bf16.gmra.mxu0 %v594
      %v639 = vpop.f32.mrf.mxu0
      %v640 = vadd.f32 0.0, %v639
      %v641 = vpop.f32.mrf.mxu0
      %v642 = vadd.f32 0.0, %v641
      %v643 = vpop.f32.mrf.mxu0
      %v644 = vpop.f32.mrf.mxu0
      %645 = vdwg.mxu0
      %646 = vmatprep.subr.bf16.mxu0 0
      %647 = vmatpush1.bf16.msra.mxu0 0
      %648 = vmatprep.subr.bf16.mxu0 0
      %649 = vmatpush1.bf16.msra.mxu0 0
      %650 = vmatprep.subr.bf16.mxu0 0
      %651 = vmatpush1.bf16.msra.mxu0 0
      %652 = vmatprep.subr.bf16.mxu0 0
      %653 = vmatpush1.bf16.msra.mxu0 0
      %654 = vmatprep.subr.bf16.mxu0 0
      %655 = vmatpush1.bf16.msra.mxu0 0
      %656 = vmatprep.subr.bf16.mxu0 0
      %657 = vmatpush1.bf16.msra.mxu0 0
      %658 = vmatprep.subr.bf16.mxu0 0
      %659 = vmatpush1.bf16.msra.mxu0 0
      %660 = vmatprep.subr.bf16.mxu0 0
      %661 = vmatpush1.bf16.msra.mxu0 %v603
      %662 = vmatprep.subr.bf16.mxu0 0
      %663 = vmatpush2.bf16.msra.mxu0 0
      %664 = vmatprep.subr.bf16.mxu0 0
      %665 = vmatpush2.bf16.msra.mxu0 0
      %666 = vmatprep.subr.bf16.mxu0 0
      %667 = vmatpush2.bf16.msra.mxu0 0
      %668 = vmatprep.subr.bf16.mxu0 0
      %669 = vmatpush2.bf16.msra.mxu0 0
      %670 = vmatprep.subr.bf16.mxu0 0
      %671 = vmatpush2.bf16.msra.mxu0 0
      %672 = vmatprep.subr.bf16.mxu0 0
      %673 = vmatpush2.bf16.msra.mxu0 0
      %674 = vmatprep.subr.bf16.mxu0 0
      %675 = vmatpush2.bf16.msra.mxu0 0
      %676 = vmatprep.subr.bf16.mxu0 0
      %677 = vmatpush2.bf16.msra.mxu0 0
      %678 = vmatprep.mubr.bf16.mxu0 0
      %679 = vmatmul.mubr.bf16.gmra.mxu0 %v594
      %v680 = vpop.f32.mrf.mxu0
      %v681 = vadd.f32 0.0, %v680
      %v682 = vpop.f32.mrf.mxu0
      %v683 = vpop.f32.mrf.mxu0
      %v684 = vpop.f32.mrf.mxu0
      %685 = vdwg.mxu0
      %v686 = vadd.f32 %v576, %v640
      %v687 = vadd.f32 %v577, %v642
      %v688 = vadd.f32 %v578, %v681
      %s689 = scalar_lea.vmem %s1, 16
      %v690 = vld [vmem:[%s689] sm:$0xf]
      %691 = vrot.lane.b32.xlu0 %v259, 109
      %v692 = vpop.permute.xlu0 %691
      %693 = vrot.lane.b32.xlu0 %v267, 109
      %v694 = vpop.permute.xlu0 %693
      %695 = vrot.lane.b32.xlu0 %v266, 109
      %v696 = vpop.permute.xlu0 %695
      %697 = vrot.lane.b32.xlu0 %v268, 109
      %v698 = vpop.permute.xlu0 %697
      %vm699 = vcmask 891904
      %v700 = vsel %vm699, %v692, %v694
      %v701 = vsel %vm699, %v694, %v696
      %v702 = vsel %vm699, %v696, %v698
      %v704 = vsel %vm281, %v690, 0
      %v707 = vsel %vm285, %v700, 0
      %v710 = vsel %vm285, %v701, 0
      %v713 = vsel %vm285, %v702, 0
      %715 = vmatprep.subr.bf16.mxu0 0
      %716 = vmatpush1.bf16.msra.mxu0 0
      %717 = vmatprep.subr.bf16.mxu0 0
      %718 = vmatpush1.bf16.msra.mxu0 0
      %719 = vmatprep.subr.bf16.mxu0 0
      %720 = vmatpush1.bf16.msra.mxu0 0
      %721 = vmatprep.subr.bf16.mxu0 0
      %722 = vmatpush1.bf16.msra.mxu0 0
      %723 = vmatprep.subr.bf16.mxu0 0
      %724 = vmatpush1.bf16.msra.mxu0 0
      %725 = vmatprep.subr.bf16.mxu0 0
      %726 = vmatpush1.bf16.msra.mxu0 0
      %727 = vmatprep.subr.bf16.mxu0 0
      %728 = vmatpush1.bf16.msra.mxu0 0
      %729 = vmatprep.subr.bf16.mxu0 %v710
      %730 = vmatpush1.bf16.msra.mxu0 %v707
      %731 = vmatprep.subr.bf16.mxu0 0
      %732 = vmatpush2.bf16.msra.mxu0 0
      %733 = vmatprep.subr.bf16.mxu0 0
      %734 = vmatpush2.bf16.msra.mxu0 0
      %735 = vmatprep.subr.bf16.mxu0 0
      %736 = vmatpush2.bf16.msra.mxu0 0
      %737 = vmatprep.subr.bf16.mxu0 0
      %738 = vmatpush2.bf16.msra.mxu0 0
      %739 = vmatprep.subr.bf16.mxu0 0
      %740 = vmatpush2.bf16.msra.mxu0 0
      %741 = vmatprep.subr.bf16.mxu0 0
      %742 = vmatpush2.bf16.msra.mxu0 0
      %743 = vmatprep.subr.bf16.mxu0 0
      %744 = vmatpush2.bf16.msra.mxu0 0
      %745 = vmatprep.subr.bf16.mxu0 0
      %746 = vmatpush2.bf16.msra.mxu0 0
      %747 = vmatprep.mubr.bf16.mxu0 0
      %748 = vmatmul.mubr.bf16.gmra.mxu0 %v704
      %v749 = vpop.f32.mrf.mxu0
      %v750 = vadd.f32 0.0, %v749
      %v751 = vpop.f32.mrf.mxu0
      %v752 = vadd.f32 0.0, %v751
      %v753 = vpop.f32.mrf.mxu0
      %v754 = vpop.f32.mrf.mxu0
      %755 = vdwg.mxu0
      %756 = vmatprep.subr.bf16.mxu0 0
      %757 = vmatpush1.bf16.msra.mxu0 0
      %758 = vmatprep.subr.bf16.mxu0 0
      %759 = vmatpush1.bf16.msra.mxu0 0
      %760 = vmatprep.subr.bf16.mxu0 0
      %761 = vmatpush1.bf16.msra.mxu0 0
      %762 = vmatprep.subr.bf16.mxu0 0
      %763 = vmatpush1.bf16.msra.mxu0 0
      %764 = vmatprep.subr.bf16.mxu0 0
      %765 = vmatpush1.bf16.msra.mxu0 0
      %766 = vmatprep.subr.bf16.mxu0 0
      %767 = vmatpush1.bf16.msra.mxu0 0
      %768 = vmatprep.subr.bf16.mxu0 0
      %769 = vmatpush1.bf16.msra.mxu0 0
      %770 = vmatprep.subr.bf16.mxu0 0
      %771 = vmatpush1.bf16.msra.mxu0 %v713
      %772 = vmatprep.subr.bf16.mxu0 0
      %773 = vmatpush2.bf16.msra.mxu0 0
      %774 = vmatprep.subr.bf16.mxu0 0
      %775 = vmatpush2.bf16.msra.mxu0 0
      %776 = vmatprep.subr.bf16.mxu0 0
      %777 = vmatpush2.bf16.msra.mxu0 0
      %778 = vmatprep.subr.bf16.mxu0 0
      %779 = vmatpush2.bf16.msra.mxu0 0
      %780 = vmatprep.subr.bf16.mxu0 0
      %781 = vmatpush2.bf16.msra.mxu0 0
      %782 = vmatprep.subr.bf16.mxu0 0
      %783 = vmatpush2.bf16.msra.mxu0 0
      %784 = vmatprep.subr.bf16.mxu0 0
      %785 = vmatpush2.bf16.msra.mxu0 0
      %786 = vmatprep.subr.bf16.mxu0 0
      %787 = vmatpush2.bf16.msra.mxu0 0
      %788 = vmatprep.mubr.bf16.mxu0 0
      %789 = vmatmul.mubr.bf16.gmra.mxu0 %v704
      %v790 = vpop.f32.mrf.mxu0
      %v791 = vadd.f32 0.0, %v790
      %v792 = vpop.f32.mrf.mxu0
      %v793 = vpop.f32.mrf.mxu0
      %v794 = vpop.f32.mrf.mxu0
      %795 = vdwg.mxu0
      %v796 = vadd.f32 %v686, %v750
      %v797 = vadd.f32 %v687, %v752
      %v798 = vadd.f32 %v688, %v791
      %s799 = scalar_lea.vmem %s1, 20
      %v800 = vld [vmem:[%s799] sm:$0xf]
      %801 = vrot.lane.b32.xlu0 %v259, 108
      %v802 = vpop.permute.xlu0 %801
      %803 = vrot.lane.b32.xlu0 %v267, 108
      %v804 = vpop.permute.xlu0 %803
      %805 = vrot.lane.b32.xlu0 %v266, 108
      %v806 = vpop.permute.xlu0 %805
      %807 = vrot.lane.b32.xlu0 %v268, 108
      %v808 = vpop.permute.xlu0 %807
      %vm809 = vcmask 883712
      %v810 = vsel %vm809, %v802, %v804
      %v811 = vsel %vm809, %v804, %v806
      %v812 = vsel %vm809, %v806, %v808
      %v814 = vsel %vm281, %v800, 0
      %v817 = vsel %vm285, %v810, 0
      %v820 = vsel %vm285, %v811, 0
      %v823 = vsel %vm285, %v812, 0
      %825 = vmatprep.subr.bf16.mxu0 0
      %826 = vmatpush1.bf16.msra.mxu0 0
      %827 = vmatprep.subr.bf16.mxu0 0
      %828 = vmatpush1.bf16.msra.mxu0 0
      %829 = vmatprep.subr.bf16.mxu0 0
      %830 = vmatpush1.bf16.msra.mxu0 0
      %831 = vmatprep.subr.bf16.mxu0 0
      %832 = vmatpush1.bf16.msra.mxu0 0
      %833 = vmatprep.subr.bf16.mxu0 0
      %834 = vmatpush1.bf16.msra.mxu0 0
      %835 = vmatprep.subr.bf16.mxu0 0
      %836 = vmatpush1.bf16.msra.mxu0 0
      %837 = vmatprep.subr.bf16.mxu0 0
      %838 = vmatpush1.bf16.msra.mxu0 0
      %839 = vmatprep.subr.bf16.mxu0 %v820
      %840 = vmatpush1.bf16.msra.mxu0 %v817
      %841 = vmatprep.subr.bf16.mxu0 0
      %842 = vmatpush2.bf16.msra.mxu0 0
      %843 = vmatprep.subr.bf16.mxu0 0
      %844 = vmatpush2.bf16.msra.mxu0 0
      %845 = vmatprep.subr.bf16.mxu0 0
      %846 = vmatpush2.bf16.msra.mxu0 0
      %847 = vmatprep.subr.bf16.mxu0 0
      %848 = vmatpush2.bf16.msra.mxu0 0
      %849 = vmatprep.subr.bf16.mxu0 0
      %850 = vmatpush2.bf16.msra.mxu0 0
      %851 = vmatprep.subr.bf16.mxu0 0
      %852 = vmatpush2.bf16.msra.mxu0 0
      %853 = vmatprep.subr.bf16.mxu0 0
      %854 = vmatpush2.bf16.msra.mxu0 0
      %855 = vmatprep.subr.bf16.mxu0 0
      %856 = vmatpush2.bf16.msra.mxu0 0
      %857 = vmatprep.mubr.bf16.mxu0 0
      %858 = vmatmul.mubr.bf16.gmra.mxu0 %v814
      %v859 = vpop.f32.mrf.mxu0
      %v860 = vadd.f32 0.0, %v859
      %v861 = vpop.f32.mrf.mxu0
      %v862 = vadd.f32 0.0, %v861
      %v863 = vpop.f32.mrf.mxu0
      %v864 = vpop.f32.mrf.mxu0
      %865 = vdwg.mxu0
      %866 = vmatprep.subr.bf16.mxu0 0
      %867 = vmatpush1.bf16.msra.mxu0 0
      %868 = vmatprep.subr.bf16.mxu0 0
      %869 = vmatpush1.bf16.msra.mxu0 0
      %870 = vmatprep.subr.bf16.mxu0 0
      %871 = vmatpush1.bf16.msra.mxu0 0
      %872 = vmatprep.subr.bf16.mxu0 0
      %873 = vmatpush1.bf16.msra.mxu0 0
      %874 = vmatprep.subr.bf16.mxu0 0
      %875 = vmatpush1.bf16.msra.mxu0 0
      %876 = vmatprep.subr.bf16.mxu0 0
      %877 = vmatpush1.bf16.msra.mxu0 0
      %878 = vmatprep.subr.bf16.mxu0 0
      %879 = vmatpush1.bf16.msra.mxu0 0
      %880 = vmatprep.subr.bf16.mxu0 0
      %881 = vmatpush1.bf16.msra.mxu0 %v823
      %882 = vmatprep.subr.bf16.mxu0 0
      %883 = vmatpush2.bf16.msra.mxu0 0
      %884 = vmatprep.subr.bf16.mxu0 0
      %885 = vmatpush2.bf16.msra.mxu0 0
      %886 = vmatprep.subr.bf16.mxu0 0
      %887 = vmatpush2.bf16.msra.mxu0 0
      %888 = vmatprep.subr.bf16.mxu0 0
      %889 = vmatpush2.bf16.msra.mxu0 0
      %890 = vmatprep.subr.bf16.mxu0 0
      %891 = vmatpush2.bf16.msra.mxu0 0
      %892 = vmatprep.subr.bf16.mxu0 0
      %893 = vmatpush2.bf16.msra.mxu0 0
      %894 = vmatprep.subr.bf16.mxu0 0
      %895 = vmatpush2.bf16.msra.mxu0 0
      %896 = vmatprep.subr.bf16.mxu0 0
      %897 = vmatpush2.bf16.msra.mxu0 0
      %898 = vmatprep.mubr.bf16.mxu0 0
      %899 = vmatmul.mubr.bf16.gmra.mxu0 %v814
      %v900 = vpop.f32.mrf.mxu0
      %v901 = vadd.f32 0.0, %v900
      %v902 = vpop.f32.mrf.mxu0
      %v903 = vpop.f32.mrf.mxu0
      %v904 = vpop.f32.mrf.mxu0
      %905 = vdwg.mxu0
      %v906 = vadd.f32 %v796, %v860
      %v907 = vadd.f32 %v797, %v862
      %v908 = vadd.f32 %v798, %v901
      %s909 = scalar_lea.vmem %s1, 24
      %v910 = vld [vmem:[%s909] sm:$0xf]
      %911 = vrot.lane.b32.xlu0 %v259, 92
      %v912 = vpop.permute.xlu0 %911
      %913 = vrot.lane.b32.xlu0 %v267, 92
      %v914 = vpop.permute.xlu0 %913
      %915 = vrot.lane.b32.xlu0 %v266, 92
      %v916 = vpop.permute.xlu0 %915
      %917 = vrot.lane.b32.xlu0 %v268, 92
      %v918 = vpop.permute.xlu0 %917
      %vm919 = vcmask 752640
      %v920 = vsel %vm919, %v912, %v914
      %v921 = vsel %vm919, %v914, %v916
      %v922 = vsel %vm919, %v916, %v918
      %v924 = vsel %vm281, %v910, 0
      %v927 = vsel %vm285, %v920, 0
      %v930 = vsel %vm285, %v921, 0
      %v933 = vsel %vm285, %v922, 0
      %935 = vmatprep.subr.bf16.mxu0 0
      %936 = vmatpush1.bf16.msra.mxu0 0
      %937 = vmatprep.subr.bf16.mxu0 0
      %938 = vmatpush1.bf16.msra.mxu0 0
      %939 = vmatprep.subr.bf16.mxu0 0
      %940 = vmatpush1.bf16.msra.mxu0 0
      %941 = vmatprep.subr.bf16.mxu0 0
      %942 = vmatpush1.bf16.msra.mxu0 0
      %943 = vmatprep.subr.bf16.mxu0 0
      %944 = vmatpush1.bf16.msra.mxu0 0
      %945 = vmatprep.subr.bf16.mxu0 0
      %946 = vmatpush1.bf16.msra.mxu0 0
      %947 = vmatprep.subr.bf16.mxu0 0
      %948 = vmatpush1.bf16.msra.mxu0 0
      %949 = vmatprep.subr.bf16.mxu0 %v930
      %950 = vmatpush1.bf16.msra.mxu0 %v927
      %951 = vmatprep.subr.bf16.mxu0 0
      %952 = vmatpush2.bf16.msra.mxu0 0
      %953 = vmatprep.subr.bf16.mxu0 0
      %954 = vmatpush2.bf16.msra.mxu0 0
      %955 = vmatprep.subr.bf16.mxu0 0
      %956 = vmatpush2.bf16.msra.mxu0 0
      %957 = vmatprep.subr.bf16.mxu0 0
      %958 = vmatpush2.bf16.msra.mxu0 0
      %959 = vmatprep.subr.bf16.mxu0 0
      %960 = vmatpush2.bf16.msra.mxu0 0
      %961 = vmatprep.subr.bf16.mxu0 0
      %962 = vmatpush2.bf16.msra.mxu0 0
      %963 = vmatprep.subr.bf16.mxu0 0
      %964 = vmatpush2.bf16.msra.mxu0 0
      %965 = vmatprep.subr.bf16.mxu0 0
      %966 = vmatpush2.bf16.msra.mxu0 0
      %967 = vmatprep.mubr.bf16.mxu0 0
      %968 = vmatmul.mubr.bf16.gmra.mxu0 %v924
      %v969 = vpop.f32.mrf.mxu0
      %v970 = vadd.f32 0.0, %v969
      %v971 = vpop.f32.mrf.mxu0
      %v972 = vadd.f32 0.0, %v971
      %v973 = vpop.f32.mrf.mxu0
      %v974 = vpop.f32.mrf.mxu0
      %975 = vdwg.mxu0
      %976 = vmatprep.subr.bf16.mxu0 0
      %977 = vmatpush1.bf16.msra.mxu0 0
      %978 = vmatprep.subr.bf16.mxu0 0
      %979 = vmatpush1.bf16.msra.mxu0 0
      %980 = vmatprep.subr.bf16.mxu0 0
      %981 = vmatpush1.bf16.msra.mxu0 0
      %982 = vmatprep.subr.bf16.mxu0 0
      %983 = vmatpush1.bf16.msra.mxu0 0
      %984 = vmatprep.subr.bf16.mxu0 0
      %985 = vmatpush1.bf16.msra.mxu0 0
      %986 = vmatprep.subr.bf16.mxu0 0
      %987 = vmatpush1.bf16.msra.mxu0 0
      %988 = vmatprep.subr.bf16.mxu0 0
      %989 = vmatpush1.bf16.msra.mxu0 0
      %990 = vmatprep.subr.bf16.mxu0 0
      %991 = vmatpush1.bf16.msra.mxu0 %v933
      %992 = vmatprep.subr.bf16.mxu0 0
      %993 = vmatpush2.bf16.msra.mxu0 0
      %994 = vmatprep.subr.bf16.mxu0 0
      %995 = vmatpush2.bf16.msra.mxu0 0
      %996 = vmatprep.subr.bf16.mxu0 0
      %997 = vmatpush2.bf16.msra.mxu0 0
      %998 = vmatprep.subr.bf16.mxu0 0
      %999 = vmatpush2.bf16.msra.mxu0 0
      %1000 = vmatprep.subr.bf16.mxu0 0
      %1001 = vmatpush2.bf16.msra.mxu0 0
      %1002 = vmatprep.subr.bf16.mxu0 0
      %1003 = vmatpush2.bf16.msra.mxu0 0
      %1004 = vmatprep.subr.bf16.mxu0 0
      %1005 = vmatpush2.bf16.msra.mxu0 0
      %1006 = vmatprep.subr.bf16.mxu0 0
      %1007 = vmatpush2.bf16.msra.mxu0 0
      %1008 = vmatprep.mubr.bf16.mxu0 0
      %1009 = vmatmul.mubr.bf16.gmra.mxu0 %v924
      %v1010 = vpop.f32.mrf.mxu0
      %v1011 = vadd.f32 0.0, %v1010
      %v1012 = vpop.f32.mrf.mxu0
      %v1013 = vpop.f32.mrf.mxu0
      %v1014 = vpop.f32.mrf.mxu0
      %1015 = vdwg.mxu0
      %v1016 = vadd.f32 %v906, %v970
      %v1017 = vadd.f32 %v907, %v972
      %v1018 = vadd.f32 %v908, %v1011
      %s1019 = scalar_lea.vmem %s1, 28
      %v1020 = vld [vmem:[%s1019] sm:$0xf]
      %1021 = vrot.lane.b32.xlu0 %v259, 91
      %v1022 = vpop.permute.xlu0 %1021
      %1023 = vrot.lane.b32.xlu0 %v267, 91
      %v1024 = vpop.permute.xlu0 %1023
      %1025 = vrot.lane.b32.xlu0 %v266, 91
      %v1026 = vpop.permute.xlu0 %1025
      %1027 = vrot.lane.b32.xlu0 %v268, 91
      %v1028 = vpop.permute.xlu0 %1027
      %vm1029 = vcmask 744448
      %v1030 = vsel %vm1029, %v1022, %v1024
      %v1031 = vsel %vm1029, %v1024, %v1026
      %v1032 = vsel %vm1029, %v1026, %v1028
      %v1034 = vsel %vm281, %v1020, 0
      %v1037 = vsel %vm285, %v1030, 0
      %v1040 = vsel %vm285, %v1031, 0
      %v1043 = vsel %vm285, %v1032, 0
      %1045 = vmatprep.subr.bf16.mxu0 0
      %1046 = vmatpush1.bf16.msra.mxu0 0
      %1047 = vmatprep.subr.bf16.mxu0 0
      %1048 = vmatpush1.bf16.msra.mxu0 0
      %1049 = vmatprep.subr.bf16.mxu0 0
      %1050 = vmatpush1.bf16.msra.mxu0 0
      %1051 = vmatprep.subr.bf16.mxu0 0
      %1052 = vmatpush1.bf16.msra.mxu0 0
      %1053 = vmatprep.subr.bf16.mxu0 0
      %1054 = vmatpush1.bf16.msra.mxu0 0
      %1055 = vmatprep.subr.bf16.mxu0 0
      %1056 = vmatpush1.bf16.msra.mxu0 0
      %1057 = vmatprep.subr.bf16.mxu0 0
      %1058 = vmatpush1.bf16.msra.mxu0 0
      %1059 = vmatprep.subr.bf16.mxu0 %v1040
      %1060 = vmatpush1.bf16.msra.mxu0 %v1037
      %1061 = vmatprep.subr.bf16.mxu0 0
      %1062 = vmatpush2.bf16.msra.mxu0 0
      %1063 = vmatprep.subr.bf16.mxu0 0
      %1064 = vmatpush2.bf16.msra.mxu0 0
      %1065 = vmatprep.subr.bf16.mxu0 0
      %1066 = vmatpush2.bf16.msra.mxu0 0
      %1067 = vmatprep.subr.bf16.mxu0 0
      %1068 = vmatpush2.bf16.msra.mxu0 0
      %1069 = vmatprep.subr.bf16.mxu0 0
      %1070 = vmatpush2.bf16.msra.mxu0 0
      %1071 = vmatprep.subr.bf16.mxu0 0
      %1072 = vmatpush2.bf16.msra.mxu0 0
      %1073 = vmatprep.subr.bf16.mxu0 0
      %1074 = vmatpush2.bf16.msra.mxu0 0
      %1075 = vmatprep.subr.bf16.mxu0 0
      %1076 = vmatpush2.bf16.msra.mxu0 0
      %1077 = vmatprep.mubr.bf16.mxu0 0
      %1078 = vmatmul.mubr.bf16.gmra.mxu0 %v1034
      %v1079 = vpop.f32.mrf.mxu0
      %v1080 = vadd.f32 0.0, %v1079
      %v1081 = vpop.f32.mrf.mxu0
      %v1082 = vadd.f32 0.0, %v1081
      %v1083 = vpop.f32.mrf.mxu0
      %v1084 = vpop.f32.mrf.mxu0
      %1085 = vdwg.mxu0
      %1086 = vmatprep.subr.bf16.mxu0 0
      %1087 = vmatpush1.bf16.msra.mxu0 0
      %1088 = vmatprep.subr.bf16.mxu0 0
      %1089 = vmatpush1.bf16.msra.mxu0 0
      %1090 = vmatprep.subr.bf16.mxu0 0
      %1091 = vmatpush1.bf16.msra.mxu0 0
      %1092 = vmatprep.subr.bf16.mxu0 0
      %1093 = vmatpush1.bf16.msra.mxu0 0
      %1094 = vmatprep.subr.bf16.mxu0 0
      %1095 = vmatpush1.bf16.msra.mxu0 0
      %1096 = vmatprep.subr.bf16.mxu0 0
      %1097 = vmatpush1.bf16.msra.mxu0 0
      %1098 = vmatprep.subr.bf16.mxu0 0
      %1099 = vmatpush1.bf16.msra.mxu0 0
      %1100 = vmatprep.subr.bf16.mxu0 0
      %1101 = vmatpush1.bf16.msra.mxu0 %v1043
      %1102 = vmatprep.subr.bf16.mxu0 0
      %1103 = vmatpush2.bf16.msra.mxu0 0
      %1104 = vmatprep.subr.bf16.mxu0 0
      %1105 = vmatpush2.bf16.msra.mxu0 0
      %1106 = vmatprep.subr.bf16.mxu0 0
      %1107 = vmatpush2.bf16.msra.mxu0 0
      %1108 = vmatprep.subr.bf16.mxu0 0
      %1109 = vmatpush2.bf16.msra.mxu0 0
      %1110 = vmatprep.subr.bf16.mxu0 0
      %1111 = vmatpush2.bf16.msra.mxu0 0
      %1112 = vmatprep.subr.bf16.mxu0 0
      %1113 = vmatpush2.bf16.msra.mxu0 0
      %1114 = vmatprep.subr.bf16.mxu0 0
      %1115 = vmatpush2.bf16.msra.mxu0 0
      %1116 = vmatprep.subr.bf16.mxu0 0
      %1117 = vmatpush2.bf16.msra.mxu0 0
      %1118 = vmatprep.mubr.bf16.mxu0 0
      %1119 = vmatmul.mubr.bf16.gmra.mxu0 %v1034
      %v1120 = vpop.f32.mrf.mxu0
      %v1121 = vadd.f32 0.0, %v1120
      %v1122 = vpop.f32.mrf.mxu0
      %v1123 = vpop.f32.mrf.mxu0
      %v1124 = vpop.f32.mrf.mxu0
      %1125 = vdwg.mxu0
      %v1126 = vadd.f32 %v1016, %v1080
      %v1127 = vadd.f32 %v1017, %v1082
      %v1128 = vadd.f32 %v1018, %v1121
      %s1129 = scalar_lea.vmem %s1, 32
      %v1130 = vld [vmem:[%s1129] sm:$0xf]
      %1131 = vrot.lane.b32.xlu0 %v259, 90
      %v1132 = vpop.permute.xlu0 %1131
      %1133 = vrot.lane.b32.xlu0 %v267, 90
      %v1134 = vpop.permute.xlu0 %1133
      %1135 = vrot.lane.b32.xlu0 %v266, 90
      %v1136 = vpop.permute.xlu0 %1135
      %1137 = vrot.lane.b32.xlu0 %v268, 90
      %v1138 = vpop.permute.xlu0 %1137
      %vm1139 = vcmask 736256
      %v1140 = vsel %vm1139, %v1132, %v1134
      %v1141 = vsel %vm1139, %v1134, %v1136
      %v1142 = vsel %vm1139, %v1136, %v1138
      %v1144 = vsel %vm281, %v1130, 0
      %v1147 = vsel %vm285, %v1140, 0
      %v1150 = vsel %vm285, %v1141, 0
      %v1153 = vsel %vm285, %v1142, 0
      %1155 = vmatprep.subr.bf16.mxu0 0
      %1156 = vmatpush1.bf16.msra.mxu0 0
      %1157 = vmatprep.subr.bf16.mxu0 0
      %1158 = vmatpush1.bf16.msra.mxu0 0
      %1159 = vmatprep.subr.bf16.mxu0 0
      %1160 = vmatpush1.bf16.msra.mxu0 0
      %1161 = vmatprep.subr.bf16.mxu0 0
      %1162 = vmatpush1.bf16.msra.mxu0 0
      %1163 = vmatprep.subr.bf16.mxu0 0
      %1164 = vmatpush1.bf16.msra.mxu0 0
      %1165 = vmatprep.subr.bf16.mxu0 0
      %1166 = vmatpush1.bf16.msra.mxu0 0
      %1167 = vmatprep.subr.bf16.mxu0 0
      %1168 = vmatpush1.bf16.msra.mxu0 0
      %1169 = vmatprep.subr.bf16.mxu0 %v1150
      %1170 = vmatpush1.bf16.msra.mxu0 %v1147
      %1171 = vmatprep.subr.bf16.mxu0 0
      %1172 = vmatpush2.bf16.msra.mxu0 0
      %1173 = vmatprep.subr.bf16.mxu0 0
      %1174 = vmatpush2.bf16.msra.mxu0 0
      %1175 = vmatprep.subr.bf16.mxu0 0
      %1176 = vmatpush2.bf16.msra.mxu0 0
      %1177 = vmatprep.subr.bf16.mxu0 0
      %1178 = vmatpush2.bf16.msra.mxu0 0
      %1179 = vmatprep.subr.bf16.mxu0 0
      %1180 = vmatpush2.bf16.msra.mxu0 0
      %1181 = vmatprep.subr.bf16.mxu0 0
      %1182 = vmatpush2.bf16.msra.mxu0 0
      %1183 = vmatprep.subr.bf16.mxu0 0
      %1184 = vmatpush2.bf16.msra.mxu0 0
      %1185 = vmatprep.subr.bf16.mxu0 0
      %1186 = vmatpush2.bf16.msra.mxu0 0
      %1187 = vmatprep.mubr.bf16.mxu0 0
      %1188 = vmatmul.mubr.bf16.gmra.mxu0 %v1144
      %v1189 = vpop.f32.mrf.mxu0
      %v1190 = vadd.f32 0.0, %v1189
      %v1191 = vpop.f32.mrf.mxu0
      %v1192 = vadd.f32 0.0, %v1191
      %v1193 = vpop.f32.mrf.mxu0
      %v1194 = vpop.f32.mrf.mxu0
      %1195 = vdwg.mxu0
      %1196 = vmatprep.subr.bf16.mxu0 0
      %1197 = vmatpush1.bf16.msra.mxu0 0
      %1198 = vmatprep.subr.bf16.mxu0 0
      %1199 = vmatpush1.bf16.msra.mxu0 0
      %1200 = vmatprep.subr.bf16.mxu0 0
      %1201 = vmatpush1.bf16.msra.mxu0 0
      %1202 = vmatprep.subr.bf16.mxu0 0
      %1203 = vmatpush1.bf16.msra.mxu0 0
      %1204 = vmatprep.subr.bf16.mxu0 0
      %1205 = vmatpush1.bf16.msra.mxu0 0
      %1206 = vmatprep.subr.bf16.mxu0 0
      %1207 = vmatpush1.bf16.msra.mxu0 0
      %1208 = vmatprep.subr.bf16.mxu0 0
      %1209 = vmatpush1.bf16.msra.mxu0 0
      %1210 = vmatprep.subr.bf16.mxu0 0
      %1211 = vmatpush1.bf16.msra.mxu0 %v1153
      %1212 = vmatprep.subr.bf16.mxu0 0
      %1213 = vmatpush2.bf16.msra.mxu0 0
      %1214 = vmatprep.subr.bf16.mxu0 0
      %1215 = vmatpush2.bf16.msra.mxu0 0
      %1216 = vmatprep.subr.bf16.mxu0 0
      %1217 = vmatpush2.bf16.msra.mxu0 0
      %1218 = vmatprep.subr.bf16.mxu0 0
      %1219 = vmatpush2.bf16.msra.mxu0 0
      %1220 = vmatprep.subr.bf16.mxu0 0
      %1221 = vmatpush2.bf16.msra.mxu0 0
      %1222 = vmatprep.subr.bf16.mxu0 0
      %1223 = vmatpush2.bf16.msra.mxu0 0
      %1224 = vmatprep.subr.bf16.mxu0 0
      %1225 = vmatpush2.bf16.msra.mxu0 0
      %1226 = vmatprep.subr.bf16.mxu0 0
      %1227 = vmatpush2.bf16.msra.mxu0 0
      %1228 = vmatprep.mubr.bf16.mxu0 0
      %1229 = vmatmul.mubr.bf16.gmra.mxu0 %v1144
      %v1230 = vpop.f32.mrf.mxu0
      %v1231 = vadd.f32 0.0, %v1230
      %v1232 = vpop.f32.mrf.mxu0
      %v1233 = vpop.f32.mrf.mxu0
      %v1234 = vpop.f32.mrf.mxu0
      %1235 = vdwg.mxu0
      %v1236 = vadd.f32 %v1126, %v1190
      %v1237 = vadd.f32 %v1127, %v1192
      %v1238 = vadd.f32 %v1128, %v1231
      %v1239 = vpack.c.bf16 %v1236, %v1236
      %v1240 = vpack.c.bf16 %v1237, %v1237
      %v1241 = vpack.c.bf16 %v1238, %v1238
      %v1245 = vunpack.c.l.b16 %v1239
      %v1246 = vunpack.c.l.b16 %v1240
      %v1247 = vunpack.c.l.b16 %v1241
      %v1248 = vpack.c.b16 %v1246, %v1245
      %v1249 = vpack.c.b16 %v1247, %v1247
      %1252 = vst [vmem:[%s237] sm:$0xff] %v1248
      %1253 = vst [vmem:[%s237 + $0x8] sm:$0xf] %v1249
      %v1254 = vld [vmem:[%s2] sm:$0x7]
      %v1256 = vlaneseq
      %v1257 = vshrl.u32 %v1256, 7
      %v1258 = vsub.s32 0, %v1257
      %v1259 = vrot.slane %v1254, %v1258
      %v1260 = vlaneseq
      %v1261 = vshrl.u32 %v1260, 7
      %v1262 = vsub.s32 1, %v1261
      %v1263 = vrot.slane %v1254, %v1262
      %v1264 = vlaneseq
      %v1265 = vshrl.u32 %v1264, 7
      %v1266 = vsub.s32 2, %v1265
      %v1267 = vrot.slane %v1254, %v1266
      %v1271 = vmul.f32 %v1236, %v1259
      %v1272 = vmul.f32 %v1237, %v1263
      %v1273 = vmul.f32 %v1238, %v1267
      %v1274 = vadd.f32 %v1271, %v1272
      %v1275 = vadd.f32 %v1274, %v1273
      %1276 = vadd.xlane.f32.xlu0 %v1275
      %v1277 = vpop.xlane.xlu0 %1276
      %vm1278 = vcmask 7168
      %1279 = vst.msk [vmem:[%s241] sm:$0xff] %vm1278, %v1277
      %v1280 = vmul.f32 %v1271, %v1236
      %v1281 = vmul.f32 %v1272, %v1237
      %v1282 = vmul.f32 %v1273, %v1238
      %v1283 = vadd.f32 %v1280, %v1281
      %v1284 = vadd.f32 %v1283, %v1282
      %1285 = vadd.xlane.f32.xlu0 %v1284
      %v1286 = vpop.xlane.xlu0 %1285
      %1287 = vst.msk [vmem:[%s245] sm:$0xff] %vm1278, %v1286
      %p1288 = scmp.lt.s32.totalorder %s17, 1
      %s1289 = scalar_select %p1288, %s17, 1
      %s1290 = smul.addr %s1289, 3
      %s1291 = smul.addr %s1290, 4
      %s1292 = scalar_lea.vmem %s3, %s1291
      %p1293 = scmp.lt.s32.totalorder %s17, 1
      %s1294 = scalar_select %p1293, %s17, 1
      %s1295 = smul.addr %s1294, 8
      %s1296 = scalar_lea.vmem %s4, %s1295
      %p1297 = scmp.lt.s32.totalorder %s17, 1
      %s1298 = scalar_select %p1297, %s17, 1
      %s1299 = smul.addr %s1298, 8
      %s1300 = scalar_lea.vmem %s5, %s1299
      // Predicated region
      $region33: #{a_call__.4} parent=31 // pred_check
        %p1301 = pneg %p103
      $region34: #{a_call__.4} parent=31 // pred_check_branch
        %1303 = sbr.rel (%p1301) target = $region36
      $region35: #{a_call__.4} parent=31 // pred_region
        _
      $region36: #{a_call__.4} parent=31 // pred_fallthru
        _
      // Predicated region
      $region37: #{a_call__.4} parent=31 // pred_check
        %p1304 = pneg %p129
      $region38: #{a_call__.4} parent=31 // pred_check_branch
        %1306 = sbr.rel (%p1304) target = $region40
      $region39: #{a_call__.4} parent=31 // pred_region
        _
      $region40: #{a_call__.4} parent=31 // pred_fallthru
        _
      // Predicated region
      $region41: #{a_call__.4} parent=31 // pred_check
        %p1307 = pneg %p155
      $region42: #{a_call__.4} parent=31 // pred_check_branch
        %1309 = sbr.rel (%p1307) target = $region44
      $region43: #{a_call__.4} parent=31 // pred_region
        _
      $region44: #{a_call__.4} parent=31 // pred_fallthru
        _
    $region32: #{a_call__.4} parent=5 // pred_fallthru
      _
    %p1310 = scmp.le.s32.totalorder 2, %s12
    // Predicated region
    $region45: #{a_call__.4} parent=5 // pred_check
      %p1311 = pneg %p1310
    $region46: #{a_call__.4} parent=5 // pred_check_branch
      %1313 = sbr.rel (%p1311) target = $region48
    $region47: #{a_call__.4} parent=5 // pred_region
      %s1314 = ssub.s32 %s12, 2
      // Predicated region
      $region49: #{a_call__.4} parent=47 // pred_check
        %p1315 = pneg %p109
      $region50: #{a_call__.4} parent=47 // pred_check_branch
        %1317 = sbr.rel (%p1315) target = $region52
      $region51: #{a_call__.4} parent=47 // pred_region
        %p1318 = scmp.lt.s32.totalorder %s18, 1
        %s1319 = scalar_select %p1318, %s18, 1
        %s1320 = smul.addr %s1319, 3
        %s1321 = smul.addr %s1320, 4
        %s1322 = scalar_lea.vmem %s3, %s1321
      $region52: #{a_call__.4} parent=47 // pred_fallthru
        _
      // Predicated region
      $region53: #{a_call__.4} parent=47 // pred_check
        %p1323 = pneg %p135
      $region54: #{a_call__.4} parent=47 // pred_check_branch
        %1325 = sbr.rel (%p1323) target = $region56
      $region55: #{a_call__.4} parent=47 // pred_region
        %p1326 = scmp.lt.s32.totalorder %s18, 1
        %s1327 = scalar_select %p1326, %s18, 1
        %s1328 = smul.addr %s1327, 8
        %s1329 = scalar_lea.vmem %s4, %s1328
      $region56: #{a_call__.4} parent=47 // pred_fallthru
        _
      // Predicated region
      $region57: #{a_call__.4} parent=47 // pred_check
        %p1330 = pneg %p161
      $region58: #{a_call__.4} parent=47 // pred_check_branch
        %1332 = sbr.rel (%p1330) target = $region60
      $region59: #{a_call__.4} parent=47 // pred_region
        %p1333 = scmp.lt.s32.totalorder %s18, 1
        %s1334 = scalar_select %p1333, %s18, 1
        %s1335 = smul.addr %s1334, 8
        %s1336 = scalar_lea.vmem %s5, %s1335
      $region60: #{a_call__.4} parent=47 // pred_fallthru
        _
    $region48: #{a_call__.4} parent=5 // pred_fallthru
      _
  $region6: #{a_call__.4} parent=0 // loop_footer
    %s16 = sadd.s32 1, %s12
  $region7: #{a_call__.4} parent=0 // loop_footer_branch
    %11 = sbr.rel target = $region3
  $region8: #{a_call__.4} parent=0 // loop_exit
    _

// kernel: a_call__.7
$region0: #{a_call__.7}
  #allocation0 [shape = 'u32[]', space=smem, size = 0x4, offset = 0x4, fixed_abs, tag = 'smem constant byte address 0x4 - core index']
  #allocation1 [shape = 'u32[144,128]{1,0:T(1,128)}', space=vmem, size = 0x12000, scoped, tag = 'internal scratch']
  %s0 = inlined_call_operand.vmem [shape: bf16[2,8,384], index: 0, kind: input, shape index: {}]
  %s1 = inlined_call_operand.vmem [shape: f32[8,1], index: 1, kind: input, shape index: {}]
  %s2 = inlined_call_operand.vmem [shape: f32[8,1], index: 2, kind: input, shape index: {}]
  %s3 = inlined_call_operand.vmem [shape: f32[2,8,384], index: 3, kind: output, shape index: {}]
  %s4 = sld [smem:[#allocation0]]
  $region45: #{a_call__.7} parent=0
    _
  %s6 = ssub.s32 1, %s4
  %s7 = scalar_select 0, %s6, %s4
  loop: start=0, step=1, limit=4
  $region2: #{a_call__.7} parent=0 // loop_pre_header
    _
  $region3: #{a_call__.7} parent=0 // loop_header
    %s9 = sphi 0, %s13
    %p10 = scmp.ge.s32.totalorder %s9, 4
    %s19 = sphi 0, %s21
    %s22 = sphi 0, %s19
    %s23 = sphi 0, %s22
    %s39 = sphi 0, %s23
    %s43 = sphi 0, %s43
    %s45 = sphi 0, %s43
    %s46 = sphi 0, %s45
    %s60 = sphi 0, %s46
    %s64 = sphi 0, %s64
    %s66 = sphi 0, %s64
    %s67 = sphi 0, %s66
    %s81 = sphi 0, %s67
    %s87 = sphi 0, %s89
    %s90 = sphi 0, %s87
    %s91 = sphi 0, %s90
    %s107 = sphi 0, %s91
  $region4: #{a_call__.7} parent=0 // loop_header_branch
    %12 = sbr.rel (%p10) target = $region8
  $region5: #{a_call__.7} parent=0 // loop_body
    %s14 = ssub.s32 %s9, 1
    %s15 = ssub.s32 %s9, 2
    %s16 = sadd.s32 %s9, 1
    %s17 = ssub.s32 %s9, %s16
    %p18 = scmp.eq.s32.totalorder %s17, 0
    %s20 = sadd.s32 %s19, 1
    %s21 = scalar_select %p18, %s19, %s20
    %p24 = pneg %p18
    %p25 = scmp.eq.s32.totalorder %s9, 1
    %p26 = por %p24, %p25
    %p27 = scmp.ne.s32.totalorder %s19, %s22
    %p28 = scmp.eq.s32.totalorder %s9, 0
    %p29 = por %p27, %p28
    %p30 = scmp.ne.s32.totalorder %s19, %s22
    %p31 = scmp.eq.s32.totalorder %s14, 1
    %p32 = por %p30, %p31
    %p33 = scmp.ne.s32.totalorder %s22, %s23
    %p34 = scmp.eq.s32.totalorder %s14, 0
    %p35 = por %p33, %p34
    %p36 = scmp.ne.s32.totalorder %s22, %s23
    %p37 = scmp.eq.s32.totalorder %s15, 1
    %p38 = por %p36, %p37
    %p40 = scmp.ne.s32.totalorder %s23, %s39
    %p41 = scmp.eq.s32.totalorder %s15, 0
    %p42 = por %p40, %p41
    %s44 = sadd.s32 %s43, 1
    %p47 = scmp.eq.s32.totalorder %s9, 1
    %p48 = scmp.ne.s32.totalorder %s43, %s45
    %p49 = scmp.eq.s32.totalorder %s9, 0
    %p50 = por %p48, %p49
    %p51 = scmp.ne.s32.totalorder %s43, %s45
    %p52 = scmp.eq.s32.totalorder %s14, 1
    %p53 = por %p51, %p52
    %p54 = scmp.ne.s32.totalorder %s45, %s46
    %p55 = scmp.eq.s32.totalorder %s14, 0
    %p56 = por %p54, %p55
    %p57 = scmp.ne.s32.totalorder %s45, %s46
    %p58 = scmp.eq.s32.totalorder %s15, 1
    %p59 = por %p57, %p58
    %p61 = scmp.ne.s32.totalorder %s46, %s60
    %p62 = scmp.eq.s32.totalorder %s15, 0
    %p63 = por %p61, %p62
    %s65 = sadd.s32 %s64, 1
    %p68 = scmp.eq.s32.totalorder %s9, 1
    %p69 = scmp.ne.s32.totalorder %s64, %s66
    %p70 = scmp.eq.s32.totalorder %s9, 0
    %p71 = por %p69, %p70
    %p72 = scmp.ne.s32.totalorder %s64, %s66
    %p73 = scmp.eq.s32.totalorder %s14, 1
    %p74 = por %p72, %p73
    %p75 = scmp.ne.s32.totalorder %s66, %s67
    %p76 = scmp.eq.s32.totalorder %s14, 0
    %p77 = por %p75, %p76
    %p78 = scmp.ne.s32.totalorder %s66, %s67
    %p79 = scmp.eq.s32.totalorder %s15, 1
    %p80 = por %p78, %p79
    %p82 = scmp.ne.s32.totalorder %s67, %s81
    %p83 = scmp.eq.s32.totalorder %s15, 0
    %p84 = por %p82, %p83
    %s85 = ssub.s32 %s9, %s16
    %p86 = scmp.eq.s32.totalorder %s85, 0
    %s88 = sadd.s32 %s87, 1
    %s89 = scalar_select %p86, %s87, %s88
    %p92 = pneg %p86
    %p93 = scmp.eq.s32.totalorder %s9, 1
    %p94 = por %p92, %p93
    %p95 = scmp.ne.s32.totalorder %s87, %s90
    %p96 = scmp.eq.s32.totalorder %s9, 0
    %p97 = por %p95, %p96
    %p98 = scmp.ne.s32.totalorder %s87, %s90
    %p99 = scmp.eq.s32.totalorder %s14, 1
    %p100 = por %p98, %p99
    %p101 = scmp.ne.s32.totalorder %s90, %s91
    %p102 = scmp.eq.s32.totalorder %s14, 0
    %p103 = por %p101, %p102
    %p104 = scmp.ne.s32.totalorder %s90, %s91
    %p105 = scmp.eq.s32.totalorder %s15, 1
    %p106 = por %p104, %p105
    %p108 = scmp.ne.s32.totalorder %s91, %s107
    %p109 = scmp.eq.s32.totalorder %s15, 0
    %p110 = por %p108, %p109
    %p111 = scmp.le.s32.totalorder 1, %s9
    %p112 = scmp.lt.s32.totalorder %s9, 3
    %p113 = pnand %p111, %p112
    %p114 = pneg %p113
    // Predicated region
    $region9: #{a_call__.7} parent=5 // pred_check
      _
    $region10: #{a_call__.7} parent=5 // pred_check_branch
      %116 = sbr.rel (%p113) target = $region12
    $region11: #{a_call__.7} parent=5 // pred_region
      %s117 = ssub.s32 %s9, 1
      // Predicated region
      $region13: #{a_call__.7} parent=11 // pred_check
        %p118 = pneg %p56
      $region14: #{a_call__.7} parent=11 // pred_check_branch
        %120 = sbr.rel (%p118) target = $region16
      $region15: #{a_call__.7} parent=11 // pred_region
        _
      $region16: #{a_call__.7} parent=11 // pred_fallthru
        _
      // Predicated region
      $region17: #{a_call__.7} parent=11 // pred_check
        %p121 = pneg %p77
      $region18: #{a_call__.7} parent=11 // pred_check_branch
        %123 = sbr.rel (%p121) target = $region20
      $region19: #{a_call__.7} parent=11 // pred_region
        _
      $region20: #{a_call__.7} parent=11 // pred_fallthru
        _
    $region12: #{a_call__.7} parent=5 // pred_fallthru
      _
    %p124 = scmp.lt.s32.totalorder %s9, 2
    // Predicated region
    $region21: #{a_call__.7} parent=5 // pred_check
      %p125 = pneg %p124
    $region22: #{a_call__.7} parent=5 // pred_check_branch
      %127 = sbr.rel (%p125) target = $region24
    $region23: #{a_call__.7} parent=5 // pred_region
      // Predicated region
      $region25: #{a_call__.7} parent=23 // pred_check
        %p128 = pneg %p29
      $region26: #{a_call__.7} parent=23 // pred_check_branch
        %130 = sbr.rel (%p128) target = $region28
      $region27: #{a_call__.7} parent=23 // pred_region
        %p131 = scmp.lt.s32.totalorder %s9, 1
        %s132 = scalar_select %p131, %s9, 1
        %s133 = smul.addr %s132, 3
        %s134 = smul.addr %s133, 4
        %s135 = scalar_lea.vmem %s0, %s134
      $region28: #{a_call__.7} parent=23 // pred_fallthru
        _
    $region24: #{a_call__.7} parent=5 // pred_fallthru
      _
    %p136 = scmp.le.s32.totalorder 1, %s9
    %p137 = scmp.lt.s32.totalorder %s9, 3
    %p138 = pnand %p136, %p137
    %p139 = pneg %p138
    // Predicated region
    $region29: #{a_call__.7} parent=5 // pred_check
      _
    $region30: #{a_call__.7} parent=5 // pred_check_branch
      %141 = sbr.rel (%p138) target = $region32
    $region31: #{a_call__.7} parent=5 // pred_region
      %s142 = ssub.s32 %s9, 1
      %p143 = scmp.lt.s32.totalorder %s14, 1
      %s144 = scalar_select %p143, %s14, 1
      %s145 = smul.addr %s144, 3
      %s146 = smul.addr %s145, 4
      %s147 = scalar_lea.vmem %s0, %s146
      %p148 = pneg %p35
      %p149 = pneg %p32
      %p150 = pneg %p56
      %p151 = pneg %p53
      %p152 = pneg %p77
      %p153 = pneg %p74
      %p154 = pneg %p103
      %p155 = pneg %p100
      %p156 = scmp.lt.s32.totalorder %s14, 1
      %s157 = scalar_select %p156, %s14, 1
      %s158 = smul.addr %s157, 3
      %s159 = smul.addr %s158, 8
      %s160 = scalar_lea.vmem %s3, %s159
      %p161 = scmp.lt.s32.totalorder %s14, 1
      %s162 = scalar_select %p161, %s14, 1
      %s163 = smul.addr %s162, 3
      %s164 = smul.addr %s163, 4
      %s165 = scalar_lea.vmem %s0, %s164
      %p166 = scmp.lt.s32.totalorder %s14, 1
      %s167 = scalar_select %p166, %s14, 1
      %s168 = smul.addr %s167, 3
      %s169 = smul.addr %s168, 8
      %s170 = scalar_lea.vmem %s3, %s169
      %v171 = vld [vmem:[%s165] sm:$0xff]
      %v172 = vld [vmem:[%s165 + $0x8] sm:$0xf]
      %v173 = vunpack.c.l.bf16 %v171
      %v174 = vunpack.c.h.bf16 %v171
      %v175 = vunpack.c.l.bf16 %v172
      %v176 = vld [vmem:[%s1] sm:$0xff]
      %178 = vset.pattern.permute.xlu0 0
      %179 = vperm.xlu0 %178, %v176
      %v180 = vpop.permute.xlu0 %179
      %v182 = vmul.f32 %v173, %v180
      %v183 = vmul.f32 %v174, %v180
      %v184 = vmul.f32 %v175, %v180
      %v185 = vld [vmem:[%s2] sm:$0xff]
      %187 = vset.pattern.permute.xlu0 0
      %188 = vperm.xlu0 %187, %v185
      %v189 = vpop.permute.xlu0 %188
      %v191 = vadd.f32 %v182, %v189
      %v192 = vadd.f32 %v183, %v189
      %v193 = vadd.f32 %v184, %v189
      %vm194 = vcmp.gt.f32.partialorder %v191, 0.0
      %vm195 = vcmp.gt.f32.partialorder %v192, 0.0
      %vm196 = vcmp.gt.f32.partialorder %v193, 0.0
      %v197 = vmul.f32 %v191, 0.01
      %v198 = vmul.f32 %v192, 0.01
      %v199 = vmul.f32 %v193, 0.01
      %v200 = vsel %vm194, %v191, %v197
      %v201 = vsel %vm195, %v192, %v198
      %v202 = vsel %vm196, %v193, %v199
      %203 = vst [vmem:[%s170] sm:$0xff] %v200
      %204 = vst [vmem:[%s170 + $0x8] sm:$0xff] %v201
      %205 = vst [vmem:[%s170 + $0x10] sm:$0xff] %v202
      %p206 = scmp.lt.s32.totalorder %s14, 1
      %s207 = scalar_select %p206, %s14, 1
      %s208 = smul.addr %s207, 3
      %s209 = smul.addr %s208, 8
      %s210 = scalar_lea.vmem %s3, %s209
      // Predicated region
      $region33: #{a_call__.7} parent=31 // pred_check
        %p211 = pneg %p100
      $region34: #{a_call__.7} parent=31 // pred_check_branch
        %213 = sbr.rel (%p211) target = $region36
      $region35: #{a_call__.7} parent=31 // pred_region
        _
      $region36: #{a_call__.7} parent=31 // pred_fallthru
        _
    $region32: #{a_call__.7} parent=5 // pred_fallthru
      _
    %p214 = scmp.le.s32.totalorder 2, %s9
    // Predicated region
    $region37: #{a_call__.7} parent=5 // pred_check
      %p215 = pneg %p214
    $region38: #{a_call__.7} parent=5 // pred_check_branch
      %217 = sbr.rel (%p215) target = $region40
    $region39: #{a_call__.7} parent=5 // pred_region
      %s218 = ssub.s32 %s9, 2
      // Predicated region
      $region41: #{a_call__.7} parent=39 // pred_check
        %p219 = pneg %p106
      $region42: #{a_call__.7} parent=39 // pred_check_branch
        %221 = sbr.rel (%p219) target = $region44
      $region43: #{a_call__.7} parent=39 // pred_region
        %p222 = scmp.lt.s32.totalorder %s15, 1
        %s223 = scalar_select %p222, %s15, 1
        %s224 = smul.addr %s223, 3
        %s225 = smul.addr %s224, 8
        %s226 = scalar_lea.vmem %s3, %s225
      $region44: #{a_call__.7} parent=39 // pred_fallthru
        _
    $region40: #{a_call__.7} parent=5 // pred_fallthru
      _
  $region6: #{a_call__.7} parent=0 // loop_footer
    %s13 = sadd.s32 1, %s9
  $region7: #{a_call__.7} parent=0 // loop_footer_branch
    %8 = sbr.rel target = $region3
  $region8: #{a_call__.7} parent=0 // loop_exit
    _

// kernel: a_call__.6
$region0: #{a_call__.6}
  #allocation0 [shape = 'u32[]', space=smem, size = 0x4, offset = 0x4, fixed_abs, tag = 'smem constant byte address 0x4 - core index']
  #allocation1 [shape = 'u32[144,128]{1,0:T(1,128)}', space=vmem, size = 0x12000, scoped, tag = 'internal scratch']
  %s0 = inlined_call_operand.vmem [shape: bf16[2,8,512], index: 0, kind: input, shape index: {}]
  %s1 = inlined_call_operand.vmem [shape: bf16[9,8,8], index: 1, kind: input, shape index: {}]
  %s2 = inlined_call_operand.vmem [shape: f32[1,384], index: 2, kind: input, shape index: {}]
  %s3 = inlined_call_operand.vmem [shape: bf16[2,8,384], index: 3, kind: output, shape index: {0}]
  %s4 = inlined_call_operand.vmem [shape: f32[2,8,1], index: 4, kind: output, shape index: {1}]
  %s5 = inlined_call_operand.vmem [shape: f32[2,8,1], index: 5, kind: output, shape index: {2}]
  %6 = xla_tuple %s3, %s4, %s5
  %s7 = sld [smem:[#allocation0]]
  $region61: #{a_call__.6} parent=0
    _
  %s9 = ssub.s32 1, %s7
  %s10 = scalar_select 0, %s9, %s7
  loop: start=0, step=1, limit=4
  $region2: #{a_call__.6} parent=0 // loop_pre_header
    _
  $region3: #{a_call__.6} parent=0 // loop_header
    %s12 = sphi 0, %s16
    %p13 = scmp.ge.s32.totalorder %s12, 4
    %s22 = sphi 0, %s24
    %s25 = sphi 0, %s22
    %s26 = sphi 0, %s25
    %s42 = sphi 0, %s26
    %s46 = sphi 0, %s46
    %s48 = sphi 0, %s46
    %s49 = sphi 0, %s48
    %s63 = sphi 0, %s49
    %s67 = sphi 0, %s67
    %s69 = sphi 0, %s67
    %s70 = sphi 0, %s69
    %s84 = sphi 0, %s70
    %s90 = sphi 0, %s92
    %s93 = sphi 0, %s90
    %s94 = sphi 0, %s93
    %s110 = sphi 0, %s94
    %s116 = sphi 0, %s118
    %s119 = sphi 0, %s116
    %s120 = sphi 0, %s119
    %s136 = sphi 0, %s120
    %s142 = sphi 0, %s144
    %s145 = sphi 0, %s142
    %s146 = sphi 0, %s145
    %s162 = sphi 0, %s146
  $region4: #{a_call__.6} parent=0 // loop_header_branch
    %15 = sbr.rel (%p13) target = $region8
  $region5: #{a_call__.6} parent=0 // loop_body
    %s17 = ssub.s32 %s12, 1
    %s18 = ssub.s32 %s12, 2
    %s19 = sadd.s32 %s12, 1
    %s20 = ssub.s32 %s12, %s19
    %p21 = scmp.eq.s32.totalorder %s20, 0
    %s23 = sadd.s32 %s22, 1
    %s24 = scalar_select %p21, %s22, %s23
    %p27 = pneg %p21
    %p28 = scmp.eq.s32.totalorder %s12, 1
    %p29 = por %p27, %p28
    %p30 = scmp.ne.s32.totalorder %s22, %s25
    %p31 = scmp.eq.s32.totalorder %s12, 0
    %p32 = por %p30, %p31
    %p33 = scmp.ne.s32.totalorder %s22, %s25
    %p34 = scmp.eq.s32.totalorder %s17, 1
    %p35 = por %p33, %p34
    %p36 = scmp.ne.s32.totalorder %s25, %s26
    %p37 = scmp.eq.s32.totalorder %s17, 0
    %p38 = por %p36, %p37
    %p39 = scmp.ne.s32.totalorder %s25, %s26
    %p40 = scmp.eq.s32.totalorder %s18, 1
    %p41 = por %p39, %p40
    %p43 = scmp.ne.s32.totalorder %s26, %s42
    %p44 = scmp.eq.s32.totalorder %s18, 0
    %p45 = por %p43, %p44
    %s47 = sadd.s32 %s46, 1
    %p50 = scmp.eq.s32.totalorder %s12, 1
    %p51 = scmp.ne.s32.totalorder %s46, %s48
    %p52 = scmp.eq.s32.totalorder %s12, 0
    %p53 = por %p51, %p52
    %p54 = scmp.ne.s32.totalorder %s46, %s48
    %p55 = scmp.eq.s32.totalorder %s17, 1
    %p56 = por %p54, %p55
    %p57 = scmp.ne.s32.totalorder %s48, %s49
    %p58 = scmp.eq.s32.totalorder %s17, 0
    %p59 = por %p57, %p58
    %p60 = scmp.ne.s32.totalorder %s48, %s49
    %p61 = scmp.eq.s32.totalorder %s18, 1
    %p62 = por %p60, %p61
    %p64 = scmp.ne.s32.totalorder %s49, %s63
    %p65 = scmp.eq.s32.totalorder %s18, 0
    %p66 = por %p64, %p65
    %s68 = sadd.s32 %s67, 1
    %p71 = scmp.eq.s32.totalorder %s12, 1
    %p72 = scmp.ne.s32.totalorder %s67, %s69
    %p73 = scmp.eq.s32.totalorder %s12, 0
    %p74 = por %p72, %p73
    %p75 = scmp.ne.s32.totalorder %s67, %s69
    %p76 = scmp.eq.s32.totalorder %s17, 1
    %p77 = por %p75, %p76
    %p78 = scmp.ne.s32.totalorder %s69, %s70
    %p79 = scmp.eq.s32.totalorder %s17, 0
    %p80 = por %p78, %p79
    %p81 = scmp.ne.s32.totalorder %s69, %s70
    %p82 = scmp.eq.s32.totalorder %s18, 1
    %p83 = por %p81, %p82
    %p85 = scmp.ne.s32.totalorder %s70, %s84
    %p86 = scmp.eq.s32.totalorder %s18, 0
    %p87 = por %p85, %p86
    %s88 = ssub.s32 %s12, %s19
    %p89 = scmp.eq.s32.totalorder %s88, 0
    %s91 = sadd.s32 %s90, 1
    %s92 = scalar_select %p89, %s90, %s91
    %p95 = pneg %p89
    %p96 = scmp.eq.s32.totalorder %s12, 1
    %p97 = por %p95, %p96
    %p98 = scmp.ne.s32.totalorder %s90, %s93
    %p99 = scmp.eq.s32.totalorder %s12, 0
    %p100 = por %p98, %p99
    %p101 = scmp.ne.s32.totalorder %s90, %s93
    %p102 = scmp.eq.s32.totalorder %s17, 1
    %p103 = por %p101, %p102
    %p104 = scmp.ne.s32.totalorder %s93, %s94
    %p105 = scmp.eq.s32.totalorder %s17, 0
    %p106 = por %p104, %p105
    %p107 = scmp.ne.s32.totalorder %s93, %s94
    %p108 = scmp.eq.s32.totalorder %s18, 1
    %p109 = por %p107, %p108
    %p111 = scmp.ne.s32.totalorder %s94, %s110
    %p112 = scmp.eq.s32.totalorder %s18, 0
    %p113 = por %p111, %p112
    %s114 = ssub.s32 %s12, %s19
    %p115 = scmp.eq.s32.totalorder %s114, 0
    %s117 = sadd.s32 %s116, 1
    %s118 = scalar_select %p115, %s116, %s117
    %p121 = pneg %p115
    %p122 = scmp.eq.s32.totalorder %s12, 1
    %p123 = por %p121, %p122
    %p124 = scmp.ne.s32.totalorder %s116, %s119
    %p125 = scmp.eq.s32.totalorder %s12, 0
    %p126 = por %p124, %p125
    %p127 = scmp.ne.s32.totalorder %s116, %s119
    %p128 = scmp.eq.s32.totalorder %s17, 1
    %p129 = por %p127, %p128
    %p130 = scmp.ne.s32.totalorder %s119, %s120
    %p131 = scmp.eq.s32.totalorder %s17, 0
    %p132 = por %p130, %p131
    %p133 = scmp.ne.s32.totalorder %s119, %s120
    %p134 = scmp.eq.s32.totalorder %s18, 1
    %p135 = por %p133, %p134
    %p137 = scmp.ne.s32.totalorder %s120, %s136
    %p138 = scmp.eq.s32.totalorder %s18, 0
    %p139 = por %p137, %p138
    %s140 = ssub.s32 %s12, %s19
    %p141 = scmp.eq.s32.totalorder %s140, 0
    %s143 = sadd.s32 %s142, 1
    %s144 = scalar_select %p141, %s142, %s143
    %p147 = pneg %p141
    %p148 = scmp.eq.s32.totalorder %s12, 1
    %p149 = por %p147, %p148
    %p150 = scmp.ne.s32.totalorder %s142, %s145
    %p151 = scmp.eq.s32.totalorder %s12, 0
    %p152 = por %p150, %p151
    %p153 = scmp.ne.s32.totalorder %s142, %s145
    %p154 = scmp.eq.s32.totalorder %s17, 1
    %p155 = por %p153, %p154
    %p156 = scmp.ne.s32.totalorder %s145, %s146
    %p157 = scmp.eq.s32.totalorder %s17, 0
    %p158 = por %p156, %p157
    %p159 = scmp.ne.s32.totalorder %s145, %s146
    %p160 = scmp.eq.s32.totalorder %s18, 1
    %p161 = por %p159, %p160
    %p163 = scmp.ne.s32.totalorder %s146, %s162
    %p164 = scmp.eq.s32.totalorder %s18, 0
    %p165 = por %p163, %p164
    %p166 = scmp.le.s32.totalorder 1, %s12
    %p167 = scmp.lt.s32.totalorder %s12, 3
    %p168 = pnand %p166, %p167
    %p169 = pneg %p168
    // Predicated region
    $region9: #{a_call__.6} parent=5 // pred_check
      _
    $region10: #{a_call__.6} parent=5 // pred_check_branch
      %171 = sbr.rel (%p168) target = $region12
    $region11: #{a_call__.6} parent=5 // pred_region
      %s172 = ssub.s32 %s12, 1
      // Predicated region
      $region13: #{a_call__.6} parent=11 // pred_check
        %p173 = pneg %p59
      $region14: #{a_call__.6} parent=11 // pred_check_branch
        %175 = sbr.rel (%p173) target = $region16
      $region15: #{a_call__.6} parent=11 // pred_region
        _
      $region16: #{a_call__.6} parent=11 // pred_fallthru
        _
      // Predicated region
      $region17: #{a_call__.6} parent=11 // pred_check
        %p176 = pneg %p80
      $region18: #{a_call__.6} parent=11 // pred_check_branch
        %178 = sbr.rel (%p176) target = $region20
      $region19: #{a_call__.6} parent=11 // pred_region
        _
      $region20: #{a_call__.6} parent=11 // pred_fallthru
        _
    $region12: #{a_call__.6} parent=5 // pred_fallthru
      _
    %p179 = scmp.lt.s32.totalorder %s12, 2
    // Predicated region
    $region21: #{a_call__.6} parent=5 // pred_check
      %p180 = pneg %p179
    $region22: #{a_call__.6} parent=5 // pred_check_branch
      %182 = sbr.rel (%p180) target = $region24
    $region23: #{a_call__.6} parent=5 // pred_region
      // Predicated region
      $region25: #{a_call__.6} parent=23 // pred_check
        %p183 = pneg %p32
      $region26: #{a_call__.6} parent=23 // pred_check_branch
        %185 = sbr.rel (%p183) target = $region28
      $region27: #{a_call__.6} parent=23 // pred_region
        %p186 = scmp.lt.s32.totalorder %s12, 1
        %s187 = scalar_select %p186, %s12, 1
        %s188 = smul.addr %s187, 4
        %s189 = smul.addr %s188, 4
        %s190 = scalar_lea.vmem %s0, %s189
      $region28: #{a_call__.6} parent=23 // pred_fallthru
        _
    $region24: #{a_call__.6} parent=5 // pred_fallthru
      _
    %p191 = scmp.le.s32.totalorder 1, %s12
    %p192 = scmp.lt.s32.totalorder %s12, 3
    %p193 = pnand %p191, %p192
    %p194 = pneg %p193
    // Predicated region
    $region29: #{a_call__.6} parent=5 // pred_check
      _
    $region30: #{a_call__.6} parent=5 // pred_check_branch
      %196 = sbr.rel (%p193) target = $region32
    $region31: #{a_call__.6} parent=5 // pred_region
      %s197 = ssub.s32 %s12, 1
      %p198 = scmp.lt.s32.totalorder %s17, 1
      %s199 = scalar_select %p198, %s17, 1
      %s200 = smul.addr %s199, 4
      %s201 = smul.addr %s200, 4
      %s202 = scalar_lea.vmem %s0, %s201
      %p203 = pneg %p38
      %p204 = pneg %p35
      %p205 = pneg %p59
      %p206 = pneg %p56
      %p207 = pneg %p80
      %p208 = pneg %p77
      %p209 = pneg %p106
      %p210 = pneg %p103
      %p211 = scmp.lt.s32.totalorder %s17, 1
      %s212 = scalar_select %p211, %s17, 1
      %s213 = smul.addr %s212, 3
      %s214 = smul.addr %s213, 4
      %s215 = scalar_lea.vmem %s3, %s214
      %p216 = pneg %p132
      %p217 = pneg %p129
      %p218 = scmp.lt.s32.totalorder %s17, 1
      %s219 = scalar_select %p218, %s17, 1
      %s220 = smul.addr %s219, 8
      %s221 = scalar_lea.vmem %s4, %s220
      %p222 = pneg %p158
      %p223 = pneg %p155
      %p224 = scmp.lt.s32.totalorder %s17, 1
      %s225 = scalar_select %p224, %s17, 1
      %s226 = smul.addr %s225, 8
      %s227 = scalar_lea.vmem %s5, %s226
      %p228 = scmp.lt.s32.totalorder %s17, 1
      %s229 = scalar_select %p228, %s17, 1
      %s230 = smul.addr %s229, 4
      %s231 = smul.addr %s230, 4
      %s232 = scalar_lea.vmem %s0, %s231
      %p233 = scmp.lt.s32.totalorder %s17, 1
      %s234 = scalar_select %p233, %s17, 1
      %s235 = smul.addr %s234, 3
      %s236 = smul.addr %s235, 4
      %s237 = scalar_lea.vmem %s3, %s236
      %p238 = scmp.lt.s32.totalorder %s17, 1
      %s239 = scalar_select %p238, %s17, 1
      %s240 = smul.addr %s239, 8
      %s241 = scalar_lea.vmem %s4, %s240
      %p242 = scmp.lt.s32.totalorder %s17, 1
      %s243 = scalar_select %p242, %s17, 1
      %s244 = smul.addr %s243, 8
      %s245 = scalar_lea.vmem %s5, %s244
      %v247 = vld [vmem:[%s232] sm:$0xff]
      %v248 = vld [vmem:[%s232 + $0x8] sm:$0xff]
      %v249 = vld [vmem:[%s1] sm:$0xf]
      %s250 = scalar_lea.vmem %s1, 4
      %v251 = vld [vmem:[%s250] sm:$0xf]
      %v254 = vunpack.c.l.b16 %v247
      %v255 = vunpack.c.h.b16 %v247
      %v256 = vunpack.c.l.b16 %v248
      %v257 = vunpack.c.h.b16 %v248
      %v258 = vpack.c.b16 %v254, %v254
      %v259 = vpack.c.b16 %v255, %v255
      %v260 = vpack.c.b16 %v256, %v256
      %v261 = vpack.c.b16 %v257, %v257
      %262 = vrot.lane.b32.xlu0 %v258, 127
      %v263 = vpop.permute.xlu0 %262
      %264 = vrot.lane.b32.xlu0 %v259, 127
      %v265 = vpop.permute.xlu0 %264
      %266 = vrot.lane.b32.xlu0 %v260, 127
      %v267 = vpop.permute.xlu0 %266
      %268 = vrot.lane.b32.xlu0 %v261, 127
      %v269 = vpop.permute.xlu0 %268
      %vm270 = vcmask 1039360
      %v271 = vsel %vm270, %v263, %v265
      %v272 = vsel %vm270, %v265, %v267
      %v273 = vsel %vm270, %v267, %v269
      %vm274 = vcmask 64512
      %v276 = vsel %vm274, %v251, 0
      %vm278 = vcmask 1043456
      %v280 = vsel %vm278, %v271, 0
      %v283 = vsel %vm278, %v272, 0
      %v286 = vsel %vm278, %v273, 0
      %288 = vmatprep.subr.bf16.mxu0 0
      %289 = vmatpush1.bf16.msra.mxu0 0
      %290 = vmatprep.subr.bf16.mxu0 0
      %291 = vmatpush1.bf16.msra.mxu0 0
      %292 = vmatprep.subr.bf16.mxu0 0
      %293 = vmatpush1.bf16.msra.mxu0 0
      %294 = vmatprep.subr.bf16.mxu0 0
      %295 = vmatpush1.bf16.msra.mxu0 0
      %296 = vmatprep.subr.bf16.mxu0 0
      %297 = vmatpush1.bf16.msra.mxu0 0
      %298 = vmatprep.subr.bf16.mxu0 0
      %299 = vmatpush1.bf16.msra.mxu0 0
      %300 = vmatprep.subr.bf16.mxu0 0
      %301 = vmatpush1.bf16.msra.mxu0 0
      %302 = vmatprep.subr.bf16.mxu0 %v283
      %303 = vmatpush1.bf16.msra.mxu0 %v280
      %304 = vmatprep.subr.bf16.mxu0 0
      %305 = vmatpush2.bf16.msra.mxu0 0
      %306 = vmatprep.subr.bf16.mxu0 0
      %307 = vmatpush2.bf16.msra.mxu0 0
      %308 = vmatprep.subr.bf16.mxu0 0
      %309 = vmatpush2.bf16.msra.mxu0 0
      %310 = vmatprep.subr.bf16.mxu0 0
      %311 = vmatpush2.bf16.msra.mxu0 0
      %312 = vmatprep.subr.bf16.mxu0 0
      %313 = vmatpush2.bf16.msra.mxu0 0
      %314 = vmatprep.subr.bf16.mxu0 0
      %315 = vmatpush2.bf16.msra.mxu0 0
      %316 = vmatprep.subr.bf16.mxu0 0
      %317 = vmatpush2.bf16.msra.mxu0 0
      %318 = vmatprep.subr.bf16.mxu0 0
      %319 = vmatpush2.bf16.msra.mxu0 0
      %320 = vmatprep.mubr.bf16.mxu0 0
      %321 = vmatmul.mubr.bf16.gmra.mxu0 %v276
      %v322 = vpop.f32.mrf.mxu0
      %v323 = vadd.f32 0.0, %v322
      %v324 = vpop.f32.mrf.mxu0
      %v325 = vadd.f32 0.0, %v324
      %v326 = vpop.f32.mrf.mxu0
      %v327 = vpop.f32.mrf.mxu0
      %328 = vdwg.mxu0
      %329 = vmatprep.subr.bf16.mxu0 0
      %330 = vmatpush1.bf16.msra.mxu0 0
      %331 = vmatprep.subr.bf16.mxu0 0
      %332 = vmatpush1.bf16.msra.mxu0 0
      %333 = vmatprep.subr.bf16.mxu0 0
      %334 = vmatpush1.bf16.msra.mxu0 0
      %335 = vmatprep.subr.bf16.mxu0 0
      %336 = vmatpush1.bf16.msra.mxu0 0
      %337 = vmatprep.subr.bf16.mxu0 0
      %338 = vmatpush1.bf16.msra.mxu0 0
      %339 = vmatprep.subr.bf16.mxu0 0
      %340 = vmatpush1.bf16.msra.mxu0 0
      %341 = vmatprep.subr.bf16.mxu0 0
      %342 = vmatpush1.bf16.msra.mxu0 0
      %343 = vmatprep.subr.bf16.mxu0 0
      %344 = vmatpush1.bf16.msra.mxu0 %v286
      %345 = vmatprep.subr.bf16.mxu0 0
      %346 = vmatpush2.bf16.msra.mxu0 0
      %347 = vmatprep.subr.bf16.mxu0 0
      %348 = vmatpush2.bf16.msra.mxu0 0
      %349 = vmatprep.subr.bf16.mxu0 0
      %350 = vmatpush2.bf16.msra.mxu0 0
      %351 = vmatprep.subr.bf16.mxu0 0
      %352 = vmatpush2.bf16.msra.mxu0 0
      %353 = vmatprep.subr.bf16.mxu0 0
      %354 = vmatpush2.bf16.msra.mxu0 0
      %355 = vmatprep.subr.bf16.mxu0 0
      %356 = vmatpush2.bf16.msra.mxu0 0
      %357 = vmatprep.subr.bf16.mxu0 0
      %358 = vmatpush2.bf16.msra.mxu0 0
      %359 = vmatprep.subr.bf16.mxu0 0
      %360 = vmatpush2.bf16.msra.mxu0 0
      %361 = vmatprep.mubr.bf16.mxu0 0
      %362 = vmatmul.mubr.bf16.gmra.mxu0 %v276
      %v363 = vpop.f32.mrf.mxu0
      %v364 = vadd.f32 0.0, %v363
      %v365 = vpop.f32.mrf.mxu0
      %v366 = vpop.f32.mrf.mxu0
      %v367 = vpop.f32.mrf.mxu0
      %368 = vdwg.mxu0
      %v370 = vsel %vm274, %v249, 0
      %v373 = vsel %vm278, %v258, 0
      %v376 = vsel %vm278, %v259, 0
      %v379 = vsel %vm278, %v260, 0
      %381 = vmatprep.subr.bf16.mxu0 0
      %382 = vmatpush1.bf16.msra.mxu0 0
      %383 = vmatprep.subr.bf16.mxu0 0
      %384 = vmatpush1.bf16.msra.mxu0 0
      %385 = vmatprep.subr.bf16.mxu0 0
      %386 = vmatpush1.bf16.msra.mxu0 0
      %387 = vmatprep.subr.bf16.mxu0 0
      %388 = vmatpush1.bf16.msra.mxu0 0
      %389 = vmatprep.subr.bf16.mxu0 0
      %390 = vmatpush1.bf16.msra.mxu0 0
      %391 = vmatprep.subr.bf16.mxu0 0
      %392 = vmatpush1.bf16.msra.mxu0 0
      %393 = vmatprep.subr.bf16.mxu0 0
      %394 = vmatpush1.bf16.msra.mxu0 0
      %395 = vmatprep.subr.bf16.mxu0 %v376
      %396 = vmatpush1.bf16.msra.mxu0 %v373
      %397 = vmatprep.subr.bf16.mxu0 0
      %398 = vmatpush2.bf16.msra.mxu0 0
      %399 = vmatprep.subr.bf16.mxu0 0
      %400 = vmatpush2.bf16.msra.mxu0 0
      %401 = vmatprep.subr.bf16.mxu0 0
      %402 = vmatpush2.bf16.msra.mxu0 0
      %403 = vmatprep.subr.bf16.mxu0 0
      %404 = vmatpush2.bf16.msra.mxu0 0
      %405 = vmatprep.subr.bf16.mxu0 0
      %406 = vmatpush2.bf16.msra.mxu0 0
      %407 = vmatprep.subr.bf16.mxu0 0
      %408 = vmatpush2.bf16.msra.mxu0 0
      %409 = vmatprep.subr.bf16.mxu0 0
      %410 = vmatpush2.bf16.msra.mxu0 0
      %411 = vmatprep.subr.bf16.mxu0 0
      %412 = vmatpush2.bf16.msra.mxu0 0
      %413 = vmatprep.mubr.bf16.mxu0 0
      %414 = vmatmul.mubr.bf16.gmra.mxu0 %v370
      %v415 = vpop.f32.mrf.mxu0
      %v416 = vadd.f32 %v323, %v415
      %v417 = vpop.f32.mrf.mxu0
      %v418 = vadd.f32 %v325, %v417
      %v419 = vpop.f32.mrf.mxu0
      %v420 = vpop.f32.mrf.mxu0
      %421 = vdwg.mxu0
      %422 = vmatprep.subr.bf16.mxu0 0
      %423 = vmatpush1.bf16.msra.mxu0 0
      %424 = vmatprep.subr.bf16.mxu0 0
      %425 = vmatpush1.bf16.msra.mxu0 0
      %426 = vmatprep.subr.bf16.mxu0 0
      %427 = vmatpush1.bf16.msra.mxu0 0
      %428 = vmatprep.subr.bf16.mxu0 0
      %429 = vmatpush1.bf16.msra.mxu0 0
      %430 = vmatprep.subr.bf16.mxu0 0
      %431 = vmatpush1.bf16.msra.mxu0 0
      %432 = vmatprep.subr.bf16.mxu0 0
      %433 = vmatpush1.bf16.msra.mxu0 0
      %434 = vmatprep.subr.bf16.mxu0 0
      %435 = vmatpush1.bf16.msra.mxu0 0
      %436 = vmatprep.subr.bf16.mxu0 0
      %437 = vmatpush1.bf16.msra.mxu0 %v379
      %438 = vmatprep.subr.bf16.mxu0 0
      %439 = vmatpush2.bf16.msra.mxu0 0
      %440 = vmatprep.subr.bf16.mxu0 0
      %441 = vmatpush2.bf16.msra.mxu0 0
      %442 = vmatprep.subr.bf16.mxu0 0
      %443 = vmatpush2.bf16.msra.mxu0 0
      %444 = vmatprep.subr.bf16.mxu0 0
      %445 = vmatpush2.bf16.msra.mxu0 0
      %446 = vmatprep.subr.bf16.mxu0 0
      %447 = vmatpush2.bf16.msra.mxu0 0
      %448 = vmatprep.subr.bf16.mxu0 0
      %449 = vmatpush2.bf16.msra.mxu0 0
      %450 = vmatprep.subr.bf16.mxu0 0
      %451 = vmatpush2.bf16.msra.mxu0 0
      %452 = vmatprep.subr.bf16.mxu0 0
      %453 = vmatpush2.bf16.msra.mxu0 0
      %454 = vmatprep.mubr.bf16.mxu0 0
      %455 = vmatmul.mubr.bf16.gmra.mxu0 %v370
      %v456 = vpop.f32.mrf.mxu0
      %v457 = vadd.f32 %v364, %v456
      %v458 = vpop.f32.mrf.mxu0
      %v459 = vpop.f32.mrf.mxu0
      %v460 = vpop.f32.mrf.mxu0
      %461 = vdwg.mxu0
      %s462 = scalar_lea.vmem %s1, 8
      %v463 = vld [vmem:[%s462] sm:$0xf]
      %464 = vrot.lane.b32.xlu0 %v258, 126
      %v465 = vpop.permute.xlu0 %464
      %466 = vrot.lane.b32.xlu0 %v259, 126
      %v467 = vpop.permute.xlu0 %466
      %468 = vrot.lane.b32.xlu0 %v260, 126
      %v469 = vpop.permute.xlu0 %468
      %470 = vrot.lane.b32.xlu0 %v261, 126
      %v471 = vpop.permute.xlu0 %470
      %vm472 = vcmask 1031168
      %v473 = vsel %vm472, %v465, %v467
      %v474 = vsel %vm472, %v467, %v469
      %v475 = vsel %vm472, %v469, %v471
      %v477 = vsel %vm274, %v463, 0
      %v480 = vsel %vm278, %v473, 0
      %v483 = vsel %vm278, %v474, 0
      %v486 = vsel %vm278, %v475, 0
      %488 = vmatprep.subr.bf16.mxu0 0
      %489 = vmatpush1.bf16.msra.mxu0 0
      %490 = vmatprep.subr.bf16.mxu0 0
      %491 = vmatpush1.bf16.msra.mxu0 0
      %492 = vmatprep.subr.bf16.mxu0 0
      %493 = vmatpush1.bf16.msra.mxu0 0
      %494 = vmatprep.subr.bf16.mxu0 0
      %495 = vmatpush1.bf16.msra.mxu0 0
      %496 = vmatprep.subr.bf16.mxu0 0
      %497 = vmatpush1.bf16.msra.mxu0 0
      %498 = vmatprep.subr.bf16.mxu0 0
      %499 = vmatpush1.bf16.msra.mxu0 0
      %500 = vmatprep.subr.bf16.mxu0 0
      %501 = vmatpush1.bf16.msra.mxu0 0
      %502 = vmatprep.subr.bf16.mxu0 %v483
      %503 = vmatpush1.bf16.msra.mxu0 %v480
      %504 = vmatprep.subr.bf16.mxu0 0
      %505 = vmatpush2.bf16.msra.mxu0 0
      %506 = vmatprep.subr.bf16.mxu0 0
      %507 = vmatpush2.bf16.msra.mxu0 0
      %508 = vmatprep.subr.bf16.mxu0 0
      %509 = vmatpush2.bf16.msra.mxu0 0
      %510 = vmatprep.subr.bf16.mxu0 0
      %511 = vmatpush2.bf16.msra.mxu0 0
      %512 = vmatprep.subr.bf16.mxu0 0
      %513 = vmatpush2.bf16.msra.mxu0 0
      %514 = vmatprep.subr.bf16.mxu0 0
      %515 = vmatpush2.bf16.msra.mxu0 0
      %516 = vmatprep.subr.bf16.mxu0 0
      %517 = vmatpush2.bf16.msra.mxu0 0
      %518 = vmatprep.subr.bf16.mxu0 0
      %519 = vmatpush2.bf16.msra.mxu0 0
      %520 = vmatprep.mubr.bf16.mxu0 0
      %521 = vmatmul.mubr.bf16.gmra.mxu0 %v477
      %v522 = vpop.f32.mrf.mxu0
      %v523 = vadd.f32 0.0, %v522
      %v524 = vpop.f32.mrf.mxu0
      %v525 = vadd.f32 0.0, %v524
      %v526 = vpop.f32.mrf.mxu0
      %v527 = vpop.f32.mrf.mxu0
      %528 = vdwg.mxu0
      %529 = vmatprep.subr.bf16.mxu0 0
      %530 = vmatpush1.bf16.msra.mxu0 0
      %531 = vmatprep.subr.bf16.mxu0 0
      %532 = vmatpush1.bf16.msra.mxu0 0
      %533 = vmatprep.subr.bf16.mxu0 0
      %534 = vmatpush1.bf16.msra.mxu0 0
      %535 = vmatprep.subr.bf16.mxu0 0
      %536 = vmatpush1.bf16.msra.mxu0 0
      %537 = vmatprep.subr.bf16.mxu0 0
      %538 = vmatpush1.bf16.msra.mxu0 0
      %539 = vmatprep.subr.bf16.mxu0 0
      %540 = vmatpush1.bf16.msra.mxu0 0
      %541 = vmatprep.subr.bf16.mxu0 0
      %542 = vmatpush1.bf16.msra.mxu0 0
      %543 = vmatprep.subr.bf16.mxu0 0
      %544 = vmatpush1.bf16.msra.mxu0 %v486
      %545 = vmatprep.subr.bf16.mxu0 0
      %546 = vmatpush2.bf16.msra.mxu0 0
      %547 = vmatprep.subr.bf16.mxu0 0
      %548 = vmatpush2.bf16.msra.mxu0 0
      %549 = vmatprep.subr.bf16.mxu0 0
      %550 = vmatpush2.bf16.msra.mxu0 0
      %551 = vmatprep.subr.bf16.mxu0 0
      %552 = vmatpush2.bf16.msra.mxu0 0
      %553 = vmatprep.subr.bf16.mxu0 0
      %554 = vmatpush2.bf16.msra.mxu0 0
      %555 = vmatprep.subr.bf16.mxu0 0
      %556 = vmatpush2.bf16.msra.mxu0 0
      %557 = vmatprep.subr.bf16.mxu0 0
      %558 = vmatpush2.bf16.msra.mxu0 0
      %559 = vmatprep.subr.bf16.mxu0 0
      %560 = vmatpush2.bf16.msra.mxu0 0
      %561 = vmatprep.mubr.bf16.mxu0 0
      %562 = vmatmul.mubr.bf16.gmra.mxu0 %v477
      %v563 = vpop.f32.mrf.mxu0
      %v564 = vadd.f32 0.0, %v563
      %v565 = vpop.f32.mrf.mxu0
      %v566 = vpop.f32.mrf.mxu0
      %v567 = vpop.f32.mrf.mxu0
      %568 = vdwg.mxu0
      %v569 = vadd.f32 %v416, %v523
      %v570 = vadd.f32 %v418, %v525
      %v571 = vadd.f32 %v457, %v564
      %s572 = scalar_lea.vmem %s1, 12
      %v573 = vld [vmem:[%s572] sm:$0xf]
      %574 = vrot.lane.b32.xlu0 %v258, 110
      %v575 = vpop.permute.xlu0 %574
      %576 = vrot.lane.b32.xlu0 %v259, 110
      %v577 = vpop.permute.xlu0 %576
      %578 = vrot.lane.b32.xlu0 %v260, 110
      %v579 = vpop.permute.xlu0 %578
      %580 = vrot.lane.b32.xlu0 %v261, 110
      %v581 = vpop.permute.xlu0 %580
      %vm582 = vcmask 900096
      %v583 = vsel %vm582, %v575, %v577
      %v584 = vsel %vm582, %v577, %v579
      %v585 = vsel %vm582, %v579, %v581
      %v587 = vsel %vm274, %v573, 0
      %v590 = vsel %vm278, %v583, 0
      %v593 = vsel %vm278, %v584, 0
      %v596 = vsel %vm278, %v585, 0
      %598 = vmatprep.subr.bf16.mxu0 0
      %599 = vmatpush1.bf16.msra.mxu0 0
      %600 = vmatprep.subr.bf16.mxu0 0
      %601 = vmatpush1.bf16.msra.mxu0 0
      %602 = vmatprep.subr.bf16.mxu0 0
      %603 = vmatpush1.bf16.msra.mxu0 0
      %604 = vmatprep.subr.bf16.mxu0 0
      %605 = vmatpush1.bf16.msra.mxu0 0
      %606 = vmatprep.subr.bf16.mxu0 0
      %607 = vmatpush1.bf16.msra.mxu0 0
      %608 = vmatprep.subr.bf16.mxu0 0
      %609 = vmatpush1.bf16.msra.mxu0 0
      %610 = vmatprep.subr.bf16.mxu0 0
      %611 = vmatpush1.bf16.msra.mxu0 0
      %612 = vmatprep.subr.bf16.mxu0 %v593
      %613 = vmatpush1.bf16.msra.mxu0 %v590
      %614 = vmatprep.subr.bf16.mxu0 0
      %615 = vmatpush2.bf16.msra.mxu0 0
      %616 = vmatprep.subr.bf16.mxu0 0
      %617 = vmatpush2.bf16.msra.mxu0 0
      %618 = vmatprep.subr.bf16.mxu0 0
      %619 = vmatpush2.bf16.msra.mxu0 0
      %620 = vmatprep.subr.bf16.mxu0 0
      %621 = vmatpush2.bf16.msra.mxu0 0
      %622 = vmatprep.subr.bf16.mxu0 0
      %623 = vmatpush2.bf16.msra.mxu0 0
      %624 = vmatprep.subr.bf16.mxu0 0
      %625 = vmatpush2.bf16.msra.mxu0 0
      %626 = vmatprep.subr.bf16.mxu0 0
      %627 = vmatpush2.bf16.msra.mxu0 0
      %628 = vmatprep.subr.bf16.mxu0 0
      %629 = vmatpush2.bf16.msra.mxu0 0
      %630 = vmatprep.mubr.bf16.mxu0 0
      %631 = vmatmul.mubr.bf16.gmra.mxu0 %v587
      %v632 = vpop.f32.mrf.mxu0
      %v633 = vadd.f32 0.0, %v632
      %v634 = vpop.f32.mrf.mxu0
      %v635 = vadd.f32 0.0, %v634
      %v636 = vpop.f32.mrf.mxu0
      %v637 = vpop.f32.mrf.mxu0
      %638 = vdwg.mxu0
      %639 = vmatprep.subr.bf16.mxu0 0
      %640 = vmatpush1.bf16.msra.mxu0 0
      %641 = vmatprep.subr.bf16.mxu0 0
      %642 = vmatpush1.bf16.msra.mxu0 0
      %643 = vmatprep.subr.bf16.mxu0 0
      %644 = vmatpush1.bf16.msra.mxu0 0
      %645 = vmatprep.subr.bf16.mxu0 0
      %646 = vmatpush1.bf16.msra.mxu0 0
      %647 = vmatprep.subr.bf16.mxu0 0
      %648 = vmatpush1.bf16.msra.mxu0 0
      %649 = vmatprep.subr.bf16.mxu0 0
      %650 = vmatpush1.bf16.msra.mxu0 0
      %651 = vmatprep.subr.bf16.mxu0 0
      %652 = vmatpush1.bf16.msra.mxu0 0
      %653 = vmatprep.subr.bf16.mxu0 0
      %654 = vmatpush1.bf16.msra.mxu0 %v596
      %655 = vmatprep.subr.bf16.mxu0 0
      %656 = vmatpush2.bf16.msra.mxu0 0
      %657 = vmatprep.subr.bf16.mxu0 0
      %658 = vmatpush2.bf16.msra.mxu0 0
      %659 = vmatprep.subr.bf16.mxu0 0
      %660 = vmatpush2.bf16.msra.mxu0 0
      %661 = vmatprep.subr.bf16.mxu0 0
      %662 = vmatpush2.bf16.msra.mxu0 0
      %663 = vmatprep.subr.bf16.mxu0 0
      %664 = vmatpush2.bf16.msra.mxu0 0
      %665 = vmatprep.subr.bf16.mxu0 0
      %666 = vmatpush2.bf16.msra.mxu0 0
      %667 = vmatprep.subr.bf16.mxu0 0
      %668 = vmatpush2.bf16.msra.mxu0 0
      %669 = vmatprep.subr.bf16.mxu0 0
      %670 = vmatpush2.bf16.msra.mxu0 0
      %671 = vmatprep.mubr.bf16.mxu0 0
      %672 = vmatmul.mubr.bf16.gmra.mxu0 %v587
      %v673 = vpop.f32.mrf.mxu0
      %v674 = vadd.f32 0.0, %v673
      %v675 = vpop.f32.mrf.mxu0
      %v676 = vpop.f32.mrf.mxu0
      %v677 = vpop.f32.mrf.mxu0
      %678 = vdwg.mxu0
      %v679 = vadd.f32 %v569, %v633
      %v680 = vadd.f32 %v570, %v635
      %v681 = vadd.f32 %v571, %v674
      %s682 = scalar_lea.vmem %s1, 16
      %v683 = vld [vmem:[%s682] sm:$0xf]
      %684 = vrot.lane.b32.xlu0 %v258, 109
      %v685 = vpop.permute.xlu0 %684
      %686 = vrot.lane.b32.xlu0 %v259, 109
      %v687 = vpop.permute.xlu0 %686
      %688 = vrot.lane.b32.xlu0 %v260, 109
      %v689 = vpop.permute.xlu0 %688
      %690 = vrot.lane.b32.xlu0 %v261, 109
      %v691 = vpop.permute.xlu0 %690
      %vm692 = vcmask 891904
      %v693 = vsel %vm692, %v685, %v687
      %v694 = vsel %vm692, %v687, %v689
      %v695 = vsel %vm692, %v689, %v691
      %v697 = vsel %vm274, %v683, 0
      %v700 = vsel %vm278, %v693, 0
      %v703 = vsel %vm278, %v694, 0
      %v706 = vsel %vm278, %v695, 0
      %708 = vmatprep.subr.bf16.mxu0 0
      %709 = vmatpush1.bf16.msra.mxu0 0
      %710 = vmatprep.subr.bf16.mxu0 0
      %711 = vmatpush1.bf16.msra.mxu0 0
      %712 = vmatprep.subr.bf16.mxu0 0
      %713 = vmatpush1.bf16.msra.mxu0 0
      %714 = vmatprep.subr.bf16.mxu0 0
      %715 = vmatpush1.bf16.msra.mxu0 0
      %716 = vmatprep.subr.bf16.mxu0 0
      %717 = vmatpush1.bf16.msra.mxu0 0
      %718 = vmatprep.subr.bf16.mxu0 0
      %719 = vmatpush1.bf16.msra.mxu0 0
      %720 = vmatprep.subr.bf16.mxu0 0
      %721 = vmatpush1.bf16.msra.mxu0 0
      %722 = vmatprep.subr.bf16.mxu0 %v703
      %723 = vmatpush1.bf16.msra.mxu0 %v700
      %724 = vmatprep.subr.bf16.mxu0 0
      %725 = vmatpush2.bf16.msra.mxu0 0
      %726 = vmatprep.subr.bf16.mxu0 0
      %727 = vmatpush2.bf16.msra.mxu0 0
      %728 = vmatprep.subr.bf16.mxu0 0
      %729 = vmatpush2.bf16.msra.mxu0 0
      %730 = vmatprep.subr.bf16.mxu0 0
      %731 = vmatpush2.bf16.msra.mxu0 0
      %732 = vmatprep.subr.bf16.mxu0 0
      %733 = vmatpush2.bf16.msra.mxu0 0
      %734 = vmatprep.subr.bf16.mxu0 0
      %735 = vmatpush2.bf16.msra.mxu0 0
      %736 = vmatprep.subr.bf16.mxu0 0
      %737 = vmatpush2.bf16.msra.mxu0 0
      %738 = vmatprep.subr.bf16.mxu0 0
      %739 = vmatpush2.bf16.msra.mxu0 0
      %740 = vmatprep.mubr.bf16.mxu0 0
      %741 = vmatmul.mubr.bf16.gmra.mxu0 %v697
      %v742 = vpop.f32.mrf.mxu0
      %v743 = vadd.f32 0.0, %v742
      %v744 = vpop.f32.mrf.mxu0
      %v745 = vadd.f32 0.0, %v744
      %v746 = vpop.f32.mrf.mxu0
      %v747 = vpop.f32.mrf.mxu0
      %748 = vdwg.mxu0
      %749 = vmatprep.subr.bf16.mxu0 0
      %750 = vmatpush1.bf16.msra.mxu0 0
      %751 = vmatprep.subr.bf16.mxu0 0
      %752 = vmatpush1.bf16.msra.mxu0 0
      %753 = vmatprep.subr.bf16.mxu0 0
      %754 = vmatpush1.bf16.msra.mxu0 0
      %755 = vmatprep.subr.bf16.mxu0 0
      %756 = vmatpush1.bf16.msra.mxu0 0
      %757 = vmatprep.subr.bf16.mxu0 0
      %758 = vmatpush1.bf16.msra.mxu0 0
      %759 = vmatprep.subr.bf16.mxu0 0
      %760 = vmatpush1.bf16.msra.mxu0 0
      %761 = vmatprep.subr.bf16.mxu0 0
      %762 = vmatpush1.bf16.msra.mxu0 0
      %763 = vmatprep.subr.bf16.mxu0 0
      %764 = vmatpush1.bf16.msra.mxu0 %v706
      %765 = vmatprep.subr.bf16.mxu0 0
      %766 = vmatpush2.bf16.msra.mxu0 0
      %767 = vmatprep.subr.bf16.mxu0 0
      %768 = vmatpush2.bf16.msra.mxu0 0
      %769 = vmatprep.subr.bf16.mxu0 0
      %770 = vmatpush2.bf16.msra.mxu0 0
      %771 = vmatprep.subr.bf16.mxu0 0
      %772 = vmatpush2.bf16.msra.mxu0 0
      %773 = vmatprep.subr.bf16.mxu0 0
      %774 = vmatpush2.bf16.msra.mxu0 0
      %775 = vmatprep.subr.bf16.mxu0 0
      %776 = vmatpush2.bf16.msra.mxu0 0
      %777 = vmatprep.subr.bf16.mxu0 0
      %778 = vmatpush2.bf16.msra.mxu0 0
      %779 = vmatprep.subr.bf16.mxu0 0
      %780 = vmatpush2.bf16.msra.mxu0 0
      %781 = vmatprep.mubr.bf16.mxu0 0
      %782 = vmatmul.mubr.bf16.gmra.mxu0 %v697
      %v783 = vpop.f32.mrf.mxu0
      %v784 = vadd.f32 0.0, %v783
      %v785 = vpop.f32.mrf.mxu0
      %v786 = vpop.f32.mrf.mxu0
      %v787 = vpop.f32.mrf.mxu0
      %788 = vdwg.mxu0
      %v789 = vadd.f32 %v679, %v743
      %v790 = vadd.f32 %v680, %v745
      %v791 = vadd.f32 %v681, %v784
      %s792 = scalar_lea.vmem %s1, 20
      %v793 = vld [vmem:[%s792] sm:$0xf]
      %794 = vrot.lane.b32.xlu0 %v258, 108
      %v795 = vpop.permute.xlu0 %794
      %796 = vrot.lane.b32.xlu0 %v259, 108
      %v797 = vpop.permute.xlu0 %796
      %798 = vrot.lane.b32.xlu0 %v260, 108
      %v799 = vpop.permute.xlu0 %798
      %800 = vrot.lane.b32.xlu0 %v261, 108
      %v801 = vpop.permute.xlu0 %800
      %vm802 = vcmask 883712
      %v803 = vsel %vm802, %v795, %v797
      %v804 = vsel %vm802, %v797, %v799
      %v805 = vsel %vm802, %v799, %v801
      %v807 = vsel %vm274, %v793, 0
      %v810 = vsel %vm278, %v803, 0
      %v813 = vsel %vm278, %v804, 0
      %v816 = vsel %vm278, %v805, 0
      %818 = vmatprep.subr.bf16.mxu0 0
      %819 = vmatpush1.bf16.msra.mxu0 0
      %820 = vmatprep.subr.bf16.mxu0 0
      %821 = vmatpush1.bf16.msra.mxu0 0
      %822 = vmatprep.subr.bf16.mxu0 0
      %823 = vmatpush1.bf16.msra.mxu0 0
      %824 = vmatprep.subr.bf16.mxu0 0
      %825 = vmatpush1.bf16.msra.mxu0 0
      %826 = vmatprep.subr.bf16.mxu0 0
      %827 = vmatpush1.bf16.msra.mxu0 0
      %828 = vmatprep.subr.bf16.mxu0 0
      %829 = vmatpush1.bf16.msra.mxu0 0
      %830 = vmatprep.subr.bf16.mxu0 0
      %831 = vmatpush1.bf16.msra.mxu0 0
      %832 = vmatprep.subr.bf16.mxu0 %v813
      %833 = vmatpush1.bf16.msra.mxu0 %v810
      %834 = vmatprep.subr.bf16.mxu0 0
      %835 = vmatpush2.bf16.msra.mxu0 0
      %836 = vmatprep.subr.bf16.mxu0 0
      %837 = vmatpush2.bf16.msra.mxu0 0
      %838 = vmatprep.subr.bf16.mxu0 0
      %839 = vmatpush2.bf16.msra.mxu0 0
      %840 = vmatprep.subr.bf16.mxu0 0
      %841 = vmatpush2.bf16.msra.mxu0 0
      %842 = vmatprep.subr.bf16.mxu0 0
      %843 = vmatpush2.bf16.msra.mxu0 0
      %844 = vmatprep.subr.bf16.mxu0 0
      %845 = vmatpush2.bf16.msra.mxu0 0
      %846 = vmatprep.subr.bf16.mxu0 0
      %847 = vmatpush2.bf16.msra.mxu0 0
      %848 = vmatprep.subr.bf16.mxu0 0
      %849 = vmatpush2.bf16.msra.mxu0 0
      %850 = vmatprep.mubr.bf16.mxu0 0
      %851 = vmatmul.mubr.bf16.gmra.mxu0 %v807
      %v852 = vpop.f32.mrf.mxu0
      %v853 = vadd.f32 0.0, %v852
      %v854 = vpop.f32.mrf.mxu0
      %v855 = vadd.f32 0.0, %v854
      %v856 = vpop.f32.mrf.mxu0
      %v857 = vpop.f32.mrf.mxu0
      %858 = vdwg.mxu0
      %859 = vmatprep.subr.bf16.mxu0 0
      %860 = vmatpush1.bf16.msra.mxu0 0
      %861 = vmatprep.subr.bf16.mxu0 0
      %862 = vmatpush1.bf16.msra.mxu0 0
      %863 = vmatprep.subr.bf16.mxu0 0
      %864 = vmatpush1.bf16.msra.mxu0 0
      %865 = vmatprep.subr.bf16.mxu0 0
      %866 = vmatpush1.bf16.msra.mxu0 0
      %867 = vmatprep.subr.bf16.mxu0 0
      %868 = vmatpush1.bf16.msra.mxu0 0
      %869 = vmatprep.subr.bf16.mxu0 0
      %870 = vmatpush1.bf16.msra.mxu0 0
      %871 = vmatprep.subr.bf16.mxu0 0
      %872 = vmatpush1.bf16.msra.mxu0 0
      %873 = vmatprep.subr.bf16.mxu0 0
      %874 = vmatpush1.bf16.msra.mxu0 %v816
      %875 = vmatprep.subr.bf16.mxu0 0
      %876 = vmatpush2.bf16.msra.mxu0 0
      %877 = vmatprep.subr.bf16.mxu0 0
      %878 = vmatpush2.bf16.msra.mxu0 0
      %879 = vmatprep.subr.bf16.mxu0 0
      %880 = vmatpush2.bf16.msra.mxu0 0
      %881 = vmatprep.subr.bf16.mxu0 0
      %882 = vmatpush2.bf16.msra.mxu0 0
      %883 = vmatprep.subr.bf16.mxu0 0
      %884 = vmatpush2.bf16.msra.mxu0 0
      %885 = vmatprep.subr.bf16.mxu0 0
      %886 = vmatpush2.bf16.msra.mxu0 0
      %887 = vmatprep.subr.bf16.mxu0 0
      %888 = vmatpush2.bf16.msra.mxu0 0
      %889 = vmatprep.subr.bf16.mxu0 0
      %890 = vmatpush2.bf16.msra.mxu0 0
      %891 = vmatprep.mubr.bf16.mxu0 0
      %892 = vmatmul.mubr.bf16.gmra.mxu0 %v807
      %v893 = vpop.f32.mrf.mxu0
      %v894 = vadd.f32 0.0, %v893
      %v895 = vpop.f32.mrf.mxu0
      %v896 = vpop.f32.mrf.mxu0
      %v897 = vpop.f32.mrf.mxu0
      %898 = vdwg.mxu0
      %v899 = vadd.f32 %v789, %v853
      %v900 = vadd.f32 %v790, %v855
      %v901 = vadd.f32 %v791, %v894
      %s902 = scalar_lea.vmem %s1, 24
      %v903 = vld [vmem:[%s902] sm:$0xf]
      %904 = vrot.lane.b32.xlu0 %v258, 92
      %v905 = vpop.permute.xlu0 %904
      %906 = vrot.lane.b32.xlu0 %v259, 92
      %v907 = vpop.permute.xlu0 %906
      %908 = vrot.lane.b32.xlu0 %v260, 92
      %v909 = vpop.permute.xlu0 %908
      %910 = vrot.lane.b32.xlu0 %v261, 92
      %v911 = vpop.permute.xlu0 %910
      %vm912 = vcmask 752640
      %v913 = vsel %vm912, %v905, %v907
      %v914 = vsel %vm912, %v907, %v909
      %v915 = vsel %vm912, %v909, %v911
      %v917 = vsel %vm274, %v903, 0
      %v920 = vsel %vm278, %v913, 0
      %v923 = vsel %vm278, %v914, 0
      %v926 = vsel %vm278, %v915, 0
      %928 = vmatprep.subr.bf16.mxu0 0
      %929 = vmatpush1.bf16.msra.mxu0 0
      %930 = vmatprep.subr.bf16.mxu0 0
      %931 = vmatpush1.bf16.msra.mxu0 0
      %932 = vmatprep.subr.bf16.mxu0 0
      %933 = vmatpush1.bf16.msra.mxu0 0
      %934 = vmatprep.subr.bf16.mxu0 0
      %935 = vmatpush1.bf16.msra.mxu0 0
      %936 = vmatprep.subr.bf16.mxu0 0
      %937 = vmatpush1.bf16.msra.mxu0 0
      %938 = vmatprep.subr.bf16.mxu0 0
      %939 = vmatpush1.bf16.msra.mxu0 0
      %940 = vmatprep.subr.bf16.mxu0 0
      %941 = vmatpush1.bf16.msra.mxu0 0
      %942 = vmatprep.subr.bf16.mxu0 %v923
      %943 = vmatpush1.bf16.msra.mxu0 %v920
      %944 = vmatprep.subr.bf16.mxu0 0
      %945 = vmatpush2.bf16.msra.mxu0 0
      %946 = vmatprep.subr.bf16.mxu0 0
      %947 = vmatpush2.bf16.msra.mxu0 0
      %948 = vmatprep.subr.bf16.mxu0 0
      %949 = vmatpush2.bf16.msra.mxu0 0
      %950 = vmatprep.subr.bf16.mxu0 0
      %951 = vmatpush2.bf16.msra.mxu0 0
      %952 = vmatprep.subr.bf16.mxu0 0
      %953 = vmatpush2.bf16.msra.mxu0 0
      %954 = vmatprep.subr.bf16.mxu0 0
      %955 = vmatpush2.bf16.msra.mxu0 0
      %956 = vmatprep.subr.bf16.mxu0 0
      %957 = vmatpush2.bf16.msra.mxu0 0
      %958 = vmatprep.subr.bf16.mxu0 0
      %959 = vmatpush2.bf16.msra.mxu0 0
      %960 = vmatprep.mubr.bf16.mxu0 0
      %961 = vmatmul.mubr.bf16.gmra.mxu0 %v917
      %v962 = vpop.f32.mrf.mxu0
      %v963 = vadd.f32 0.0, %v962
      %v964 = vpop.f32.mrf.mxu0
      %v965 = vadd.f32 0.0, %v964
      %v966 = vpop.f32.mrf.mxu0
      %v967 = vpop.f32.mrf.mxu0
      %968 = vdwg.mxu0
      %969 = vmatprep.subr.bf16.mxu0 0
      %970 = vmatpush1.bf16.msra.mxu0 0
      %971 = vmatprep.subr.bf16.mxu0 0
      %972 = vmatpush1.bf16.msra.mxu0 0
      %973 = vmatprep.subr.bf16.mxu0 0
      %974 = vmatpush1.bf16.msra.mxu0 0
      %975 = vmatprep.subr.bf16.mxu0 0
      %976 = vmatpush1.bf16.msra.mxu0 0
      %977 = vmatprep.subr.bf16.mxu0 0
      %978 = vmatpush1.bf16.msra.mxu0 0
      %979 = vmatprep.subr.bf16.mxu0 0
      %980 = vmatpush1.bf16.msra.mxu0 0
      %981 = vmatprep.subr.bf16.mxu0 0
      %982 = vmatpush1.bf16.msra.mxu0 0
      %983 = vmatprep.subr.bf16.mxu0 0
      %984 = vmatpush1.bf16.msra.mxu0 %v926
      %985 = vmatprep.subr.bf16.mxu0 0
      %986 = vmatpush2.bf16.msra.mxu0 0
      %987 = vmatprep.subr.bf16.mxu0 0
      %988 = vmatpush2.bf16.msra.mxu0 0
      %989 = vmatprep.subr.bf16.mxu0 0
      %990 = vmatpush2.bf16.msra.mxu0 0
      %991 = vmatprep.subr.bf16.mxu0 0
      %992 = vmatpush2.bf16.msra.mxu0 0
      %993 = vmatprep.subr.bf16.mxu0 0
      %994 = vmatpush2.bf16.msra.mxu0 0
      %995 = vmatprep.subr.bf16.mxu0 0
      %996 = vmatpush2.bf16.msra.mxu0 0
      %997 = vmatprep.subr.bf16.mxu0 0
      %998 = vmatpush2.bf16.msra.mxu0 0
      %999 = vmatprep.subr.bf16.mxu0 0
      %1000 = vmatpush2.bf16.msra.mxu0 0
      %1001 = vmatprep.mubr.bf16.mxu0 0
      %1002 = vmatmul.mubr.bf16.gmra.mxu0 %v917
      %v1003 = vpop.f32.mrf.mxu0
      %v1004 = vadd.f32 0.0, %v1003
      %v1005 = vpop.f32.mrf.mxu0
      %v1006 = vpop.f32.mrf.mxu0
      %v1007 = vpop.f32.mrf.mxu0
      %1008 = vdwg.mxu0
      %v1009 = vadd.f32 %v899, %v963
      %v1010 = vadd.f32 %v900, %v965
      %v1011 = vadd.f32 %v901, %v1004
      %s1012 = scalar_lea.vmem %s1, 28
      %v1013 = vld [vmem:[%s1012] sm:$0xf]
      %1014 = vrot.lane.b32.xlu0 %v258, 91
      %v1015 = vpop.permute.xlu0 %1014
      %1016 = vrot.lane.b32.xlu0 %v259, 91
      %v1017 = vpop.permute.xlu0 %1016
      %1018 = vrot.lane.b32.xlu0 %v260, 91
      %v1019 = vpop.permute.xlu0 %1018
      %1020 = vrot.lane.b32.xlu0 %v261, 91
      %v1021 = vpop.permute.xlu0 %1020
      %vm1022 = vcmask 744448
      %v1023 = vsel %vm1022, %v1015, %v1017
      %v1024 = vsel %vm1022, %v1017, %v1019
      %v1025 = vsel %vm1022, %v1019, %v1021
      %v1027 = vsel %vm274, %v1013, 0
      %v1030 = vsel %vm278, %v1023, 0
      %v1033 = vsel %vm278, %v1024, 0
      %v1036 = vsel %vm278, %v1025, 0
      %1038 = vmatprep.subr.bf16.mxu0 0
      %1039 = vmatpush1.bf16.msra.mxu0 0
      %1040 = vmatprep.subr.bf16.mxu0 0
      %1041 = vmatpush1.bf16.msra.mxu0 0
      %1042 = vmatprep.subr.bf16.mxu0 0
      %1043 = vmatpush1.bf16.msra.mxu0 0
      %1044 = vmatprep.subr.bf16.mxu0 0
      %1045 = vmatpush1.bf16.msra.mxu0 0
      %1046 = vmatprep.subr.bf16.mxu0 0
      %1047 = vmatpush1.bf16.msra.mxu0 0
      %1048 = vmatprep.subr.bf16.mxu0 0
      %1049 = vmatpush1.bf16.msra.mxu0 0
      %1050 = vmatprep.subr.bf16.mxu0 0
      %1051 = vmatpush1.bf16.msra.mxu0 0
      %1052 = vmatprep.subr.bf16.mxu0 %v1033
      %1053 = vmatpush1.bf16.msra.mxu0 %v1030
      %1054 = vmatprep.subr.bf16.mxu0 0
      %1055 = vmatpush2.bf16.msra.mxu0 0
      %1056 = vmatprep.subr.bf16.mxu0 0
      %1057 = vmatpush2.bf16.msra.mxu0 0
      %1058 = vmatprep.subr.bf16.mxu0 0
      %1059 = vmatpush2.bf16.msra.mxu0 0
      %1060 = vmatprep.subr.bf16.mxu0 0
      %1061 = vmatpush2.bf16.msra.mxu0 0
      %1062 = vmatprep.subr.bf16.mxu0 0
      %1063 = vmatpush2.bf16.msra.mxu0 0
      %1064 = vmatprep.subr.bf16.mxu0 0
      %1065 = vmatpush2.bf16.msra.mxu0 0
      %1066 = vmatprep.subr.bf16.mxu0 0
      %1067 = vmatpush2.bf16.msra.mxu0 0
      %1068 = vmatprep.subr.bf16.mxu0 0
      %1069 = vmatpush2.bf16.msra.mxu0 0
      %1070 = vmatprep.mubr.bf16.mxu0 0
      %1071 = vmatmul.mubr.bf16.gmra.mxu0 %v1027
      %v1072 = vpop.f32.mrf.mxu0
      %v1073 = vadd.f32 0.0, %v1072
      %v1074 = vpop.f32.mrf.mxu0
      %v1075 = vadd.f32 0.0, %v1074
      %v1076 = vpop.f32.mrf.mxu0
      %v1077 = vpop.f32.mrf.mxu0
      %1078 = vdwg.mxu0
      %1079 = vmatprep.subr.bf16.mxu0 0
      %1080 = vmatpush1.bf16.msra.mxu0 0
      %1081 = vmatprep.subr.bf16.mxu0 0
      %1082 = vmatpush1.bf16.msra.mxu0 0
      %1083 = vmatprep.subr.bf16.mxu0 0
      %1084 = vmatpush1.bf16.msra.mxu0 0
      %1085 = vmatprep.subr.bf16.mxu0 0
      %1086 = vmatpush1.bf16.msra.mxu0 0
      %1087 = vmatprep.subr.bf16.mxu0 0
      %1088 = vmatpush1.bf16.msra.mxu0 0
      %1089 = vmatprep.subr.bf16.mxu0 0
      %1090 = vmatpush1.bf16.msra.mxu0 0
      %1091 = vmatprep.subr.bf16.mxu0 0
      %1092 = vmatpush1.bf16.msra.mxu0 0
      %1093 = vmatprep.subr.bf16.mxu0 0
      %1094 = vmatpush1.bf16.msra.mxu0 %v1036
      %1095 = vmatprep.subr.bf16.mxu0 0
      %1096 = vmatpush2.bf16.msra.mxu0 0
      %1097 = vmatprep.subr.bf16.mxu0 0
      %1098 = vmatpush2.bf16.msra.mxu0 0
      %1099 = vmatprep.subr.bf16.mxu0 0
      %1100 = vmatpush2.bf16.msra.mxu0 0
      %1101 = vmatprep.subr.bf16.mxu0 0
      %1102 = vmatpush2.bf16.msra.mxu0 0
      %1103 = vmatprep.subr.bf16.mxu0 0
      %1104 = vmatpush2.bf16.msra.mxu0 0
      %1105 = vmatprep.subr.bf16.mxu0 0
      %1106 = vmatpush2.bf16.msra.mxu0 0
      %1107 = vmatprep.subr.bf16.mxu0 0
      %1108 = vmatpush2.bf16.msra.mxu0 0
      %1109 = vmatprep.subr.bf16.mxu0 0
      %1110 = vmatpush2.bf16.msra.mxu0 0
      %1111 = vmatprep.mubr.bf16.mxu0 0
      %1112 = vmatmul.mubr.bf16.gmra.mxu0 %v1027
      %v1113 = vpop.f32.mrf.mxu0
      %v1114 = vadd.f32 0.0, %v1113
      %v1115 = vpop.f32.mrf.mxu0
      %v1116 = vpop.f32.mrf.mxu0
      %v1117 = vpop.f32.mrf.mxu0
      %1118 = vdwg.mxu0
      %v1119 = vadd.f32 %v1009, %v1073
      %v1120 = vadd.f32 %v1010, %v1075
      %v1121 = vadd.f32 %v1011, %v1114
      %s1122 = scalar_lea.vmem %s1, 32
      %v1123 = vld [vmem:[%s1122] sm:$0xf]
      %1124 = vrot.lane.b32.xlu0 %v258, 90
      %v1125 = vpop.permute.xlu0 %1124
      %1126 = vrot.lane.b32.xlu0 %v259, 90
      %v1127 = vpop.permute.xlu0 %1126
      %1128 = vrot.lane.b32.xlu0 %v260, 90
      %v1129 = vpop.permute.xlu0 %1128
      %1130 = vrot.lane.b32.xlu0 %v261, 90
      %v1131 = vpop.permute.xlu0 %1130
      %vm1132 = vcmask 736256
      %v1133 = vsel %vm1132, %v1125, %v1127
      %v1134 = vsel %vm1132, %v1127, %v1129
      %v1135 = vsel %vm1132, %v1129, %v1131
      %v1137 = vsel %vm274, %v1123, 0
      %v1140 = vsel %vm278, %v1133, 0
      %v1143 = vsel %vm278, %v1134, 0
      %v1146 = vsel %vm278, %v1135, 0
      %1148 = vmatprep.subr.bf16.mxu0 0
      %1149 = vmatpush1.bf16.msra.mxu0 0
      %1150 = vmatprep.subr.bf16.mxu0 0
      %1151 = vmatpush1.bf16.msra.mxu0 0
      %1152 = vmatprep.subr.bf16.mxu0 0
      %1153 = vmatpush1.bf16.msra.mxu0 0
      %1154 = vmatprep.subr.bf16.mxu0 0
      %1155 = vmatpush1.bf16.msra.mxu0 0
      %1156 = vmatprep.subr.bf16.mxu0 0
      %1157 = vmatpush1.bf16.msra.mxu0 0
      %1158 = vmatprep.subr.bf16.mxu0 0
      %1159 = vmatpush1.bf16.msra.mxu0 0
      %1160 = vmatprep.subr.bf16.mxu0 0
      %1161 = vmatpush1.bf16.msra.mxu0 0
      %1162 = vmatprep.subr.bf16.mxu0 %v1143
      %1163 = vmatpush1.bf16.msra.mxu0 %v1140
      %1164 = vmatprep.subr.bf16.mxu0 0
      %1165 = vmatpush2.bf16.msra.mxu0 0
      %1166 = vmatprep.subr.bf16.mxu0 0
      %1167 = vmatpush2.bf16.msra.mxu0 0
      %1168 = vmatprep.subr.bf16.mxu0 0
      %1169 = vmatpush2.bf16.msra.mxu0 0
      %1170 = vmatprep.subr.bf16.mxu0 0
      %1171 = vmatpush2.bf16.msra.mxu0 0
      %1172 = vmatprep.subr.bf16.mxu0 0
      %1173 = vmatpush2.bf16.msra.mxu0 0
      %1174 = vmatprep.subr.bf16.mxu0 0
      %1175 = vmatpush2.bf16.msra.mxu0 0
      %1176 = vmatprep.subr.bf16.mxu0 0
      %1177 = vmatpush2.bf16.msra.mxu0 0
      %1178 = vmatprep.subr.bf16.mxu0 0
      %1179 = vmatpush2.bf16.msra.mxu0 0
      %1180 = vmatprep.mubr.bf16.mxu0 0
      %1181 = vmatmul.mubr.bf16.gmra.mxu0 %v1137
      %v1182 = vpop.f32.mrf.mxu0
      %v1183 = vadd.f32 0.0, %v1182
      %v1184 = vpop.f32.mrf.mxu0
      %v1185 = vadd.f32 0.0, %v1184
      %v1186 = vpop.f32.mrf.mxu0
      %v1187 = vpop.f32.mrf.mxu0
      %1188 = vdwg.mxu0
      %1189 = vmatprep.subr.bf16.mxu0 0
      %1190 = vmatpush1.bf16.msra.mxu0 0
      %1191 = vmatprep.subr.bf16.mxu0 0
      %1192 = vmatpush1.bf16.msra.mxu0 0
      %1193 = vmatprep.subr.bf16.mxu0 0
      %1194 = vmatpush1.bf16.msra.mxu0 0
      %1195 = vmatprep.subr.bf16.mxu0 0
      %1196 = vmatpush1.bf16.msra.mxu0 0
      %1197 = vmatprep.subr.bf16.mxu0 0
      %1198 = vmatpush1.bf16.msra.mxu0 0
      %1199 = vmatprep.subr.bf16.mxu0 0
      %1200 = vmatpush1.bf16.msra.mxu0 0
      %1201 = vmatprep.subr.bf16.mxu0 0
      %1202 = vmatpush1.bf16.msra.mxu0 0
      %1203 = vmatprep.subr.bf16.mxu0 0
      %1204 = vmatpush1.bf16.msra.mxu0 %v1146
      %1205 = vmatprep.subr.bf16.mxu0 0
      %1206 = vmatpush2.bf16.msra.mxu0 0
      %1207 = vmatprep.subr.bf16.mxu0 0
      %1208 = vmatpush2.bf16.msra.mxu0 0
      %1209 = vmatprep.subr.bf16.mxu0 0
      %1210 = vmatpush2.bf16.msra.mxu0 0
      %1211 = vmatprep.subr.bf16.mxu0 0
      %1212 = vmatpush2.bf16.msra.mxu0 0
      %1213 = vmatprep.subr.bf16.mxu0 0
      %1214 = vmatpush2.bf16.msra.mxu0 0
      %1215 = vmatprep.subr.bf16.mxu0 0
      %1216 = vmatpush2.bf16.msra.mxu0 0
      %1217 = vmatprep.subr.bf16.mxu0 0
      %1218 = vmatpush2.bf16.msra.mxu0 0
      %1219 = vmatprep.subr.bf16.mxu0 0
      %1220 = vmatpush2.bf16.msra.mxu0 0
      %1221 = vmatprep.mubr.bf16.mxu0 0
      %1222 = vmatmul.mubr.bf16.gmra.mxu0 %v1137
      %v1223 = vpop.f32.mrf.mxu0
      %v1224 = vadd.f32 0.0, %v1223
      %v1225 = vpop.f32.mrf.mxu0
      %v1226 = vpop.f32.mrf.mxu0
      %v1227 = vpop.f32.mrf.mxu0
      %1228 = vdwg.mxu0
      %v1229 = vadd.f32 %v1119, %v1183
      %v1230 = vadd.f32 %v1120, %v1185
      %v1231 = vadd.f32 %v1121, %v1224
      %v1232 = vpack.c.bf16 %v1229, %v1229
      %v1233 = vpack.c.bf16 %v1230, %v1230
      %v1234 = vpack.c.bf16 %v1231, %v1231
      %v1238 = vunpack.c.l.b16 %v1232
      %v1239 = vunpack.c.l.b16 %v1233
      %v1240 = vunpack.c.l.b16 %v1234
      %v1241 = vpack.c.b16 %v1239, %v1238
      %v1242 = vpack.c.b16 %v1240, %v1240
      %1245 = vst [vmem:[%s237] sm:$0xff] %v1241
      %1246 = vst [vmem:[%s237 + $0x8] sm:$0xf] %v1242
      %v1247 = vld [vmem:[%s2] sm:$0x7]
      %v1249 = vlaneseq
      %v1250 = vshrl.u32 %v1249, 7
      %v1251 = vsub.s32 0, %v1250
      %v1252 = vrot.slane %v1247, %v1251
      %v1253 = vlaneseq
      %v1254 = vshrl.u32 %v1253, 7
      %v1255 = vsub.s32 1, %v1254
      %v1256 = vrot.slane %v1247, %v1255
      %v1257 = vlaneseq
      %v1258 = vshrl.u32 %v1257, 7
      %v1259 = vsub.s32 2, %v1258
      %v1260 = vrot.slane %v1247, %v1259
      %v1264 = vmul.f32 %v1229, %v1252
      %v1265 = vmul.f32 %v1230, %v1256
      %v1266 = vmul.f32 %v1231, %v1260
      %v1267 = vadd.f32 %v1264, %v1265
      %v1268 = vadd.f32 %v1267, %v1266
      %1269 = vadd.xlane.f32.xlu0 %v1268
      %v1270 = vpop.xlane.xlu0 %1269
      %vm1271 = vcmask 7168
      %1272 = vst.msk [vmem:[%s241] sm:$0xff] %vm1271, %v1270
      %v1273 = vmul.f32 %v1264, %v1229
      %v1274 = vmul.f32 %v1265, %v1230
      %v1275 = vmul.f32 %v1266, %v1231
      %v1276 = vadd.f32 %v1273, %v1274
      %v1277 = vadd.f32 %v1276, %v1275
      %1278 = vadd.xlane.f32.xlu0 %v1277
      %v1279 = vpop.xlane.xlu0 %1278
      %1280 = vst.msk [vmem:[%s245] sm:$0xff] %vm1271, %v1279
      %p1281 = scmp.lt.s32.totalorder %s17, 1
      %s1282 = scalar_select %p1281, %s17, 1
      %s1283 = smul.addr %s1282, 3
      %s1284 = smul.addr %s1283, 4
      %s1285 = scalar_lea.vmem %s3, %s1284
      %p1286 = scmp.lt.s32.totalorder %s17, 1
      %s1287 = scalar_select %p1286, %s17, 1
      %s1288 = smul.addr %s1287, 8
      %s1289 = scalar_lea.vmem %s4, %s1288
      %p1290 = scmp.lt.s32.totalorder %s17, 1
      %s1291 = scalar_select %p1290, %s17, 1
      %s1292 = smul.addr %s1291, 8
      %s1293 = scalar_lea.vmem %s5, %s1292
      // Predicated region
      $region33: #{a_call__.6} parent=31 // pred_check
        %p1294 = pneg %p103
      $region34: #{a_call__.6} parent=31 // pred_check_branch
        %1296 = sbr.rel (%p1294) target = $region36
      $region35: #{a_call__.6} parent=31 // pred_region
        _
      $region36: #{a_call__.6} parent=31 // pred_fallthru
        _
      // Predicated region
      $region37: #{a_call__.6} parent=31 // pred_check
        %p1297 = pneg %p129
      $region38: #{a_call__.6} parent=31 // pred_check_branch
        %1299 = sbr.rel (%p1297) target = $region40
      $region39: #{a_call__.6} parent=31 // pred_region
        _
      $region40: #{a_call__.6} parent=31 // pred_fallthru
        _
      // Predicated region
      $region41: #{a_call__.6} parent=31 // pred_check
        %p1300 = pneg %p155
      $region42: #{a_call__.6} parent=31 // pred_check_branch
        %1302 = sbr.rel (%p1300) target = $region44
      $region43: #{a_call__.6} parent=31 // pred_region
        _
      $region44: #{a_call__.6} parent=31 // pred_fallthru
        _
    $region32: #{a_call__.6} parent=5 // pred_fallthru
      _
    %p1303 = scmp.le.s32.totalorder 2, %s12
    // Predicated region
    $region45: #{a_call__.6} parent=5 // pred_check
      %p1304 = pneg %p1303
    $region46: #{a_call__.6} parent=5 // pred_check_branch
      %1306 = sbr.rel (%p1304) target = $region48
    $region47: #{a_call__.6} parent=5 // pred_region
      %s1307 = ssub.s32 %s12, 2
      // Predicated region
      $region49: #{a_call__.6} parent=47 // pred_check
        %p1308 = pneg %p109
      $region50: #{a_call__.6} parent=47 // pred_check_branch
        %1310 = sbr.rel (%p1308) target = $region52
      $region51: #{a_call__.6} parent=47 // pred_region
        %p1311 = scmp.lt.s32.totalorder %s18, 1
        %s1312 = scalar_select %p1311, %s18, 1
        %s1313 = smul.addr %s1312, 3
        %s1314 = smul.addr %s1313, 4
        %s1315 = scalar_lea.vmem %s3, %s1314
      $region52: #{a_call__.6} parent=47 // pred_fallthru
        _
      // Predicated region
      $region53: #{a_call__.6} parent=47 // pred_check
        %p1316 = pneg %p135
      $region54: #{a_call__.6} parent=47 // pred_check_branch
        %1318 = sbr.rel (%p1316) target = $region56
      $region55: #{a_call__.6} parent=47 // pred_region
        %p1319 = scmp.lt.s32.totalorder %s18, 1
        %s1320 = scalar_select %p1319, %s18, 1
        %s1321 = smul.addr %s1320, 8
        %s1322 = scalar_lea.vmem %s4, %s1321
      $region56: #{a_call__.6} parent=47 // pred_fallthru
        _
      // Predicated region
      $region57: #{a_call__.6} parent=47 // pred_check
        %p1323 = pneg %p161
      $region58: #{a_call__.6} parent=47 // pred_check_branch
        %1325 = sbr.rel (%p1323) target = $region60
      $region59: #{a_call__.6} parent=47 // pred_region
        %p1326 = scmp.lt.s32.totalorder %s18, 1
        %s1327 = scalar_select %p1326, %s18, 1
        %s1328 = smul.addr %s1327, 8
        %s1329 = scalar_lea.vmem %s5, %s1328
      $region60: #{a_call__.6} parent=47 // pred_fallthru
        _
    $region48: #{a_call__.6} parent=5 // pred_fallthru
      _
  $region6: #{a_call__.6} parent=0 // loop_footer
    %s16 = sadd.s32 1, %s12
  $region7: #{a_call__.6} parent=0 // loop_footer_branch
    %11 = sbr.rel target = $region3
  $region8: #{a_call__.6} parent=0 // loop_exit
    _

</llo_original>
